<compile_context>
chip_gen: v5e
topology: v5e:2x2
jax: 0.10.0
libtpu: 0.0.40
codegen_flags: <defaults>
</compile_context>

<pallas_src>
import functools

import jax
import jax.numpy as jnp
from jax import lax
from jax.experimental import pallas as pl
from jax.experimental.pallas import tpu as pltpu


def _round_up(v, m):
    return ((v + m - 1) // m) * m


def _cdiv(a, b):
    return -(-a // b)


def _device_vmem_and_cores():
    """Generation-aware VMEM capacity and TensorCore count (with fallbacks)."""
    vmem_cap = None
    try:
        vmem_cap = int(pltpu.get_tpu_info().vmem_capacity_bytes)
    except Exception:
        pass
    kind = ""
    try:
        kind = jax.devices()[0].device_kind.lower()
    except Exception:
        pass
    is_v7 = "v7" in kind
    if vmem_cap is None or vmem_cap <= 0:
        vmem_cap = (64 << 20) if is_v7 else (128 << 20)
    n_tc = 2 if is_v7 else 1
    return vmem_cap, n_tc


def _pick_unroll(ct, bb, hp):
    """Unroll factor capped by estimated vreg pressure (avoid spills)."""
    gate_vregs = _cdiv(bb * 4 * hp, 1024)          # f32 gates per in-flight step
    state_vregs = 2 * max(1, _cdiv(bb * hp, 1024))  # h, c carry
    cands = ([ct] if ct <= 16 else []) + [8, 4, 2]
    for u in cands:
        if u >= 1 and ct % u == 0 and u * (gate_vregs + 2) + state_vregs <= 48:
            return u
    return 1


def _lst_kernel(x_ref, wih_ref, whh_ref, b_ref, wout_ref, bout_ref,
                out_ref, h_scr, c_scr, pre_scr, hs_scr, *, unroll):
    """One (batch_block, time_chunk) grid step.

    x_ref    : (CT, Bb, S)     f32   time-major input chunk
    wih_ref  : (S, 4Hp)        bf16  gate-major (i,f,o,g), H padded to Hp
    whh_ref  : (Hp, 4Hp)       bf16
    b_ref    : (1, 4Hp)        f32   bias_ih + bias_hh
    wout_ref : (Hp, TGTp)      bf16  head weight, TGT padded to TGTp (128-mult)
    bout_ref : (1, TGTp)       f32
    out_ref  : (CT, Bb, TGTp)  f32
    h_scr, c_scr : (Bb, Hp)    f32   recurrent state (persists across chunks)
    pre_scr  : (CT, Bb, 4Hp)   f32   hoisted input-projection pre-gates
    hs_scr   : (CT, Bb, Hp)    bf16  per-step hidden states (for deferred head)
    """
    CT, Bb, S = x_ref.shape
    Hp = whh_ref.shape[0]
    G = whh_ref.shape[1]            # 4 * Hp
    TGTp = out_ref.shape[-1]

    # Reset recurrent state at the first time-chunk of each batch block.
    @pl.when(pl.program_id(1) == 0)
    def _():
        h_scr[...] = jnp.zeros_like(h_scr)
        c_scr[...] = jnp.zeros_like(c_scr)

    # ---- 1) hoisted input projection: one MXU matmul for the whole chunk ----
    x_flat = x_ref[...].reshape(CT * Bb, S).astype(jnp.bfloat16)
    pre = jnp.dot(x_flat, wih_ref[...], preferred_element_type=jnp.float32)
    pre_scr[...] = (pre + b_ref[...]).reshape(CT, Bb, G)

    # ---- 2) serial recurrence: only h @ W_hh + VPU/EUP gate math per step ----
    def one_step(t, h, c):
        g = pre_scr[t] + jnp.dot(h.astype(jnp.bfloat16), whh_ref[...],
                                 preferred_element_type=jnp.float32)  # (Bb, 4Hp)
        sig = jax.nn.sigmoid(g[:, :3 * Hp])          # fused i, f, o sigmoid slab
        i_g = sig[:, 0 * Hp:1 * Hp]
        f_g = sig[:, 1 * Hp:2 * Hp]
        o_g = sig[:, 2 * Hp:3 * Hp]
        g_g = jnp.tanh(g[:, 3 * Hp:4 * Hp])
        c_new = f_g * c + i_g * g_g
        h_new = o_g * jnp.tanh(c_new)
        hs_scr[t] = h_new.astype(jnp.bfloat16)       # bf16 history for the head
        return h_new, c_new

    U = unroll                       # static unroll factor, divides CT
    n_blocks = CT // U

    def unrolled_block(tb, carry):
        h, c = carry
        for j in range(U):           # static inner unroll -> scheduler visibility
            h, c = one_step(tb * U + j, h, c)
        return h, c

    carry0 = (h_scr[...], c_scr[...])
    if n_blocks == 1:
        h_fin, c_fin = unrolled_block(0, carry0)
    else:
        h_fin, c_fin = lax.fori_loop(0, n_blocks, unrolled_block, carry0)
    h_scr[...] = h_fin
    c_scr[...] = c_fin

    # ---- 3) deferred output head: one matmul + one lane-dense block store ----
    hs = hs_scr[...].reshape(CT * Bb, Hp)
    y = jnp.dot(hs, wout_ref[...], preferred_element_type=jnp.float32) + bout_ref[...]
    out_ref[...] = y.reshape(CT, Bb, TGTp).astype(out_ref.dtype)


def _prep_params(params, Hp, TGTp):
    """Pad H->Hp per gate, reorder gates to (i,f,o,g), pad TGT->TGTp, cast bf16."""
    wih = params["weight_ih"]                       # (4H, S), PyTorch order i,f,g,o
    whh = params["weight_hh"]                       # (4H, H)
    b_ih, b_hh = params["bias_ih"], params["bias_hh"]
    w_out, b_out = params["linear_w"], params["linear_b"]
    H = whh.shape[1]
    TGT = w_out.shape[0]
    order = jnp.array([0, 1, 3, 2])                 # i, f, o, g

    def prep_gate_rows(w):                          # (4H, C) -> (4Hp, C)
        w4 = w.reshape(4, H, -1)[order]
        w4 = jnp.pad(w4, ((0, 0), (0, Hp - H), (0, 0)))
        return w4.reshape(4 * Hp, -1)

    wih_t = prep_gate_rows(wih).T.astype(jnp.bfloat16)                  # (S, 4Hp)
    whh_p = jnp.pad(prep_gate_rows(whh), ((0, 0), (0, Hp - H)))         # (4Hp, Hp)
    whh_t = whh_p.T.astype(jnp.bfloat16)                                # (Hp, 4Hp)
    b = prep_gate_rows((b_ih + b_hh)[:, None]).reshape(1, 4 * Hp).astype(jnp.float32)
    wout_t = jnp.pad(w_out.T, ((0, Hp - H), (0, TGTp - TGT))).astype(jnp.bfloat16)
    bout = jnp.pad(b_out, (0, TGTp - TGT)).reshape(1, TGTp).astype(jnp.float32)
    return wih_t, whh_t, b, wout_t, bout


def lst_forward(x, params, *, time_chunk=None):
    """x: (B, T, S) float32 -> (B, T, TARGET) float32."""
    B, T, S = x.shape
    H = params["weight_hh"].shape[1]
    TGT = params["linear_w"].shape[0]

    Hp = _round_up(H, 128)                   # lane-aligned hidden size
    TGTp = _round_up(TGT, 128)               # lane-dense output (review: biggest lever)
    Bp = _round_up(B, 8)                     # sublane-aligned batch

    vmem_cap, n_tc = _device_vmem_and_cores()
    vmem_budget = min(int(vmem_cap * 0.8), 110 << 20)   # ~51 MiB on v7x, ~102 on v5e/v6e

    # Batch split only where it really shards (2 TensorCores) and stays 8-aligned.
    n_b = 2 if (n_tc >= 2 and Bp % 16 == 0) else 1
    Bb = Bp // n_b

    # --- time-chunk length derived from the VMEM budget (pre_scr dominates) ---
    wbytes = (S * 4 * Hp + Hp * 4 * Hp + Hp * TGTp) * 2 + (4 * Hp + TGTp) * 4

    def footprint(ct):
        blk = 2 * ct * Bb * (S + TGTp) * 4                       # dbl-buffered in/out
        scr = 2 * Bb * Hp * 4 + ct * Bb * 4 * Hp * 4 + ct * Bb * Hp * 2
        return blk + wbytes + scr + (4 << 20)                    # compiler headroom

    if time_chunk is not None:
        CT = _round_up(time_chunk, 8)
    else:
        ct_cap = 128 if vmem_cap <= (64 << 20) else 256          # v7x vs v5e/v6e
        CT = min(ct_cap, _round_up(T, 8))
        while CT > 8 and footprint(CT) > vmem_budget:
            CT = _round_up(CT // 2, 8)
    n_t = _cdiv(T, CT)
    CT = _round_up(_cdiv(T, n_t), 8)         # shrink chunk to minimize tail padding
    Tp = n_t * CT                            # padded (masked-off) tail instead of CT=1

    U = _pick_unroll(CT, Bb, Hp)

    wih_t, whh_t, b, wout_t, bout = _prep_params(params, Hp, TGTp)

    # TODO(synk): wrapper transposes cost one extra HBM pass over x and y each.
    x_p = jnp.pad(x, ((0, Bp - B), (0, Tp - T), (0, 0)))
    x_tm = jnp.transpose(x_p, (1, 0, 2))     # (Tp, Bp, S) time-major

    kernel = functools.partial(_lst_kernel, unroll=U)

    def const_spec(shape, single_buffer):
        idx = lambda bi, ti: (0,) * len(shape)
        if single_buffer:
            # Constant-index weights are never re-fetched -> single-buffer them.
            return pl.BlockSpec(shape, idx, pipeline_mode=pl.Buffered(1))
        return pl.BlockSpec(shape, idx)

    def run(single_buffer_weights):
        return pl.pallas_call(
            kernel,
            out_shape=jax.ShapeDtypeStruct((Tp, Bp, TGTp), jnp.float32),
            grid_spec=pltpu.PrefetchScalarGridSpec(
                num_scalar_prefetch=0,
                grid=(n_b, n_t),
                in_specs=[
                    pl.BlockSpec((CT, Bb, S), lambda bi, ti: (ti, bi, 0)),
                    const_spec((S, 4 * Hp), single_buffer_weights),
                    const_spec((Hp, 4 * Hp), single_buffer_weights),
                    const_spec((1, 4 * Hp), single_buffer_weights),
                    const_spec((Hp, TGTp), single_buffer_weights),
                    const_spec((1, TGTp), single_buffer_weights),
                ],
                out_specs=pl.BlockSpec((CT, Bb, TGTp), lambda bi, ti: (ti, bi, 0)),
                scratch_shapes=[
                    pltpu.VMEM((Bb, Hp), jnp.float32),            # h state
                    pltpu.VMEM((Bb, Hp), jnp.float32),            # c state
                    pltpu.VMEM((CT, Bb, 4 * Hp), jnp.float32),    # hoisted pre-gates
                    pltpu.VMEM((CT, Bb, Hp), jnp.bfloat16),       # per-step h history
                ],
            ),
            compiler_params=pltpu.CompilerParams(
                dimension_semantics=("parallel", "arbitrary"),
                vmem_limit_bytes=int(vmem_budget),
            ),
        )(x_tm, wih_t, whh_t, b, wout_t, bout)

    try:
        out_tm = run(True)
    except Exception:
        # pl.Buffered(1) not supported on this jax version -> default buffering.
        out_tm = run(False)

    return jnp.transpose(out_tm, (1, 0, 2))[:B, :T, :TGT]   # (B, T, TARGET)


def lst_reference(x, params):
    """Pure-JAX f32 reference matching nn.LSTM(batch_first) + nn.Linear."""
    wih, whh, b_ih, b_hh, w_out, b_out = (
        params["weight_ih"], params["weight_hh"],
        params["bias_ih"], params["bias_hh"],
        params["linear_w"], params["linear_b"],
    )
    B, T, S = x.shape
    H = whh.shape[1]
    h = jnp.zeros((B, H), jnp.float32)
    c = jnp.zeros((B, H), jnp.float32)

    def step(carry, x_t):
        h, c = carry
        gates = x_t @ wih.T + h @ whh.T + b_ih + b_hh
        i_g, f_g, g_g, o_g = jnp.split(gates, 4, axis=-1)
        i_g = jax.nn.sigmoid(i_g)
        f_g = jax.nn.sigmoid(f_g)
        g_g = jnp.tanh(g_g)
        o_g = jax.nn.sigmoid(o_g)
        c_new = f_g * c + i_g * g_g
        h_new = o_g * jnp.tanh(c_new)
        return (h_new, c_new), h_new

    (_, _), hs = lax.scan(step, (h, c), jnp.transpose(x, (1, 0, 2)))
    hs = jnp.transpose(hs, (1, 0, 2))            # (B, T, H)
    return hs @ w_out.T + b_out


def init_params(key, source_size, target_size, hidden):
    """Deterministic init matching the PyTorch parameter shapes (uniform +/- 1/sqrt(H))."""
    k = 1.0 / jnp.sqrt(hidden)
    keys = jax.random.split(key, 6)
    u = lambda kk, shape: jax.random.uniform(kk, shape, jnp.float32, -k, k)
    return {
        "weight_ih": u(keys[0], (4 * hidden, source_size)),  # gate order: i, f, g, o
        "weight_hh": u(keys[1], (4 * hidden, hidden)),
        "bias_ih":   u(keys[2], (4 * hidden,)),
        "bias_hh":   u(keys[3], (4 * hidden,)),
        "linear_w":  u(keys[4], (target_size, hidden)),
        "linear_b":  u(keys[5], (target_size,)),
    }


if __name__ == "__main__":
    B, T = 2, 8
    SOURCE_SIZE, TARGET_SIZE, HIDDEN = 16, 4, 32

    key = jax.random.PRNGKey(0)
    kx, kp = jax.random.split(key)
    x = jax.random.normal(kx, (B, T, SOURCE_SIZE), dtype=jnp.float32)
    params = init_params(kp, SOURCE_SIZE, TARGET_SIZE, HIDDEN)

    out = jax.block_until_ready(lst_forward(x, params))
    ref = jax.block_until_ready(lst_reference(x, params))

    assert out.shape == (B, T, TARGET_SIZE), out.shape
    max_err = float(jnp.max(jnp.abs(out - ref)))
    assert max_err < 5e-2, f"mismatch vs reference: {max_err}"

    print("KERNEL_OK")
</pallas_src>

<mosaic_0001>
module attributes {stable_mosaic.version = 11 : i64} {
  func.func @_lst_kernel(%arg0: i32, %arg1: i32, %arg2: memref<8x8x16xf32, #tpu.memory_space<vmem>>, %arg3: memref<16x512xbf16, #tpu.memory_space<vmem>>, %arg4: memref<128x512xbf16, #tpu.memory_space<vmem>>, %arg5: memref<1x512xf32, #tpu.memory_space<vmem>>, %arg6: memref<128x128xbf16, #tpu.memory_space<vmem>>, %arg7: memref<1x128xf32, #tpu.memory_space<vmem>>, %arg8: memref<8x8x128xf32, #tpu.memory_space<vmem>>, %arg9: memref<8x128xf32, #tpu.memory_space<vmem>>, %arg10: memref<8x128xf32, #tpu.memory_space<vmem>>, %arg11: memref<8x8x512xf32, #tpu.memory_space<vmem>>, %arg12: memref<8x8x128xbf16, #tpu.memory_space<vmem>>) attributes {dimension_semantics = [#tpu.dimension_semantics<parallel>, #tpu.dimension_semantics<arbitrary>], iteration_bounds = array<i64: 1, 1>, scalar_prefetch = 0 : i64, scratch_operands = 4 : i64, tpu.core_type = #tpu.core_type<tc>, window_params = [{transform_indices = @transform_0, window_bounds = array<i64: 8, 8, 16>}, {pipeline_mode = #tpu.pipeline_mode<synchronous>, transform_indices = @transform_1, window_bounds = array<i64: 16, 512>}, {pipeline_mode = #tpu.pipeline_mode<synchronous>, transform_indices = @transform_2, window_bounds = array<i64: 128, 512>}, {pipeline_mode = #tpu.pipeline_mode<synchronous>, transform_indices = @transform_3, window_bounds = array<i64: 1, 512>}, {pipeline_mode = #tpu.pipeline_mode<synchronous>, transform_indices = @transform_4, window_bounds = array<i64: 128, 128>}, {pipeline_mode = #tpu.pipeline_mode<synchronous>, transform_indices = @transform_5, window_bounds = array<i64: 1, 128>}, {transform_indices = @transform_6, window_bounds = array<i64: 8, 8, 128>}]} {
    %c0_i32 = arith.constant 0 : i32
    %0 = arith.cmpi eq, %arg1, %c0_i32 : i32
    %1 = arith.extui %0 : i1 to i32
    %c0_i32_0 = arith.constant 0 : i32
    %2 = arith.cmpi ne, %1, %c0_i32_0 : i32
    scf.if %2 {
      %cst_31 = arith.constant 0.000000e+00 : f32
      %28 = vector.broadcast %cst_31 : f32 to vector<8x128xf32>
      %c0_32 = arith.constant 0 : index
      %c0_33 = arith.constant 0 : index
      %29 = vector.load %arg9[%c0_32, %c0_33] : memref<8x128xf32, #tpu.memory_space<vmem>>, vector<8x128xf32>
      tpu.vector_store %arg9[%c0_32, %c0_33], %28 {strides = array<i32>} : memref<8x128xf32, #tpu.memory_space<vmem>>, vector<8x128xf32>,
      %cst_34 = arith.constant 0.000000e+00 : f32
      %30 = vector.broadcast %cst_34 : f32 to vector<8x128xf32>
      %c0_35 = arith.constant 0 : index
      %c0_36 = arith.constant 0 : index
      %31 = vector.load %arg10[%c0_35, %c0_36] : memref<8x128xf32, #tpu.memory_space<vmem>>, vector<8x128xf32>
      tpu.vector_store %arg10[%c0_35, %c0_36], %30 {strides = array<i32>} : memref<8x128xf32, #tpu.memory_space<vmem>>, vector<8x128xf32>,
    } else {
    }
    %c0 = arith.constant 0 : index
    %c0_1 = arith.constant 0 : index
    %c0_2 = arith.constant 0 : index
    %3 = vector.load %arg2[%c0, %c0_1, %c0_2] : memref<8x8x16xf32, #tpu.memory_space<vmem>>, vector<8x8x16xf32>
    %4 = vector.shape_cast %3 : vector<8x8x16xf32> to vector<64x16xf32>
    %5 = arith.truncf %4 : vector<64x16xf32> to vector<64x16xbf16>
    %c0_3 = arith.constant 0 : index
    %c0_4 = arith.constant 0 : index
    %6 = vector.load %arg3[%c0_3, %c0_4] : memref<16x512xbf16, #tpu.memory_space<vmem>>, vector<16x512xbf16>
    %cst = arith.constant dense<0.000000e+00> : vector<64x512xf32>
    %7 = tpu.matmul %5, %6, %cst {dimension_numbers = #tpu.dot_dimension_numbers<[1], [0], [0], [1], [0, 0, 1, 1], [], []>} : vector<64x16xbf16>, vector<16x512xbf16>, vector<64x512xf32> -> vector<64x512xf32>
    %c0_5 = arith.constant 0 : index
    %c0_6 = arith.constant 0 : index
    %8 = vector.load %arg5[%c0_5, %c0_6] : memref<1x512xf32, #tpu.memory_space<vmem>>, vector<1x512xf32>
    %9 = vector.broadcast %8 : vector<1x512xf32> to vector<64x512xf32>
    %10 = arith.addf %7, %9 : vector<64x512xf32>
    %11 = vector.shape_cast %10 : vector<64x512xf32> to vector<8x8x512xf32>
    %c0_7 = arith.constant 0 : index
    %c0_8 = arith.constant 0 : index
    %c0_9 = arith.constant 0 : index
    %12 = vector.load %arg11[%c0_7, %c0_8, %c0_9] : memref<8x8x512xf32, #tpu.memory_space<vmem>>, vector<8x8x512xf32>
    tpu.vector_store %arg11[%c0_7, %c0_8, %c0_9], %11 {strides = array<i32>} : memref<8x8x512xf32, #tpu.memory_space<vmem>>, vector<8x8x512xf32>,
    %c0_10 = arith.constant 0 : index
    %c0_11 = arith.constant 0 : index
    %13 = vector.load %arg9[%c0_10, %c0_11] : memref<8x128xf32, #tpu.memory_space<vmem>>, vector<8x128xf32>
    %c0_12 = arith.constant 0 : index
    %c0_13 = arith.constant 0 : index
    %14 = vector.load %arg10[%c0_12, %c0_13] : memref<8x128xf32, #tpu.memory_space<vmem>>, vector<8x128xf32>
    %c0_i32_14 = arith.constant 0 : i32
    %c2_i32 = arith.constant 2 : i32
    %15 = arith.addi %c0_i32_14, %c2_i32 : i32
    %c1_i32 = arith.constant 1 : i32
    %16:2 = scf.for %arg13 = %c0_i32_14 to %15 step %c1_i32 iter_args(%arg14 = %13, %arg15 = %14) -> (vector<8x128xf32>, vector<8x128xf32>)  : i32 {
      %c4_i32 = arith.constant 4 : i32
      %28 = arith.muli %arg13, %c4_i32 : i32
      %c0_i32_31 = arith.constant 0 : i32
      %29 = arith.addi %28, %c0_i32_31 : i32
      %30 = arith.index_cast %29 : i32 to index
      %c0_32 = arith.constant 0 : index
      %c0_33 = arith.constant 0 : index
      %31 = vector.load %arg11[%30, %c0_32, %c0_33] : memref<8x8x512xf32, #tpu.memory_space<vmem>>, vector<1x8x512xf32>
      %32 = vector.shape_cast %31 : vector<1x8x512xf32> to vector<8x512xf32>
      %33 = arith.truncf %arg14 : vector<8x128xf32> to vector<8x128xbf16>
      %c0_34 = arith.constant 0 : index
      %c0_35 = arith.constant 0 : index
      %34 = vector.load %arg4[%c0_34, %c0_35] : memref<128x512xbf16, #tpu.memory_space<vmem>>, vector<128x512xbf16>
      %cst_36 = arith.constant dense<0.000000e+00> : vector<8x512xf32>
      %35 = tpu.matmul %33, %34, %cst_36 {dimension_numbers = #tpu.dot_dimension_numbers<[1], [0], [0], [1], [0, 0, 1, 1], [], []>} : vector<8x128xbf16>, vector<128x512xbf16>, vector<8x512xf32> -> vector<8x512xf32>
      %36 = arith.addf %32, %35 : vector<8x512xf32>
      %37 = vector.extract_strided_slice %36 {offsets = [0, 0], sizes = [8, 384], strides = [1, 1]} : vector<8x512xf32> to vector<8x384xf32>
      %38 = arith.negf %37 : vector<8x384xf32>
      %39 = math.exp %38 : vector<8x384xf32>
      %cst_37 = arith.constant 1.000000e+00 : f32
      %40 = vector.broadcast %cst_37 : f32 to vector<8x384xf32>
      %41 = arith.addf %40, %39 : vector<8x384xf32>
      %42 = arith.divf %40, %41 : vector<8x384xf32>
      %43 = vector.extract_strided_slice %42 {offsets = [0, 0], sizes = [8, 128], strides = [1, 1]} : vector<8x384xf32> to vector<8x128xf32>
      %44 = vector.extract_strided_slice %42 {offsets = [0, 128], sizes = [8, 128], strides = [1, 1]} : vector<8x384xf32> to vector<8x128xf32>
      %45 = vector.extract_strided_slice %42 {offsets = [0, 256], sizes = [8, 128], strides = [1, 1]} : vector<8x384xf32> to vector<8x128xf32>
      %46 = vector.extract_strided_slice %36 {offsets = [0, 384], sizes = [8, 128], strides = [1, 1]} : vector<8x512xf32> to vector<8x128xf32>
      %47 = math.tanh %46 : vector<8x128xf32>
      %48 = arith.mulf %44, %arg15 : vector<8x128xf32>
      %49 = arith.mulf %43, %47 : vector<8x128xf32>
      %50 = arith.addf %48, %49 : vector<8x128xf32>
      %51 = math.tanh %50 : vector<8x128xf32>
      %52 = arith.mulf %45, %51 : vector<8x128xf32>
      %53 = arith.truncf %52 : vector<8x128xf32> to vector<8x128xbf16>
      %54 = arith.index_cast %29 : i32 to index
      %c0_38 = arith.constant 0 : index
      %c0_39 = arith.constant 0 : index
      %55 = vector.load %arg12[%54, %c0_38, %c0_39] : memref<8x8x128xbf16, #tpu.memory_space<vmem>>, vector<1x8x128xbf16>
      %56 = vector.shape_cast %55 : vector<1x8x128xbf16> to vector<8x128xbf16>
      %57 = vector.shape_cast %53 : vector<8x128xbf16> to vector<1x8x128xbf16>
      tpu.vector_store %arg12[%54, %c0_38, %c0_39], %57 {strides = array<i32>} : memref<8x8x128xbf16, #tpu.memory_space<vmem>>, vector<1x8x128xbf16>,
      %c4_i32_40 = arith.constant 4 : i32
      %58 = arith.muli %arg13, %c4_i32_40 : i32
      %c1_i32_41 = arith.constant 1 : i32
      %59 = arith.addi %58, %c1_i32_41 : i32
      %60 = arith.index_cast %59 : i32 to index
      %c0_42 = arith.constant 0 : index
      %c0_43 = arith.constant 0 : index
      %61 = vector.load %arg11[%60, %c0_42, %c0_43] : memref<8x8x512xf32, #tpu.memory_space<vmem>>, vector<1x8x512xf32>
      %62 = vector.shape_cast %61 : vector<1x8x512xf32> to vector<8x512xf32>
      %63 = arith.truncf %52 : vector<8x128xf32> to vector<8x128xbf16>
      %c0_44 = arith.constant 0 : index
      %c0_45 = arith.constant 0 : index
      %64 = vector.load %arg4[%c0_44, %c0_45] : memref<128x512xbf16, #tpu.memory_space<vmem>>, vector<128x512xbf16>
      %cst_46 = arith.constant dense<0.000000e+00> : vector<8x512xf32>
      %65 = tpu.matmul %63, %64, %cst_46 {dimension_numbers = #tpu.dot_dimension_numbers<[1], [0], [0], [1], [0, 0, 1, 1], [], []>} : vector<8x128xbf16>, vector<128x512xbf16>, vector<8x512xf32> -> vector<8x512xf32>
      %66 = arith.addf %62, %65 : vector<8x512xf32>
      %67 = vector.extract_strided_slice %66 {offsets = [0, 0], sizes = [8, 384], strides = [1, 1]} : vector<8x512xf32> to vector<8x384xf32>
      %68 = arith.negf %67 : vector<8x384xf32>
      %69 = math.exp %68 : vector<8x384xf32>
      %cst_47 = arith.constant 1.000000e+00 : f32
      %70 = vector.broadcast %cst_47 : f32 to vector<8x384xf32>
      %71 = arith.addf %70, %69 : vector<8x384xf32>
      %72 = arith.divf %70, %71 : vector<8x384xf32>
      %73 = vector.extract_strided_slice %72 {offsets = [0, 0], sizes = [8, 128], strides = [1, 1]} : vector<8x384xf32> to vector<8x128xf32>
      %74 = vector.extract_strided_slice %72 {offsets = [0, 128], sizes = [8, 128], strides = [1, 1]} : vector<8x384xf32> to vector<8x128xf32>
      %75 = vector.extract_strided_slice %72 {offsets = [0, 256], sizes = [8, 128], strides = [1, 1]} : vector<8x384xf32> to vector<8x128xf32>
      %76 = vector.extract_strided_slice %66 {offsets = [0, 384], sizes = [8, 128], strides = [1, 1]} : vector<8x512xf32> to vector<8x128xf32>
      %77 = math.tanh %76 : vector<8x128xf32>
      %78 = arith.mulf %74, %50 : vector<8x128xf32>
      %79 = arith.mulf %73, %77 : vector<8x128xf32>
      %80 = arith.addf %78, %79 : vector<8x128xf32>
      %81 = math.tanh %80 : vector<8x128xf32>
      %82 = arith.mulf %75, %81 : vector<8x128xf32>
      %83 = arith.truncf %82 : vector<8x128xf32> to vector<8x128xbf16>
      %84 = arith.index_cast %59 : i32 to index
      %c0_48 = arith.constant 0 : index
      %c0_49 = arith.constant 0 : index
      %85 = vector.load %arg12[%84, %c0_48, %c0_49] : memref<8x8x128xbf16, #tpu.memory_space<vmem>>, vector<1x8x128xbf16>
      %86 = vector.shape_cast %85 : vector<1x8x128xbf16> to vector<8x128xbf16>
      %87 = vector.shape_cast %83 : vector<8x128xbf16> to vector<1x8x128xbf16>
      tpu.vector_store %arg12[%84, %c0_48, %c0_49], %87 {strides = array<i32>} : memref<8x8x128xbf16, #tpu.memory_space<vmem>>, vector<1x8x128xbf16>,
      %c4_i32_50 = arith.constant 4 : i32
      %88 = arith.muli %arg13, %c4_i32_50 : i32
      %c2_i32_51 = arith.constant 2 : i32
      %89 = arith.addi %88, %c2_i32_51 : i32
      %90 = arith.index_cast %89 : i32 to index
      %c0_52 = arith.constant 0 : index
      %c0_53 = arith.constant 0 : index
      %91 = vector.load %arg11[%90, %c0_52, %c0_53] : memref<8x8x512xf32, #tpu.memory_space<vmem>>, vector<1x8x512xf32>
      %92 = vector.shape_cast %91 : vector<1x8x512xf32> to vector<8x512xf32>
      %93 = arith.truncf %82 : vector<8x128xf32> to vector<8x128xbf16>
      %c0_54 = arith.constant 0 : index
      %c0_55 = arith.constant 0 : index
      %94 = vector.load %arg4[%c0_54, %c0_55] : memref<128x512xbf16, #tpu.memory_space<vmem>>, vector<128x512xbf16>
      %cst_56 = arith.constant dense<0.000000e+00> : vector<8x512xf32>
      %95 = tpu.matmul %93, %94, %cst_56 {dimension_numbers = #tpu.dot_dimension_numbers<[1], [0], [0], [1], [0, 0, 1, 1], [], []>} : vector<8x128xbf16>, vector<128x512xbf16>, vector<8x512xf32> -> vector<8x512xf32>
      %96 = arith.addf %92, %95 : vector<8x512xf32>
      %97 = vector.extract_strided_slice %96 {offsets = [0, 0], sizes = [8, 384], strides = [1, 1]} : vector<8x512xf32> to vector<8x384xf32>
      %98 = arith.negf %97 : vector<8x384xf32>
      %99 = math.exp %98 : vector<8x384xf32>
      %cst_57 = arith.constant 1.000000e+00 : f32
      %100 = vector.broadcast %cst_57 : f32 to vector<8x384xf32>
      %101 = arith.addf %100, %99 : vector<8x384xf32>
      %102 = arith.divf %100, %101 : vector<8x384xf32>
      %103 = vector.extract_strided_slice %102 {offsets = [0, 0], sizes = [8, 128], strides = [1, 1]} : vector<8x384xf32> to vector<8x128xf32>
      %104 = vector.extract_strided_slice %102 {offsets = [0, 128], sizes = [8, 128], strides = [1, 1]} : vector<8x384xf32> to vector<8x128xf32>
      %105 = vector.extract_strided_slice %102 {offsets = [0, 256], sizes = [8, 128], strides = [1, 1]} : vector<8x384xf32> to vector<8x128xf32>
      %106 = vector.extract_strided_slice %96 {offsets = [0, 384], sizes = [8, 128], strides = [1, 1]} : vector<8x512xf32> to vector<8x128xf32>
      %107 = math.tanh %106 : vector<8x128xf32>
      %108 = arith.mulf %104, %80 : vector<8x128xf32>
      %109 = arith.mulf %103, %107 : vector<8x128xf32>
      %110 = arith.addf %108, %109 : vector<8x128xf32>
      %111 = math.tanh %110 : vector<8x128xf32>
      %112 = arith.mulf %105, %111 : vector<8x128xf32>
      %113 = arith.truncf %112 : vector<8x128xf32> to vector<8x128xbf16>
      %114 = arith.index_cast %89 : i32 to index
      %c0_58 = arith.constant 0 : index
      %c0_59 = arith.constant 0 : index
      %115 = vector.load %arg12[%114, %c0_58, %c0_59] : memref<8x8x128xbf16, #tpu.memory_space<vmem>>, vector<1x8x128xbf16>
      %116 = vector.shape_cast %115 : vector<1x8x128xbf16> to vector<8x128xbf16>
      %117 = vector.shape_cast %113 : vector<8x128xbf16> to vector<1x8x128xbf16>
      tpu.vector_store %arg12[%114, %c0_58, %c0_59], %117 {strides = array<i32>} : memref<8x8x128xbf16, #tpu.memory_space<vmem>>, vector<1x8x128xbf16>,
      %c4_i32_60 = arith.constant 4 : i32
      %118 = arith.muli %arg13, %c4_i32_60 : i32
      %c3_i32 = arith.constant 3 : i32
      %119 = arith.addi %118, %c3_i32 : i32
      %120 = arith.index_cast %119 : i32 to index
      %c0_61 = arith.constant 0 : index
      %c0_62 = arith.constant 0 : index
      %121 = vector.load %arg11[%120, %c0_61, %c0_62] : memref<8x8x512xf32, #tpu.memory_space<vmem>>, vector<1x8x512xf32>
      %122 = vector.shape_cast %121 : vector<1x8x512xf32> to vector<8x512xf32>
      %123 = arith.truncf %112 : vector<8x128xf32> to vector<8x128xbf16>
      %c0_63 = arith.constant 0 : index
      %c0_64 = arith.constant 0 : index
      %124 = vector.load %arg4[%c0_63, %c0_64] : memref<128x512xbf16, #tpu.memory_space<vmem>>, vector<128x512xbf16>
      %cst_65 = arith.constant dense<0.000000e+00> : vector<8x512xf32>
      %125 = tpu.matmul %123, %124, %cst_65 {dimension_numbers = #tpu.dot_dimension_numbers<[1], [0], [0], [1], [0, 0, 1, 1], [], []>} : vector<8x128xbf16>, vector<128x512xbf16>, vector<8x512xf32> -> vector<8x512xf32>
      %126 = arith.addf %122, %125 : vector<8x512xf32>
      %127 = vector.extract_strided_slice %126 {offsets = [0, 0], sizes = [8, 384], strides = [1, 1]} : vector<8x512xf32> to vector<8x384xf32>
      %128 = arith.negf %127 : vector<8x384xf32>
      %129 = math.exp %128 : vector<8x384xf32>
      %cst_66 = arith.constant 1.000000e+00 : f32
      %130 = vector.broadcast %cst_66 : f32 to vector<8x384xf32>
      %131 = arith.addf %130, %129 : vector<8x384xf32>
      %132 = arith.divf %130, %131 : vector<8x384xf32>
      %133 = vector.extract_strided_slice %132 {offsets = [0, 0], sizes = [8, 128], strides = [1, 1]} : vector<8x384xf32> to vector<8x128xf32>
      %134 = vector.extract_strided_slice %132 {offsets = [0, 128], sizes = [8, 128], strides = [1, 1]} : vector<8x384xf32> to vector<8x128xf32>
      %135 = vector.extract_strided_slice %132 {offsets = [0, 256], sizes = [8, 128], strides = [1, 1]} : vector<8x384xf32> to vector<8x128xf32>
      %136 = vector.extract_strided_slice %126 {offsets = [0, 384], sizes = [8, 128], strides = [1, 1]} : vector<8x512xf32> to vector<8x128xf32>
      %137 = math.tanh %136 : vector<8x128xf32>
      %138 = arith.mulf %134, %110 : vector<8x128xf32>
      %139 = arith.mulf %133, %137 : vector<8x128xf32>
      %140 = arith.addf %138, %139 : vector<8x128xf32>
      %141 = math.tanh %140 : vector<8x128xf32>
      %142 = arith.mulf %135, %141 : vector<8x128xf32>
      %143 = arith.truncf %142 : vector<8x128xf32> to vector<8x128xbf16>
      %144 = arith.index_cast %119 : i32 to index
      %c0_67 = arith.constant 0 : index
      %c0_68 = arith.constant 0 : index
      %145 = vector.load %arg12[%144, %c0_67, %c0_68] : memref<8x8x128xbf16, #tpu.memory_space<vmem>>, vector<1x8x128xbf16>
      %146 = vector.shape_cast %145 : vector<1x8x128xbf16> to vector<8x128xbf16>
      %147 = vector.shape_cast %143 : vector<8x128xbf16> to vector<1x8x128xbf16>
      tpu.vector_store %arg12[%144, %c0_67, %c0_68], %147 {strides = array<i32>} : memref<8x8x128xbf16, #tpu.memory_space<vmem>>, vector<1x8x128xbf16>,
      scf.yield %142, %140 : vector<8x128xf32>, vector<8x128xf32>
    }
    %c2_i32_15 = arith.constant 2 : i32
    %c0_16 = arith.constant 0 : index
    %c0_17 = arith.constant 0 : index
    %17 = vector.load %arg9[%c0_16, %c0_17] : memref<8x128xf32, #tpu.memory_space<vmem>>, vector<8x128xf32>
    tpu.vector_store %arg9[%c0_16, %c0_17], %16#0 {strides = array<i32>} : memref<8x128xf32, #tpu.memory_space<vmem>>, vector<8x128xf32>,
    %c0_18 = arith.constant 0 : index
    %c0_19 = arith.constant 0 : index
    %18 = vector.load %arg10[%c0_18, %c0_19] : memref<8x128xf32, #tpu.memory_space<vmem>>, vector<8x128xf32>
    tpu.vector_store %arg10[%c0_18, %c0_19], %16#1 {strides = array<i32>} : memref<8x128xf32, #tpu.memory_space<vmem>>, vector<8x128xf32>,
    %c0_20 = arith.constant 0 : index
    %c0_21 = arith.constant 0 : index
    %c0_22 = arith.constant 0 : index
    %19 = vector.load %arg12[%c0_20, %c0_21, %c0_22] : memref<8x8x128xbf16, #tpu.memory_space<vmem>>, vector<8x8x128xbf16>
    %20 = vector.shape_cast %19 : vector<8x8x128xbf16> to vector<64x128xbf16>
    %c0_23 = arith.constant 0 : index
    %c0_24 = arith.constant 0 : index
    %21 = vector.load %arg6[%c0_23, %c0_24] : memref<128x128xbf16, #tpu.memory_space<vmem>>, vector<128x128xbf16>
    %cst_25 = arith.constant dense<0.000000e+00> : vector<64x128xf32>
    %22 = tpu.matmul %20, %21, %cst_25 {dimension_numbers = #tpu.dot_dimension_numbers<[1], [0], [0], [1], [0, 0, 1, 1], [], []>} : vector<64x128xbf16>, vector<128x128xbf16>, vector<64x128xf32> -> vector<64x128xf32>
    %c0_26 = arith.constant 0 : index
    %c0_27 = arith.constant 0 : index
    %23 = vector.load %arg7[%c0_26, %c0_27] : memref<1x128xf32, #tpu.memory_space<vmem>>, vector<1x128xf32>
    %24 = vector.broadcast %23 : vector<1x128xf32> to vector<64x128xf32>
    %25 = arith.addf %22, %24 : vector<64x128xf32>
    %26 = vector.shape_cast %25 : vector<64x128xf32> to vector<8x8x128xf32>
    %c0_28 = arith.constant 0 : index
    %c0_29 = arith.constant 0 : index
    %c0_30 = arith.constant 0 : index
    %27 = vector.load %arg8[%c0_28, %c0_29, %c0_30] : memref<8x8x128xf32, #tpu.memory_space<vmem>>, vector<8x8x128xf32>
    tpu.vector_store %arg8[%c0_28, %c0_29, %c0_30], %26 {strides = array<i32>} : memref<8x8x128xf32, #tpu.memory_space<vmem>>, vector<8x8x128xf32>,
    return
  }
  func.func @transform_0(%arg0: i32, %arg1: i32) -> (i32, i32, i32) {
    %c0_i32 = arith.constant 0 : i32
    %c0_i32_0 = arith.constant 0 : i32
    return %arg1, %arg0, %c0_i32 : i32, i32, i32
  }
  func.func @transform_1(%arg0: i32, %arg1: i32) -> (i32, i32) {
    %c0_i32 = arith.constant 0 : i32
    %c0_i32_0 = arith.constant 0 : i32
    %c0_i32_1 = arith.constant 0 : i32
    return %c0_i32, %c0_i32_0 : i32, i32
  }
  func.func @transform_2(%arg0: i32, %arg1: i32) -> (i32, i32) {
    %c0_i32 = arith.constant 0 : i32
    %c0_i32_0 = arith.constant 0 : i32
    %c0_i32_1 = arith.constant 0 : i32
    return %c0_i32, %c0_i32_0 : i32, i32
  }
  func.func @transform_3(%arg0: i32, %arg1: i32) -> (i32, i32) {
    %c0_i32 = arith.constant 0 : i32
    %c0_i32_0 = arith.constant 0 : i32
    %c0_i32_1 = arith.constant 0 : i32
    return %c0_i32, %c0_i32_0 : i32, i32
  }
  func.func @transform_4(%arg0: i32, %arg1: i32) -> (i32, i32) {
    %c0_i32 = arith.constant 0 : i32
    %c0_i32_0 = arith.constant 0 : i32
    %c0_i32_1 = arith.constant 0 : i32
    return %c0_i32, %c0_i32_0 : i32, i32
  }
  func.func @transform_5(%arg0: i32, %arg1: i32) -> (i32, i32) {
    %c0_i32 = arith.constant 0 : i32
    %c0_i32_0 = arith.constant 0 : i32
    %c0_i32_1 = arith.constant 0 : i32
    return %c0_i32, %c0_i32_0 : i32, i32
  }
  func.func @transform_6(%arg0: i32, %arg1: i32) -> (i32, i32, i32) {
    %c0_i32 = arith.constant 0 : i32
    %c0_i32_0 = arith.constant 0 : i32
    return %arg1, %arg0, %c0_i32 : i32, i32, i32
  }
}

module attributes {stable_mosaic.version = 11 : i64} {
  func.func @_lst_kernel(%arg0: i32, %arg1: i32, %arg2: memref<8x8x16xf32, #tpu.memory_space<vmem>>, %arg3: memref<16x512xbf16, #tpu.memory_space<vmem>>, %arg4: memref<128x512xbf16, #tpu.memory_space<vmem>>, %arg5: memref<1x512xf32, #tpu.memory_space<vmem>>, %arg6: memref<128x128xbf16, #tpu.memory_space<vmem>>, %arg7: memref<1x128xf32, #tpu.memory_space<vmem>>, %arg8: memref<8x8x128xf32, #tpu.memory_space<vmem>>, %arg9: memref<8x128xf32, #tpu.memory_space<vmem>>, %arg10: memref<8x128xf32, #tpu.memory_space<vmem>>, %arg11: memref<8x8x512xf32, #tpu.memory_space<vmem>>, %arg12: memref<8x8x128xbf16, #tpu.memory_space<vmem>>) attributes {dimension_semantics = [#tpu.dimension_semantics<parallel>, #tpu.dimension_semantics<arbitrary>], iteration_bounds = array<i64: 1, 1>, scalar_prefetch = 0 : i64, scratch_operands = 4 : i64, tpu.core_type = #tpu.core_type<tc>, window_params = [{transform_indices = @transform_0, window_bounds = array<i64: 8, 8, 16>}, {pipeline_mode = #tpu.pipeline_mode<synchronous>, transform_indices = @transform_1, window_bounds = array<i64: 16, 512>}, {pipeline_mode = #tpu.pipeline_mode<synchronous>, transform_indices = @transform_2, window_bounds = array<i64: 128, 512>}, {pipeline_mode = #tpu.pipeline_mode<synchronous>, transform_indices = @transform_3, window_bounds = array<i64: 1, 512>}, {pipeline_mode = #tpu.pipeline_mode<synchronous>, transform_indices = @transform_4, window_bounds = array<i64: 128, 128>}, {pipeline_mode = #tpu.pipeline_mode<synchronous>, transform_indices = @transform_5, window_bounds = array<i64: 1, 128>}, {transform_indices = @transform_6, window_bounds = array<i64: 8, 8, 128>}]} {
    %c0_i32 = arith.constant 0 : i32
    %0 = arith.cmpi eq, %arg1, %c0_i32 : i32
    %1 = arith.extui %0 : i1 to i32
    %c0_i32_0 = arith.constant 0 : i32
    %2 = arith.cmpi ne, %1, %c0_i32_0 : i32
    scf.if %2 {
      %cst_31 = arith.constant 0.000000e+00 : f32
      %28 = vector.broadcast %cst_31 : f32 to vector<8x128xf32>
      %c0_32 = arith.constant 0 : index
      %c0_33 = arith.constant 0 : index
      %29 = vector.load %arg9[%c0_32, %c0_33] : memref<8x128xf32, #tpu.memory_space<vmem>>, vector<8x128xf32>
      tpu.vector_store %arg9[%c0_32, %c0_33], %28 {strides = array<i32>} : memref<8x128xf32, #tpu.memory_space<vmem>>, vector<8x128xf32>,
      %cst_34 = arith.constant 0.000000e+00 : f32
      %30 = vector.broadcast %cst_34 : f32 to vector<8x128xf32>
      %c0_35 = arith.constant 0 : index
      %c0_36 = arith.constant 0 : index
      %31 = vector.load %arg10[%c0_35, %c0_36] : memref<8x128xf32, #tpu.memory_space<vmem>>, vector<8x128xf32>
      tpu.vector_store %arg10[%c0_35, %c0_36], %30 {strides = array<i32>} : memref<8x128xf32, #tpu.memory_space<vmem>>, vector<8x128xf32>,
    } else {
    }
    %c0 = arith.constant 0 : index
    %c0_1 = arith.constant 0 : index
    %c0_2 = arith.constant 0 : index
    %3 = vector.load %arg2[%c0, %c0_1, %c0_2] : memref<8x8x16xf32, #tpu.memory_space<vmem>>, vector<8x8x16xf32>
    %4 = vector.shape_cast %3 : vector<8x8x16xf32> to vector<64x16xf32>
    %5 = arith.truncf %4 : vector<64x16xf32> to vector<64x16xbf16>
    %c0_3 = arith.constant 0 : index
    %c0_4 = arith.constant 0 : index
    %6 = vector.load %arg3[%c0_3, %c0_4] : memref<16x512xbf16, #tpu.memory_space<vmem>>, vector<16x512xbf16>
    %cst = arith.constant dense<0.000000e+00> : vector<64x512xf32>
    %7 = tpu.matmul %5, %6, %cst {dimension_numbers = #tpu.dot_dimension_numbers<[1], [0], [0], [1], [0, 0, 1, 1], [], []>} : vector<64x16xbf16>, vector<16x512xbf16>, vector<64x512xf32> -> vector<64x512xf32>
    %c0_5 = arith.constant 0 : index
    %c0_6 = arith.constant 0 : index
    %8 = vector.load %arg5[%c0_5, %c0_6] : memref<1x512xf32, #tpu.memory_space<vmem>>, vector<1x512xf32>
    %9 = vector.broadcast %8 : vector<1x512xf32> to vector<64x512xf32>
    %10 = arith.addf %7, %9 : vector<64x512xf32>
    %11 = vector.shape_cast %10 : vector<64x512xf32> to vector<8x8x512xf32>
    %c0_7 = arith.constant 0 : index
    %c0_8 = arith.constant 0 : index
    %c0_9 = arith.constant 0 : index
    %12 = vector.load %arg11[%c0_7, %c0_8, %c0_9] : memref<8x8x512xf32, #tpu.memory_space<vmem>>, vector<8x8x512xf32>
    tpu.vector_store %arg11[%c0_7, %c0_8, %c0_9], %11 {strides = array<i32>} : memref<8x8x512xf32, #tpu.memory_space<vmem>>, vector<8x8x512xf32>,
    %c0_10 = arith.constant 0 : index
    %c0_11 = arith.constant 0 : index
    %13 = vector.load %arg9[%c0_10, %c0_11] : memref<8x128xf32, #tpu.memory_space<vmem>>, vector<8x128xf32>
    %c0_12 = arith.constant 0 : index
    %c0_13 = arith.constant 0 : index
    %14 = vector.load %arg10[%c0_12, %c0_13] : memref<8x128xf32, #tpu.memory_space<vmem>>, vector<8x128xf32>
    %c0_i32_14 = arith.constant 0 : i32
    %c2_i32 = arith.constant 2 : i32
    %15 = arith.addi %c0_i32_14, %c2_i32 : i32
    %c1_i32 = arith.constant 1 : i32
    %16:2 = scf.for %arg13 = %c0_i32_14 to %15 step %c1_i32 iter_args(%arg14 = %13, %arg15 = %14) -> (vector<8x128xf32>, vector<8x128xf32>)  : i32 {
      %c4_i32 = arith.constant 4 : i32
      %28 = arith.muli %arg13, %c4_i32 : i32
      %c0_i32_31 = arith.constant 0 : i32
      %29 = arith.addi %28, %c0_i32_31 : i32
      %30 = arith.index_cast %29 : i32 to index
      %c0_32 = arith.constant 0 : index
      %c0_33 = arith.constant 0 : index
      %31 = vector.load %arg11[%30, %c0_32, %c0_33] : memref<8x8x512xf32, #tpu.memory_space<vmem>>, vector<1x8x512xf32>
      %32 = vector.shape_cast %31 : vector<1x8x512xf32> to vector<8x512xf32>
      %33 = arith.truncf %arg14 : vector<8x128xf32> to vector<8x128xbf16>
      %c0_34 = arith.constant 0 : index
      %c0_35 = arith.constant 0 : index
      %34 = vector.load %arg4[%c0_34, %c0_35] : memref<128x512xbf16, #tpu.memory_space<vmem>>, vector<128x512xbf16>
      %cst_36 = arith.constant dense<0.000000e+00> : vector<8x512xf32>
      %35 = tpu.matmul %33, %34, %cst_36 {dimension_numbers = #tpu.dot_dimension_numbers<[1], [0], [0], [1], [0, 0, 1, 1], [], []>} : vector<8x128xbf16>, vector<128x512xbf16>, vector<8x512xf32> -> vector<8x512xf32>
      %36 = arith.addf %32, %35 : vector<8x512xf32>
      %37 = vector.extract_strided_slice %36 {offsets = [0, 0], sizes = [8, 384], strides = [1, 1]} : vector<8x512xf32> to vector<8x384xf32>
      %38 = arith.negf %37 : vector<8x384xf32>
      %39 = math.exp %38 : vector<8x384xf32>
      %cst_37 = arith.constant 1.000000e+00 : f32
      %40 = vector.broadcast %cst_37 : f32 to vector<8x384xf32>
      %41 = arith.addf %40, %39 : vector<8x384xf32>
      %42 = arith.divf %40, %41 : vector<8x384xf32>
      %43 = vector.extract_strided_slice %42 {offsets = [0, 0], sizes = [8, 128], strides = [1, 1]} : vector<8x384xf32> to vector<8x128xf32>
      %44 = vector.extract_strided_slice %42 {offsets = [0, 128], sizes = [8, 128], strides = [1, 1]} : vector<8x384xf32> to vector<8x128xf32>
      %45 = vector.extract_strided_slice %42 {offsets = [0, 256], sizes = [8, 128], strides = [1, 1]} : vector<8x384xf32> to vector<8x128xf32>
      %46 = vector.extract_strided_slice %36 {offsets = [0, 384], sizes = [8, 128], strides = [1, 1]} : vector<8x512xf32> to vector<8x128xf32>
      %47 = math.tanh %46 : vector<8x128xf32>
      %48 = arith.mulf %44, %arg15 : vector<8x128xf32>
      %49 = arith.mulf %43, %47 : vector<8x128xf32>
      %50 = arith.addf %48, %49 : vector<8x128xf32>
      %51 = math.tanh %50 : vector<8x128xf32>
      %52 = arith.mulf %45, %51 : vector<8x128xf32>
      %53 = arith.truncf %52 : vector<8x128xf32> to vector<8x128xbf16>
      %54 = arith.index_cast %29 : i32 to index
      %c0_38 = arith.constant 0 : index
      %c0_39 = arith.constant 0 : index
      %55 = vector.load %arg12[%54, %c0_38, %c0_39] : memref<8x8x128xbf16, #tpu.memory_space<vmem>>, vector<1x8x128xbf16>
      %56 = vector.shape_cast %55 : vector<1x8x128xbf16> to vector<8x128xbf16>
      %57 = vector.shape_cast %53 : vector<8x128xbf16> to vector<1x8x128xbf16>
      tpu.vector_store %arg12[%54, %c0_38, %c0_39], %57 {strides = array<i32>} : memref<8x8x128xbf16, #tpu.memory_space<vmem>>, vector<1x8x128xbf16>,
      %c4_i32_40 = arith.constant 4 : i32
      %58 = arith.muli %arg13, %c4_i32_40 : i32
      %c1_i32_41 = arith.constant 1 : i32
      %59 = arith.addi %58, %c1_i32_41 : i32
      %60 = arith.index_cast %59 : i32 to index
      %c0_42 = arith.constant 0 : index
      %c0_43 = arith.constant 0 : index
      %61 = vector.load %arg11[%60, %c0_42, %c0_43] : memref<8x8x512xf32, #tpu.memory_space<vmem>>, vector<1x8x512xf32>
      %62 = vector.shape_cast %61 : vector<1x8x512xf32> to vector<8x512xf32>
      %63 = arith.truncf %52 : vector<8x128xf32> to vector<8x128xbf16>
      %c0_44 = arith.constant 0 : index
      %c0_45 = arith.constant 0 : index
      %64 = vector.load %arg4[%c0_44, %c0_45] : memref<128x512xbf16, #tpu.memory_space<vmem>>, vector<128x512xbf16>
      %cst_46 = arith.constant dense<0.000000e+00> : vector<8x512xf32>
      %65 = tpu.matmul %63, %64, %cst_46 {dimension_numbers = #tpu.dot_dimension_numbers<[1], [0], [0], [1], [0, 0, 1, 1], [], []>} : vector<8x128xbf16>, vector<128x512xbf16>, vector<8x512xf32> -> vector<8x512xf32>
      %66 = arith.addf %62, %65 : vector<8x512xf32>
      %67 = vector.extract_strided_slice %66 {offsets = [0, 0], sizes = [8, 384], strides = [1, 1]} : vector<8x512xf32> to vector<8x384xf32>
      %68 = arith.negf %67 : vector<8x384xf32>
      %69 = math.exp %68 : vector<8x384xf32>
      %cst_47 = arith.constant 1.000000e+00 : f32
      %70 = vector.broadcast %cst_47 : f32 to vector<8x384xf32>
      %71 = arith.addf %70, %69 : vector<8x384xf32>
      %72 = arith.divf %70, %71 : vector<8x384xf32>
      %73 = vector.extract_strided_slice %72 {offsets = [0, 0], sizes = [8, 128], strides = [1, 1]} : vector<8x384xf32> to vector<8x128xf32>
      %74 = vector.extract_strided_slice %72 {offsets = [0, 128], sizes = [8, 128], strides = [1, 1]} : vector<8x384xf32> to vector<8x128xf32>
      %75 = vector.extract_strided_slice %72 {offsets = [0, 256], sizes = [8, 128], strides = [1, 1]} : vector<8x384xf32> to vector<8x128xf32>
      %76 = vector.extract_strided_slice %66 {offsets = [0, 384], sizes = [8, 128], strides = [1, 1]} : vector<8x512xf32> to vector<8x128xf32>
      %77 = math.tanh %76 : vector<8x128xf32>
      %78 = arith.mulf %74, %50 : vector<8x128xf32>
      %79 = arith.mulf %73, %77 : vector<8x128xf32>
      %80 = arith.addf %78, %79 : vector<8x128xf32>
      %81 = math.tanh %80 : vector<8x128xf32>
      %82 = arith.mulf %75, %81 : vector<8x128xf32>
      %83 = arith.truncf %82 : vector<8x128xf32> to vector<8x128xbf16>
      %84 = arith.index_cast %59 : i32 to index
      %c0_48 = arith.constant 0 : index
      %c0_49 = arith.constant 0 : index
      %85 = vector.load %arg12[%84, %c0_48, %c0_49] : memref<8x8x128xbf16, #tpu.memory_space<vmem>>, vector<1x8x128xbf16>
      %86 = vector.shape_cast %85 : vector<1x8x128xbf16> to vector<8x128xbf16>
      %87 = vector.shape_cast %83 : vector<8x128xbf16> to vector<1x8x128xbf16>
      tpu.vector_store %arg12[%84, %c0_48, %c0_49], %87 {strides = array<i32>} : memref<8x8x128xbf16, #tpu.memory_space<vmem>>, vector<1x8x128xbf16>,
      %c4_i32_50 = arith.constant 4 : i32
      %88 = arith.muli %arg13, %c4_i32_50 : i32
      %c2_i32_51 = arith.constant 2 : i32
      %89 = arith.addi %88, %c2_i32_51 : i32
      %90 = arith.index_cast %89 : i32 to index
      %c0_52 = arith.constant 0 : index
      %c0_53 = arith.constant 0 : index
      %91 = vector.load %arg11[%90, %c0_52, %c0_53] : memref<8x8x512xf32, #tpu.memory_space<vmem>>, vector<1x8x512xf32>
      %92 = vector.shape_cast %91 : vector<1x8x512xf32> to vector<8x512xf32>
      %93 = arith.truncf %82 : vector<8x128xf32> to vector<8x128xbf16>
      %c0_54 = arith.constant 0 : index
      %c0_55 = arith.constant 0 : index
      %94 = vector.load %arg4[%c0_54, %c0_55] : memref<128x512xbf16, #tpu.memory_space<vmem>>, vector<128x512xbf16>
      %cst_56 = arith.constant dense<0.000000e+00> : vector<8x512xf32>
      %95 = tpu.matmul %93, %94, %cst_56 {dimension_numbers = #tpu.dot_dimension_numbers<[1], [0], [0], [1], [0, 0, 1, 1], [], []>} : vector<8x128xbf16>, vector<128x512xbf16>, vector<8x512xf32> -> vector<8x512xf32>
      %96 = arith.addf %92, %95 : vector<8x512xf32>
      %97 = vector.extract_strided_slice %96 {offsets = [0, 0], sizes = [8, 384], strides = [1, 1]} : vector<8x512xf32> to vector<8x384xf32>
      %98 = arith.negf %97 : vector<8x384xf32>
      %99 = math.exp %98 : vector<8x384xf32>
      %cst_57 = arith.constant 1.000000e+00 : f32
      %100 = vector.broadcast %cst_57 : f32 to vector<8x384xf32>
      %101 = arith.addf %100, %99 : vector<8x384xf32>
      %102 = arith.divf %100, %101 : vector<8x384xf32>
      %103 = vector.extract_strided_slice %102 {offsets = [0, 0], sizes = [8, 128], strides = [1, 1]} : vector<8x384xf32> to vector<8x128xf32>
      %104 = vector.extract_strided_slice %102 {offsets = [0, 128], sizes = [8, 128], strides = [1, 1]} : vector<8x384xf32> to vector<8x128xf32>
      %105 = vector.extract_strided_slice %102 {offsets = [0, 256], sizes = [8, 128], strides = [1, 1]} : vector<8x384xf32> to vector<8x128xf32>
      %106 = vector.extract_strided_slice %96 {offsets = [0, 384], sizes = [8, 128], strides = [1, 1]} : vector<8x512xf32> to vector<8x128xf32>
      %107 = math.tanh %106 : vector<8x128xf32>
      %108 = arith.mulf %104, %80 : vector<8x128xf32>
      %109 = arith.mulf %103, %107 : vector<8x128xf32>
      %110 = arith.addf %108, %109 : vector<8x128xf32>
      %111 = math.tanh %110 : vector<8x128xf32>
      %112 = arith.mulf %105, %111 : vector<8x128xf32>
      %113 = arith.truncf %112 : vector<8x128xf32> to vector<8x128xbf16>
      %114 = arith.index_cast %89 : i32 to index
      %c0_58 = arith.constant 0 : index
      %c0_59 = arith.constant 0 : index
      %115 = vector.load %arg12[%114, %c0_58, %c0_59] : memref<8x8x128xbf16, #tpu.memory_space<vmem>>, vector<1x8x128xbf16>
      %116 = vector.shape_cast %115 : vector<1x8x128xbf16> to vector<8x128xbf16>
      %117 = vector.shape_cast %113 : vector<8x128xbf16> to vector<1x8x128xbf16>
      tpu.vector_store %arg12[%114, %c0_58, %c0_59], %117 {strides = array<i32>} : memref<8x8x128xbf16, #tpu.memory_space<vmem>>, vector<1x8x128xbf16>,
      %c4_i32_60 = arith.constant 4 : i32
      %118 = arith.muli %arg13, %c4_i32_60 : i32
      %c3_i32 = arith.constant 3 : i32
      %119 = arith.addi %118, %c3_i32 : i32
      %120 = arith.index_cast %119 : i32 to index
      %c0_61 = arith.constant 0 : index
      %c0_62 = arith.constant 0 : index
      %121 = vector.load %arg11[%120, %c0_61, %c0_62] : memref<8x8x512xf32, #tpu.memory_space<vmem>>, vector<1x8x512xf32>
      %122 = vector.shape_cast %121 : vector<1x8x512xf32> to vector<8x512xf32>
      %123 = arith.truncf %112 : vector<8x128xf32> to vector<8x128xbf16>
      %c0_63 = arith.constant 0 : index
      %c0_64 = arith.constant 0 : index
      %124 = vector.load %arg4[%c0_63, %c0_64] : memref<128x512xbf16, #tpu.memory_space<vmem>>, vector<128x512xbf16>
      %cst_65 = arith.constant dense<0.000000e+00> : vector<8x512xf32>
      %125 = tpu.matmul %123, %124, %cst_65 {dimension_numbers = #tpu.dot_dimension_numbers<[1], [0], [0], [1], [0, 0, 1, 1], [], []>} : vector<8x128xbf16>, vector<128x512xbf16>, vector<8x512xf32> -> vector<8x512xf32>
      %126 = arith.addf %122, %125 : vector<8x512xf32>
      %127 = vector.extract_strided_slice %126 {offsets = [0, 0], sizes = [8, 384], strides = [1, 1]} : vector<8x512xf32> to vector<8x384xf32>
      %128 = arith.negf %127 : vector<8x384xf32>
      %129 = math.exp %128 : vector<8x384xf32>
      %cst_66 = arith.constant 1.000000e+00 : f32
      %130 = vector.broadcast %cst_66 : f32 to vector<8x384xf32>
      %131 = arith.addf %130, %129 : vector<8x384xf32>
      %132 = arith.divf %130, %131 : vector<8x384xf32>
      %133 = vector.extract_strided_slice %132 {offsets = [0, 0], sizes = [8, 128], strides = [1, 1]} : vector<8x384xf32> to vector<8x128xf32>
      %134 = vector.extract_strided_slice %132 {offsets = [0, 128], sizes = [8, 128], strides = [1, 1]} : vector<8x384xf32> to vector<8x128xf32>
      %135 = vector.extract_strided_slice %132 {offsets = [0, 256], sizes = [8, 128], strides = [1, 1]} : vector<8x384xf32> to vector<8x128xf32>
      %136 = vector.extract_strided_slice %126 {offsets = [0, 384], sizes = [8, 128], strides = [1, 1]} : vector<8x512xf32> to vector<8x128xf32>
      %137 = math.tanh %136 : vector<8x128xf32>
      %138 = arith.mulf %134, %110 : vector<8x128xf32>
      %139 = arith.mulf %133, %137 : vector<8x128xf32>
      %140 = arith.addf %138, %139 : vector<8x128xf32>
      %141 = math.tanh %140 : vector<8x128xf32>
      %142 = arith.mulf %135, %141 : vector<8x128xf32>
      %143 = arith.truncf %142 : vector<8x128xf32> to vector<8x128xbf16>
      %144 = arith.index_cast %119 : i32 to index
      %c0_67 = arith.constant 0 : index
      %c0_68 = arith.constant 0 : index
      %145 = vector.load %arg12[%144, %c0_67, %c0_68] : memref<8x8x128xbf16, #tpu.memory_space<vmem>>, vector<1x8x128xbf16>
      %146 = vector.shape_cast %145 : vector<1x8x128xbf16> to vector<8x128xbf16>
      %147 = vector.shape_cast %143 : vector<8x128xbf16> to vector<1x8x128xbf16>
      tpu.vector_store %arg12[%144, %c0_67, %c0_68], %147 {strides = array<i32>} : memref<8x8x128xbf16, #tpu.memory_space<vmem>>, vector<1x8x128xbf16>,
      scf.yield %142, %140 : vector<8x128xf32>, vector<8x128xf32>
    }
    %c2_i32_15 = arith.constant 2 : i32
    %c0_16 = arith.constant 0 : index
    %c0_17 = arith.constant 0 : index
    %17 = vector.load %arg9[%c0_16, %c0_17] : memref<8x128xf32, #tpu.memory_space<vmem>>, vector<8x128xf32>
    tpu.vector_store %arg9[%c0_16, %c0_17], %16#0 {strides = array<i32>} : memref<8x128xf32, #tpu.memory_space<vmem>>, vector<8x128xf32>,
    %c0_18 = arith.constant 0 : index
    %c0_19 = arith.constant 0 : index
    %18 = vector.load %arg10[%c0_18, %c0_19] : memref<8x128xf32, #tpu.memory_space<vmem>>, vector<8x128xf32>
    tpu.vector_store %arg10[%c0_18, %c0_19], %16#1 {strides = array<i32>} : memref<8x128xf32, #tpu.memory_space<vmem>>, vector<8x128xf32>,
    %c0_20 = arith.constant 0 : index
    %c0_21 = arith.constant 0 : index
    %c0_22 = arith.constant 0 : index
    %19 = vector.load %arg12[%c0_20, %c0_21, %c0_22] : memref<8x8x128xbf16, #tpu.memory_space<vmem>>, vector<8x8x128xbf16>
    %20 = vector.shape_cast %19 : vector<8x8x128xbf16> to vector<64x128xbf16>
    %c0_23 = arith.constant 0 : index
    %c0_24 = arith.constant 0 : index
    %21 = vector.load %arg6[%c0_23, %c0_24] : memref<128x128xbf16, #tpu.memory_space<vmem>>, vector<128x128xbf16>
    %cst_25 = arith.constant dense<0.000000e+00> : vector<64x128xf32>
    %22 = tpu.matmul %20, %21, %cst_25 {dimension_numbers = #tpu.dot_dimension_numbers<[1], [0], [0], [1], [0, 0, 1, 1], [], []>} : vector<64x128xbf16>, vector<128x128xbf16>, vector<64x128xf32> -> vector<64x128xf32>
    %c0_26 = arith.constant 0 : index
    %c0_27 = arith.constant 0 : index
    %23 = vector.load %arg7[%c0_26, %c0_27] : memref<1x128xf32, #tpu.memory_space<vmem>>, vector<1x128xf32>
    %24 = vector.broadcast %23 : vector<1x128xf32> to vector<64x128xf32>
    %25 = arith.addf %22, %24 : vector<64x128xf32>
    %26 = vector.shape_cast %25 : vector<64x128xf32> to vector<8x8x128xf32>
    %c0_28 = arith.constant 0 : index
    %c0_29 = arith.constant 0 : index
    %c0_30 = arith.constant 0 : index
    %27 = vector.load %arg8[%c0_28, %c0_29, %c0_30] : memref<8x8x128xf32, #tpu.memory_space<vmem>>, vector<8x8x128xf32>
    tpu.vector_store %arg8[%c0_28, %c0_29, %c0_30], %26 {strides = array<i32>} : memref<8x8x128xf32, #tpu.memory_space<vmem>>, vector<8x8x128xf32>,
    return
  }
  func.func @transform_0(%arg0: i32, %arg1: i32) -> (i32, i32, i32) {
    %c0_i32 = arith.constant 0 : i32
    %c0_i32_0 = arith.constant 0 : i32
    return %arg1, %arg0, %c0_i32 : i32, i32, i32
  }
  func.func @transform_1(%arg0: i32, %arg1: i32) -> (i32, i32) {
    %c0_i32 = arith.constant 0 : i32
    %c0_i32_0 = arith.constant 0 : i32
    %c0_i32_1 = arith.constant 0 : i32
    return %c0_i32, %c0_i32_0 : i32, i32
  }
  func.func @transform_2(%arg0: i32, %arg1: i32) -> (i32, i32) {
    %c0_i32 = arith.constant 0 : i32
    %c0_i32_0 = arith.constant 0 : i32
    %c0_i32_1 = arith.constant 0 : i32
    return %c0_i32, %c0_i32_0 : i32, i32
  }
  func.func @transform_3(%arg0: i32, %arg1: i32) -> (i32, i32) {
    %c0_i32 = arith.constant 0 : i32
    %c0_i32_0 = arith.constant 0 : i32
    %c0_i32_1 = arith.constant 0 : i32
    return %c0_i32, %c0_i32_0 : i32, i32
  }
  func.func @transform_4(%arg0: i32, %arg1: i32) -> (i32, i32) {
    %c0_i32 = arith.constant 0 : i32
    %c0_i32_0 = arith.constant 0 : i32
    %c0_i32_1 = arith.constant 0 : i32
    return %c0_i32, %c0_i32_0 : i32, i32
  }
  func.func @transform_5(%arg0: i32, %arg1: i32) -> (i32, i32) {
    %c0_i32 = arith.constant 0 : i32
    %c0_i32_0 = arith.constant 0 : i32
    %c0_i32_1 = arith.constant 0 : i32
    return %c0_i32, %c0_i32_0 : i32, i32
  }
  func.func @transform_6(%arg0: i32, %arg1: i32) -> (i32, i32, i32) {
    %c0_i32 = arith.constant 0 : i32
    %c0_i32_0 = arith.constant 0 : i32
    return %arg1, %arg0, %c0_i32 : i32, i32, i32
  }
}

</mosaic_0001>

<llo_original>
// kernel: tpu_custom_call.1
$region0: #{tpu_custom_call.1}
  #allocation0 [shape = 'u32[]', space=smem, size = 0x4, offset = 0x4, fixed_abs, tag = 'smem constant byte address 0x4 - core index']
  #allocation1 [shape = 'u32[72,128]{1,0:T(1,128)}', space=vmem, size = 0x9000, scoped, tag = 'internal scratch']
  #allocation2 [shape = 'f32[8,128]{1,0:T(8,128)}', space=vmem, size = 0x1000, scoped, tag = 'scratch operand']
  #allocation3 [shape = 'f32[8,128]{1,0:T(8,128)}', space=vmem, size = 0x1000, scoped, tag = 'scratch operand']
  #allocation4 [shape = 'f32[8,8,512]{2,1,0:T(8,128)}', space=vmem, size = 0x20000, scoped, tag = 'scratch operand']
  #allocation5 [shape = 'bf16[8,8,128]{2,1,0:T(8,128)(2,1)}', space=vmem, size = 0x4000, scoped, tag = 'scratch operand']
  %s0 = inlined_call_operand.hbm [shape: f32[8,8,16], index: 0, kind: input, shape index: {}]
  %s1 = inlined_call_operand.hbm [shape: bf16[16,512], index: 1, kind: input, shape index: {}]
  %s2 = inlined_call_operand.hbm [shape: bf16[128,512], index: 2, kind: input, shape index: {}]
  %s3 = inlined_call_operand.hbm [shape: f32[1,512], index: 3, kind: input, shape index: {}]
  %s4 = inlined_call_operand.hbm [shape: bf16[128,128], index: 4, kind: input, shape index: {}]
  %s5 = inlined_call_operand.vmem [shape: f32[1,128], index: 5, kind: input, shape index: {}]
  %s6 = inlined_call_operand.hbm [shape: f32[8,8,128], index: 6, kind: output, shape index: {}]
  %s7 = sld [smem:[#allocation0]]
  $region65: #{tpu_custom_call.1} parent=0
    _
  %s9 = ssub.s32 1, %s7
  %s10 = scalar_select 0, %s9, %s7
  $region1: #{tpu_custom_call.1} parent=0
    #allocation6 [shape = 'u8[32768]{0}', space=vmem, size = 0x8000, scoped, tag = 'input window, operand 0, single buffered']
    #allocation7 [shape = 's32[1]{0}', space=sflag, size = 0x4, scoped, tag = 'scoped memory for tpu_custom_call.1']
    #allocation8 [shape = 's32[1]{0}', space=sflag, size = 0x4, scoped, tag = 'scoped memory for tpu_custom_call.1']
    #allocation9 [shape = 'u8[16384]{0}', space=vmem, size = 0x4000, scoped, tag = 'input window, operand 1, single buffered']
    #allocation10 [shape = 's32[1]{0}', space=sflag, size = 0x4, scoped, tag = 'scoped memory for tpu_custom_call.1']
    #allocation11 [shape = 'u8[131072]{0}', space=vmem, size = 0x20000, scoped, tag = 'input window, operand 2, single buffered']
    #allocation12 [shape = 'u8[2048]{0}', space=vmem, size = 0x800, scoped, tag = 'input window, operand 3, single buffered']
    #allocation13 [shape = 's32[1]{0}', space=sflag, size = 0x4, scoped, tag = 'scoped memory for tpu_custom_call.1']
    #allocation14 [shape = 'u8[32768]{0}', space=vmem, size = 0x8000, scoped, tag = 'input window, operand 4, single buffered']
    #allocation15 [shape = 'u8[32768]{0}', space=vmem, size = 0x8000, scoped, tag = 'output window, operand 0, single buffered']
    %11 = vsyncpa [#allocation7], 0
    %12 = vsyncpa [#allocation10], 0
    %13 = vsyncpa [#allocation13], 0
    %14 = vsyncpa [#allocation8], 0
    // Predicated region
    $region2: #{tpu_custom_call.1} parent=1 // pred_check
      _
    $region3: #{tpu_custom_call.1} parent=1 // pred_check_branch
      %16 = sbr.rel (0) target = $region5
    $region4: #{tpu_custom_call.1} parent=1 // pred_region
      %18 = vsyncadd [#allocation7], 0
      %s19 = sshll.u32 %s0, 4
      %s20 = int_to_ptr.hbm [resolvable:$true] %s19
      %s21 = sshll.u32 [#allocation6], 4
      %s22 = int_to_ptr.vmem [resolvable:$true] %s21
      %27 = dma.hbm_to_vmem [thread:$0]  %s20, 1024, %s22, [#allocation7], 128, 128, 8
    $region5: #{tpu_custom_call.1} parent=1 // pred_fallthru
      _
    // Predicated region
    $region6: #{tpu_custom_call.1} parent=1 // pred_check
      _
    $region7: #{tpu_custom_call.1} parent=1 // pred_check_branch
      %29 = sbr.rel (0) target = $region9
    $region8: #{tpu_custom_call.1} parent=1 // pred_region
      %31 = vsyncadd [#allocation10], 0
      %s32 = sshll.u32 %s1, 4
      %s33 = int_to_ptr.hbm [resolvable:$true] %s32
      %s34 = sshll.u32 [#allocation9], 4
      %s35 = int_to_ptr.vmem [resolvable:$true] %s34
      %40 = dma.hbm_to_vmem [thread:$0]  %s33, 512, %s35, [#allocation10], 256, 256, 16
    $region9: #{tpu_custom_call.1} parent=1 // pred_fallthru
      _
    // Predicated region
    $region10: #{tpu_custom_call.1} parent=1 // pred_check
      _
    $region11: #{tpu_custom_call.1} parent=1 // pred_check_branch
      %42 = sbr.rel (0) target = $region13
    $region12: #{tpu_custom_call.1} parent=1 // pred_region
      %44 = vsyncadd [#allocation10], 0
      %s45 = sshll.u32 %s2, 4
      %s46 = int_to_ptr.hbm [resolvable:$true] %s45
      %s47 = sshll.u32 [#allocation11], 4
      %s48 = int_to_ptr.vmem [resolvable:$true] %s47
      %53 = dma.hbm_to_vmem [thread:$0]  %s46, 4096, %s48, [#allocation10], 256, 256, 16
    $region13: #{tpu_custom_call.1} parent=1 // pred_fallthru
      _
    // Predicated region
    $region14: #{tpu_custom_call.1} parent=1 // pred_check
      _
    $region15: #{tpu_custom_call.1} parent=1 // pred_check_branch
      %55 = sbr.rel (0) target = $region17
    $region16: #{tpu_custom_call.1} parent=1 // pred_region
      %57 = vsyncadd [#allocation13], 0
      %s59 = sshll.u32 %s3, 4
      %s60 = int_to_ptr.hbm [resolvable:$true] %s59
      %s61 = sshll.u32 [#allocation12], 4
      %s62 = int_to_ptr.vmem [resolvable:$true] %s61
      %64 = dma.hbm_to_vmem [thread:$0]  %s60, 64, %s62, [#allocation13]
    $region17: #{tpu_custom_call.1} parent=1 // pred_fallthru
      _
    // Predicated region
    $region18: #{tpu_custom_call.1} parent=1 // pred_check
      _
    $region19: #{tpu_custom_call.1} parent=1 // pred_check_branch
      %66 = sbr.rel (0) target = $region21
    $region20: #{tpu_custom_call.1} parent=1 // pred_region
      %68 = vsyncadd [#allocation13], 0
      %s69 = sshll.u32 %s4, 4
      %s70 = int_to_ptr.hbm [resolvable:$true] %s69
      %s71 = sshll.u32 [#allocation14], 4
      %s72 = int_to_ptr.vmem [resolvable:$true] %s71
      %77 = dma.hbm_to_vmem [thread:$0]  %s70, 1024, %s72, [#allocation13], 64, 64, 4
    $region21: #{tpu_custom_call.1} parent=1 // pred_fallthru
      _
    // Predicated region
    $region22: #{tpu_custom_call.1} parent=1 // pred_check
      _
    $region23: #{tpu_custom_call.1} parent=1 // pred_check_branch
      %79 = sbr.rel (0) target = $region25
    $region24: #{tpu_custom_call.1} parent=1 // pred_region
      _
    $region25: #{tpu_custom_call.1} parent=1 // pred_fallthru
      _
    // Predicated region
    $region26: #{tpu_custom_call.1} parent=1 // pred_check
      _
    $region27: #{tpu_custom_call.1} parent=1 // pred_check_branch
      %81 = sbr.rel (0) target = $region29
    $region28: #{tpu_custom_call.1} parent=1 // pred_region
      %83 = dma.done [#allocation7], 1024
    $region29: #{tpu_custom_call.1} parent=1 // pred_fallthru
      _
    // Predicated region
    $region30: #{tpu_custom_call.1} parent=1 // pred_check
      _
    $region31: #{tpu_custom_call.1} parent=1 // pred_check_branch
      %85 = sbr.rel (0) target = $region33
    $region32: #{tpu_custom_call.1} parent=1 // pred_region
      %87 = dma.done [#allocation10], 512
    $region33: #{tpu_custom_call.1} parent=1 // pred_fallthru
      _
    // Predicated region
    $region34: #{tpu_custom_call.1} parent=1 // pred_check
      _
    $region35: #{tpu_custom_call.1} parent=1 // pred_check_branch
      %89 = sbr.rel (0) target = $region37
    $region36: #{tpu_custom_call.1} parent=1 // pred_region
      %91 = dma.done [#allocation10], 4096
    $region37: #{tpu_custom_call.1} parent=1 // pred_fallthru
      _
    // Predicated region
    $region38: #{tpu_custom_call.1} parent=1 // pred_check
      _
    $region39: #{tpu_custom_call.1} parent=1 // pred_check_branch
      %93 = sbr.rel (0) target = $region41
    $region40: #{tpu_custom_call.1} parent=1 // pred_region
      %95 = dma.done [#allocation13], 64
    $region41: #{tpu_custom_call.1} parent=1 // pred_fallthru
      _
    // Predicated region
    $region42: #{tpu_custom_call.1} parent=1 // pred_check
      _
    $region43: #{tpu_custom_call.1} parent=1 // pred_check_branch
      %97 = sbr.rel (0) target = $region45
    $region44: #{tpu_custom_call.1} parent=1 // pred_region
      %99 = dma.done [#allocation13], 1024
    $region45: #{tpu_custom_call.1} parent=1 // pred_fallthru
      _
    %p101 = scmp.eq.s32.totalorder 0, 0
    // Predicated region
    $region46: #{tpu_custom_call.1} parent=1 // pred_check
      %p102 = pneg %p101
    $region47: #{tpu_custom_call.1} parent=1 // pred_check_branch
      %104 = sbr.rel (%p102) target = $region49
    $region48: #{tpu_custom_call.1} parent=1 // pred_region
      %105 = vst [vmem:[#allocation2] sm:$0xff] 0.0
      %106 = vst [vmem:[#allocation3] sm:$0xff] 0.0
    $region49: #{tpu_custom_call.1} parent=1 // pred_fallthru
      _
    %v107 = vld [vmem:[#allocation6] sm:$0xff]
    %v108 = vld [vmem:[#allocation6 + $0x8] sm:$0xff]
    %v109 = vld [vmem:[#allocation6 + $0x10] sm:$0xff]
    %v110 = vld [vmem:[#allocation6 + $0x18] sm:$0xff]
    %v111 = vld [vmem:[#allocation6 + $0x20] sm:$0xff]
    %v112 = vld [vmem:[#allocation6 + $0x28] sm:$0xff]
    %v113 = vld [vmem:[#allocation6 + $0x30] sm:$0xff]
    %v114 = vld [vmem:[#allocation6 + $0x38] sm:$0xff]
    %v115 = vpack.c.bf16 %v108, %v107
    %v116 = vpack.c.bf16 %v110, %v109
    %v117 = vpack.c.bf16 %v112, %v111
    %v118 = vpack.c.bf16 %v114, %v113
    %v119 = vld [vmem:[#allocation9] sm:$0xff]
    %v120 = vld [vmem:[#allocation9 + $0x8] sm:$0xff]
    %v121 = vld [vmem:[#allocation9 + $0x10] sm:$0xff]
    %v122 = vld [vmem:[#allocation9 + $0x18] sm:$0xff]
    %v123 = vld [vmem:[#allocation12] sm:$0xf]
    %v125 = vperm.slane %v123, 0
    %v126 = vperm.slane %v123, 1
    %v127 = vperm.slane %v123, 2
    %v128 = vperm.slane %v123, 3
    %v137 = vunpack.c.l.b16 %v119
    %v138 = vunpack.c.h.b16 %v119
    %v139 = vunpack.c.l.b16 %v120
    %v140 = vunpack.c.h.b16 %v120
    %v141 = vunpack.c.l.b16 %v121
    %v142 = vunpack.c.h.b16 %v121
    %v143 = vunpack.c.l.b16 %v122
    %v144 = vunpack.c.h.b16 %v122
    %v145 = vpack.c.b16 %v141, %v137
    %v146 = vpack.c.b16 %v142, %v138
    %v147 = vpack.c.b16 %v143, %v139
    %v148 = vpack.c.b16 %v144, %v140
    %vm153 = vcmask 130048
    %v155 = vsel %vm153, %v115, 0
    %v158 = vsel %vm153, %v116, 0
    %v161 = vsel %vm153, %v117, 0
    %v164 = vsel %vm153, %v118, 0
    %166 = vmatpush.bf16.msra.mxu0 0
    %167 = vmatpush.bf16.msra.mxu0 0
    %168 = vmatpush.bf16.msra.mxu0 0
    %169 = vmatpush.bf16.msra.mxu0 0
    %170 = vmatpush.bf16.msra.mxu0 0
    %171 = vmatpush.bf16.msra.mxu0 0
    %172 = vmatpush.bf16.msra.mxu0 0
    %173 = vmatpush.bf16.msra.mxu0 %v145
    %174 = vmatmul.bf16.gmra.mxu0 %v155
    %v175 = vpop.f32.mrf.mxu0
    %v176 = vadd.f32 %v125, %v175
    %v177 = vpop.f32.mrf.mxu0
    %v178 = vadd.f32 %v125, %v177
    %179 = vmatmul.bf16.gmra.mxu0 %v158
    %v180 = vpop.f32.mrf.mxu0
    %v181 = vadd.f32 %v125, %v180
    %v182 = vpop.f32.mrf.mxu0
    %v183 = vadd.f32 %v125, %v182
    %184 = vmatmul.bf16.gmra.mxu0 %v161
    %v185 = vpop.f32.mrf.mxu0
    %v186 = vadd.f32 %v125, %v185
    %v187 = vpop.f32.mrf.mxu0
    %v188 = vadd.f32 %v125, %v187
    %189 = vmatmul.bf16.gmra.mxu0 %v164
    %v190 = vpop.f32.mrf.mxu0
    %v191 = vadd.f32 %v125, %v190
    %v192 = vpop.f32.mrf.mxu0
    %v193 = vadd.f32 %v125, %v192
    %194 = vdwg.mxu0
    %195 = vmatpush.bf16.msra.mxu0 0
    %196 = vmatpush.bf16.msra.mxu0 0
    %197 = vmatpush.bf16.msra.mxu0 0
    %198 = vmatpush.bf16.msra.mxu0 0
    %199 = vmatpush.bf16.msra.mxu0 0
    %200 = vmatpush.bf16.msra.mxu0 0
    %201 = vmatpush.bf16.msra.mxu0 0
    %202 = vmatpush.bf16.msra.mxu0 %v146
    %203 = vmatmul.bf16.gmra.mxu0 %v155
    %v204 = vpop.f32.mrf.mxu0
    %v205 = vadd.f32 %v126, %v204
    %v206 = vpop.f32.mrf.mxu0
    %v207 = vadd.f32 %v126, %v206
    %208 = vmatmul.bf16.gmra.mxu0 %v158
    %v209 = vpop.f32.mrf.mxu0
    %v210 = vadd.f32 %v126, %v209
    %v211 = vpop.f32.mrf.mxu0
    %v212 = vadd.f32 %v126, %v211
    %213 = vmatmul.bf16.gmra.mxu0 %v161
    %v214 = vpop.f32.mrf.mxu0
    %v215 = vadd.f32 %v126, %v214
    %v216 = vpop.f32.mrf.mxu0
    %v217 = vadd.f32 %v126, %v216
    %218 = vmatmul.bf16.gmra.mxu0 %v164
    %v219 = vpop.f32.mrf.mxu0
    %v220 = vadd.f32 %v126, %v219
    %v221 = vpop.f32.mrf.mxu0
    %v222 = vadd.f32 %v126, %v221
    %223 = vdwg.mxu0
    %224 = vmatpush.bf16.msra.mxu0 0
    %225 = vmatpush.bf16.msra.mxu0 0
    %226 = vmatpush.bf16.msra.mxu0 0
    %227 = vmatpush.bf16.msra.mxu0 0
    %228 = vmatpush.bf16.msra.mxu0 0
    %229 = vmatpush.bf16.msra.mxu0 0
    %230 = vmatpush.bf16.msra.mxu0 0
    %231 = vmatpush.bf16.msra.mxu0 %v147
    %232 = vmatmul.bf16.gmra.mxu0 %v155
    %v233 = vpop.f32.mrf.mxu0
    %v234 = vadd.f32 %v127, %v233
    %v235 = vpop.f32.mrf.mxu0
    %v236 = vadd.f32 %v127, %v235
    %237 = vmatmul.bf16.gmra.mxu0 %v158
    %v238 = vpop.f32.mrf.mxu0
    %v239 = vadd.f32 %v127, %v238
    %v240 = vpop.f32.mrf.mxu0
    %v241 = vadd.f32 %v127, %v240
    %242 = vmatmul.bf16.gmra.mxu0 %v161
    %v243 = vpop.f32.mrf.mxu0
    %v244 = vadd.f32 %v127, %v243
    %v245 = vpop.f32.mrf.mxu0
    %v246 = vadd.f32 %v127, %v245
    %247 = vmatmul.bf16.gmra.mxu0 %v164
    %v248 = vpop.f32.mrf.mxu0
    %v249 = vadd.f32 %v127, %v248
    %v250 = vpop.f32.mrf.mxu0
    %v251 = vadd.f32 %v127, %v250
    %252 = vdwg.mxu0
    %253 = vmatpush.bf16.msra.mxu0 0
    %254 = vmatpush.bf16.msra.mxu0 0
    %255 = vmatpush.bf16.msra.mxu0 0
    %256 = vmatpush.bf16.msra.mxu0 0
    %257 = vmatpush.bf16.msra.mxu0 0
    %258 = vmatpush.bf16.msra.mxu0 0
    %259 = vmatpush.bf16.msra.mxu0 0
    %260 = vmatpush.bf16.msra.mxu0 %v148
    %261 = vmatmul.bf16.gmra.mxu0 %v155
    %v262 = vpop.f32.mrf.mxu0
    %v263 = vadd.f32 %v128, %v262
    %v264 = vpop.f32.mrf.mxu0
    %v265 = vadd.f32 %v128, %v264
    %266 = vmatmul.bf16.gmra.mxu0 %v158
    %v267 = vpop.f32.mrf.mxu0
    %v268 = vadd.f32 %v128, %v267
    %v269 = vpop.f32.mrf.mxu0
    %v270 = vadd.f32 %v128, %v269
    %271 = vmatmul.bf16.gmra.mxu0 %v161
    %v272 = vpop.f32.mrf.mxu0
    %v273 = vadd.f32 %v128, %v272
    %v274 = vpop.f32.mrf.mxu0
    %v275 = vadd.f32 %v128, %v274
    %276 = vmatmul.bf16.gmra.mxu0 %v164
    %v277 = vpop.f32.mrf.mxu0
    %v278 = vadd.f32 %v128, %v277
    %v279 = vpop.f32.mrf.mxu0
    %v280 = vadd.f32 %v128, %v279
    %281 = vdwg.mxu0
    %282 = vst [vmem:[#allocation4] sm:$0xff] %v176
    %283 = vst [vmem:[#allocation4 + $0x8] sm:$0xff] %v205
    %284 = vst [vmem:[#allocation4 + $0x10] sm:$0xff] %v234
    %285 = vst [vmem:[#allocation4 + $0x18] sm:$0xff] %v263
    %286 = vst [vmem:[#allocation4 + $0x20] sm:$0xff] %v178
    %287 = vst [vmem:[#allocation4 + $0x28] sm:$0xff] %v207
    %288 = vst [vmem:[#allocation4 + $0x30] sm:$0xff] %v236
    %289 = vst [vmem:[#allocation4 + $0x38] sm:$0xff] %v265
    %290 = vst [vmem:[#allocation4 + $0x40] sm:$0xff] %v181
    %291 = vst [vmem:[#allocation4 + $0x48] sm:$0xff] %v210
    %292 = vst [vmem:[#allocation4 + $0x50] sm:$0xff] %v239
    %293 = vst [vmem:[#allocation4 + $0x58] sm:$0xff] %v268
    %294 = vst [vmem:[#allocation4 + $0x60] sm:$0xff] %v183
    %295 = vst [vmem:[#allocation4 + $0x68] sm:$0xff] %v212
    %296 = vst [vmem:[#allocation4 + $0x70] sm:$0xff] %v241
    %297 = vst [vmem:[#allocation4 + $0x78] sm:$0xff] %v270
    %298 = vst [vmem:[#allocation4 + $0x80] sm:$0xff] %v186
    %299 = vst [vmem:[#allocation4 + $0x88] sm:$0xff] %v215
    %300 = vst [vmem:[#allocation4 + $0x90] sm:$0xff] %v244
    %301 = vst [vmem:[#allocation4 + $0x98] sm:$0xff] %v273
    %302 = vst [vmem:[#allocation4 + $0xa0] sm:$0xff] %v188
    %303 = vst [vmem:[#allocation4 + $0xa8] sm:$0xff] %v217
    %304 = vst [vmem:[#allocation4 + $0xb0] sm:$0xff] %v246
    %305 = vst [vmem:[#allocation4 + $0xb8] sm:$0xff] %v275
    %306 = vst [vmem:[#allocation4 + $0xc0] sm:$0xff] %v191
    %307 = vst [vmem:[#allocation4 + $0xc8] sm:$0xff] %v220
    %308 = vst [vmem:[#allocation4 + $0xd0] sm:$0xff] %v249
    %309 = vst [vmem:[#allocation4 + $0xd8] sm:$0xff] %v278
    %310 = vst [vmem:[#allocation4 + $0xe0] sm:$0xff] %v193
    %311 = vst [vmem:[#allocation4 + $0xe8] sm:$0xff] %v222
    %312 = vst [vmem:[#allocation4 + $0xf0] sm:$0xff] %v251
    %313 = vst [vmem:[#allocation4 + $0xf8] sm:$0xff] %v280
    %v314 = vld [vmem:[#allocation2] sm:$0xff]
    %v315 = vld [vmem:[#allocation3] sm:$0xff]
    loop: start=0, step=1, limit=2
    $region50: #{tpu_custom_call.1} parent=1 // loop_pre_header
      _
    $region51: #{tpu_custom_call.1} parent=1 // loop_header
      %s317 = sphi 0, %s321
      %p318 = scmp.ge.s32.totalorder %s317, 2
      %v322 = vphi %v314, %v1612
      %v323 = vphi %v315, %v1610
    $region52: #{tpu_custom_call.1} parent=1 // loop_header_branch
      %320 = sbr.rel (%p318) target = $region56
    $region53: #{tpu_custom_call.1} parent=1 // loop_body
      %s324 = smul.u32 %s317, 4
      %s325 = smul.u32 %s324, 4
      %s326 = smul.addr %s325, 8
      %s327 = scalar_lea.vmem [#allocation4], %s326
      %v328 = vld [vmem:[%s327] sm:$0xff]
      %v329 = vld [vmem:[%s327 + $0x8] sm:$0xff]
      %v330 = vld [vmem:[%s327 + $0x10] sm:$0xff]
      %v331 = vld [vmem:[%s327 + $0x18] sm:$0xff]
      %v332 = vpack.c.bf16 %v322, %v322
      %v333 = vld [vmem:[#allocation11] sm:$0xff]
      %v334 = vld [vmem:[#allocation11 + $0x8] sm:$0xff]
      %v335 = vld [vmem:[#allocation11 + $0x10] sm:$0xff]
      %v336 = vld [vmem:[#allocation11 + $0x18] sm:$0xff]
      %v337 = vld [vmem:[#allocation11 + $0x20] sm:$0xff]
      %v338 = vld [vmem:[#allocation11 + $0x28] sm:$0xff]
      %v339 = vld [vmem:[#allocation11 + $0x30] sm:$0xff]
      %v340 = vld [vmem:[#allocation11 + $0x38] sm:$0xff]
      %v341 = vld [vmem:[#allocation11 + $0x40] sm:$0xff]
      %v342 = vld [vmem:[#allocation11 + $0x48] sm:$0xff]
      %v343 = vld [vmem:[#allocation11 + $0x50] sm:$0xff]
      %v344 = vld [vmem:[#allocation11 + $0x58] sm:$0xff]
      %v345 = vld [vmem:[#allocation11 + $0x60] sm:$0xff]
      %v346 = vld [vmem:[#allocation11 + $0x68] sm:$0xff]
      %v347 = vld [vmem:[#allocation11 + $0x70] sm:$0xff]
      %v348 = vld [vmem:[#allocation11 + $0x78] sm:$0xff]
      %v349 = vld [vmem:[#allocation11 + $0x80] sm:$0xff]
      %v350 = vld [vmem:[#allocation11 + $0x88] sm:$0xff]
      %v351 = vld [vmem:[#allocation11 + $0x90] sm:$0xff]
      %v352 = vld [vmem:[#allocation11 + $0x98] sm:$0xff]
      %v353 = vld [vmem:[#allocation11 + $0xa0] sm:$0xff]
      %v354 = vld [vmem:[#allocation11 + $0xa8] sm:$0xff]
      %v355 = vld [vmem:[#allocation11 + $0xb0] sm:$0xff]
      %v356 = vld [vmem:[#allocation11 + $0xb8] sm:$0xff]
      %v357 = vld [vmem:[#allocation11 + $0xc0] sm:$0xff]
      %v358 = vld [vmem:[#allocation11 + $0xc8] sm:$0xff]
      %v359 = vld [vmem:[#allocation11 + $0xd0] sm:$0xff]
      %v360 = vld [vmem:[#allocation11 + $0xd8] sm:$0xff]
      %v361 = vld [vmem:[#allocation11 + $0xe0] sm:$0xff]
      %v362 = vld [vmem:[#allocation11 + $0xe8] sm:$0xff]
      %v363 = vld [vmem:[#allocation11 + $0xf0] sm:$0xff]
      %v364 = vld [vmem:[#allocation11 + $0xf8] sm:$0xff]
      %v397 = vunpack.c.l.b16 %v333
      %v398 = vunpack.c.h.b16 %v333
      %v399 = vunpack.c.l.b16 %v334
      %v400 = vunpack.c.h.b16 %v334
      %v401 = vunpack.c.l.b16 %v335
      %v402 = vunpack.c.h.b16 %v335
      %v403 = vunpack.c.l.b16 %v336
      %v404 = vunpack.c.h.b16 %v336
      %v405 = vunpack.c.l.b16 %v337
      %v406 = vunpack.c.h.b16 %v337
      %v407 = vunpack.c.l.b16 %v338
      %v408 = vunpack.c.h.b16 %v338
      %v409 = vunpack.c.l.b16 %v339
      %v410 = vunpack.c.h.b16 %v339
      %v411 = vunpack.c.l.b16 %v340
      %v412 = vunpack.c.h.b16 %v340
      %v413 = vunpack.c.l.b16 %v341
      %v414 = vunpack.c.h.b16 %v341
      %v415 = vunpack.c.l.b16 %v342
      %v416 = vunpack.c.h.b16 %v342
      %v417 = vunpack.c.l.b16 %v343
      %v418 = vunpack.c.h.b16 %v343
      %v419 = vunpack.c.l.b16 %v344
      %v420 = vunpack.c.h.b16 %v344
      %v421 = vunpack.c.l.b16 %v345
      %v422 = vunpack.c.h.b16 %v345
      %v423 = vunpack.c.l.b16 %v346
      %v424 = vunpack.c.h.b16 %v346
      %v425 = vunpack.c.l.b16 %v347
      %v426 = vunpack.c.h.b16 %v347
      %v427 = vunpack.c.l.b16 %v348
      %v428 = vunpack.c.h.b16 %v348
      %v429 = vunpack.c.l.b16 %v349
      %v430 = vunpack.c.h.b16 %v349
      %v431 = vunpack.c.l.b16 %v350
      %v432 = vunpack.c.h.b16 %v350
      %v433 = vunpack.c.l.b16 %v351
      %v434 = vunpack.c.h.b16 %v351
      %v435 = vunpack.c.l.b16 %v352
      %v436 = vunpack.c.h.b16 %v352
      %v437 = vunpack.c.l.b16 %v353
      %v438 = vunpack.c.h.b16 %v353
      %v439 = vunpack.c.l.b16 %v354
      %v440 = vunpack.c.h.b16 %v354
      %v441 = vunpack.c.l.b16 %v355
      %v442 = vunpack.c.h.b16 %v355
      %v443 = vunpack.c.l.b16 %v356
      %v444 = vunpack.c.h.b16 %v356
      %v445 = vunpack.c.l.b16 %v357
      %v446 = vunpack.c.h.b16 %v357
      %v447 = vunpack.c.l.b16 %v358
      %v448 = vunpack.c.h.b16 %v358
      %v449 = vunpack.c.l.b16 %v359
      %v450 = vunpack.c.h.b16 %v359
      %v451 = vunpack.c.l.b16 %v360
      %v452 = vunpack.c.h.b16 %v360
      %v453 = vunpack.c.l.b16 %v361
      %v454 = vunpack.c.h.b16 %v361
      %v455 = vunpack.c.l.b16 %v362
      %v456 = vunpack.c.h.b16 %v362
      %v457 = vunpack.c.l.b16 %v363
      %v458 = vunpack.c.h.b16 %v363
      %v459 = vunpack.c.l.b16 %v364
      %v460 = vunpack.c.h.b16 %v364
      %v461 = vpack.c.b16 %v401, %v397
      %v462 = vpack.c.b16 %v402, %v398
      %v463 = vpack.c.b16 %v403, %v399
      %v464 = vpack.c.b16 %v404, %v400
      %v465 = vpack.c.b16 %v409, %v405
      %v466 = vpack.c.b16 %v410, %v406
      %v467 = vpack.c.b16 %v411, %v407
      %v468 = vpack.c.b16 %v412, %v408
      %v469 = vpack.c.b16 %v417, %v413
      %v470 = vpack.c.b16 %v418, %v414
      %v471 = vpack.c.b16 %v419, %v415
      %v472 = vpack.c.b16 %v420, %v416
      %v473 = vpack.c.b16 %v425, %v421
      %v474 = vpack.c.b16 %v426, %v422
      %v475 = vpack.c.b16 %v427, %v423
      %v476 = vpack.c.b16 %v428, %v424
      %v477 = vpack.c.b16 %v433, %v429
      %v478 = vpack.c.b16 %v434, %v430
      %v479 = vpack.c.b16 %v435, %v431
      %v480 = vpack.c.b16 %v436, %v432
      %v481 = vpack.c.b16 %v441, %v437
      %v482 = vpack.c.b16 %v442, %v438
      %v483 = vpack.c.b16 %v443, %v439
      %v484 = vpack.c.b16 %v444, %v440
      %v485 = vpack.c.b16 %v449, %v445
      %v486 = vpack.c.b16 %v450, %v446
      %v487 = vpack.c.b16 %v451, %v447
      %v488 = vpack.c.b16 %v452, %v448
      %v489 = vpack.c.b16 %v457, %v453
      %v490 = vpack.c.b16 %v458, %v454
      %v491 = vpack.c.b16 %v459, %v455
      %v492 = vpack.c.b16 %v460, %v456
      %525 = vmatpush.bf16.msra.mxu0 %v489
      %526 = vmatpush.bf16.msra.mxu0 %v485
      %527 = vmatpush.bf16.msra.mxu0 %v481
      %528 = vmatpush.bf16.msra.mxu0 %v477
      %529 = vmatpush.bf16.msra.mxu0 %v473
      %530 = vmatpush.bf16.msra.mxu0 %v469
      %531 = vmatpush.bf16.msra.mxu0 %v465
      %532 = vmatpush.bf16.msra.mxu0 %v461
      %533 = vmatmul.bf16.gmra.mxu0 %v332
      %v534 = vpop.f32.mrf.mxu0
      %v535 = vadd.f32 0.0, %v534
      %v536 = vpop.f32.mrf.mxu0
      %537 = vdwg.mxu0
      %538 = vmatpush.bf16.msra.mxu0 %v490
      %539 = vmatpush.bf16.msra.mxu0 %v486
      %540 = vmatpush.bf16.msra.mxu0 %v482
      %541 = vmatpush.bf16.msra.mxu0 %v478
      %542 = vmatpush.bf16.msra.mxu0 %v474
      %543 = vmatpush.bf16.msra.mxu0 %v470
      %544 = vmatpush.bf16.msra.mxu0 %v466
      %545 = vmatpush.bf16.msra.mxu0 %v462
      %546 = vmatmul.bf16.gmra.mxu0 %v332
      %v547 = vpop.f32.mrf.mxu0
      %v548 = vadd.f32 0.0, %v547
      %v549 = vpop.f32.mrf.mxu0
      %550 = vdwg.mxu0
      %551 = vmatpush.bf16.msra.mxu0 %v491
      %552 = vmatpush.bf16.msra.mxu0 %v487
      %553 = vmatpush.bf16.msra.mxu0 %v483
      %554 = vmatpush.bf16.msra.mxu0 %v479
      %555 = vmatpush.bf16.msra.mxu0 %v475
      %556 = vmatpush.bf16.msra.mxu0 %v471
      %557 = vmatpush.bf16.msra.mxu0 %v467
      %558 = vmatpush.bf16.msra.mxu0 %v463
      %559 = vmatmul.bf16.gmra.mxu0 %v332
      %v560 = vpop.f32.mrf.mxu0
      %v561 = vadd.f32 0.0, %v560
      %v562 = vpop.f32.mrf.mxu0
      %563 = vdwg.mxu0
      %564 = vmatpush.bf16.msra.mxu0 %v492
      %565 = vmatpush.bf16.msra.mxu0 %v488
      %566 = vmatpush.bf16.msra.mxu0 %v484
      %567 = vmatpush.bf16.msra.mxu0 %v480
      %568 = vmatpush.bf16.msra.mxu0 %v476
      %569 = vmatpush.bf16.msra.mxu0 %v472
      %570 = vmatpush.bf16.msra.mxu0 %v468
      %571 = vmatpush.bf16.msra.mxu0 %v464
      %572 = vmatmul.bf16.gmra.mxu0 %v332
      %v573 = vpop.f32.mrf.mxu0
      %v574 = vadd.f32 0.0, %v573
      %v575 = vpop.f32.mrf.mxu0
      %576 = vdwg.mxu0
      %v577 = vadd.f32 %v328, %v535
      %v578 = vadd.f32 %v329, %v548
      %v579 = vadd.f32 %v330, %v561
      %v580 = vadd.f32 %v331, %v574
      %v581 = vxor.u32 %v577, 2147483648
      %v582 = vxor.u32 %v578, 2147483648
      %v583 = vxor.u32 %v579, 2147483648
      %v584 = vmul.f32 %v581, 1.442695
      %v585 = vpow.pop %v584
      %v586 = vmul.f32 %v582, 1.442695
      %v587 = vpow.pop %v586
      %v588 = vmul.f32 %v583, 1.442695
      %v589 = vpow.pop %v588
      %v590 = vadd.f32 %v585, 1.0
      %v591 = vadd.f32 %v587, 1.0
      %v592 = vadd.f32 %v589, 1.0
      %v593 = vrcp.pop %v590
      %v594 = vmul.f32 %v590, %v593
      %v595 = vsub.f32 1.0, %v594
      %v596 = vmul.f32 %v593, %v595
      %v597 = vadd.f32 %v593, %v596
      %vm598 = vweird.f32 %v590
      %vm599 = vweird.f32 %v593
      %vm600 = vmor %vm598, %vm599
      %v601 = vsel %vm600, %v593, %v597
      %v602 = vand.u32 2147483647, %v590
      %vm603 = vcmp.eq.f32.partialorder %v602, 8.507059e+37
      %v604 = vand.u32 %v590, 2147483648
      %v605 = vor.u32 1.1754944e-38, %v604
      %v606 = vsel %vm603, %v605, %v601
      %v607 = vmul.f32 1.0, %v606
      %v608 = vrcp.pop %v591
      %v609 = vmul.f32 %v591, %v608
      %v610 = vsub.f32 1.0, %v609
      %v611 = vmul.f32 %v608, %v610
      %v612 = vadd.f32 %v608, %v611
      %vm613 = vweird.f32 %v591
      %vm614 = vweird.f32 %v608
      %vm615 = vmor %vm613, %vm614
      %v616 = vsel %vm615, %v608, %v612
      %v617 = vand.u32 2147483647, %v591
      %vm618 = vcmp.eq.f32.partialorder %v617, 8.507059e+37
      %v619 = vand.u32 %v591, 2147483648
      %v620 = vor.u32 1.1754944e-38, %v619
      %v621 = vsel %vm618, %v620, %v616
      %v622 = vmul.f32 1.0, %v621
      %v623 = vrcp.pop %v592
      %v624 = vmul.f32 %v592, %v623
      %v625 = vsub.f32 1.0, %v624
      %v626 = vmul.f32 %v623, %v625
      %v627 = vadd.f32 %v623, %v626
      %vm628 = vweird.f32 %v592
      %vm629 = vweird.f32 %v623
      %vm630 = vmor %vm628, %vm629
      %v631 = vsel %vm630, %v623, %v627
      %v632 = vand.u32 2147483647, %v592
      %vm633 = vcmp.eq.f32.partialorder %v632, 8.507059e+37
      %v634 = vand.u32 %v592, 2147483648
      %v635 = vor.u32 1.1754944e-38, %v634
      %v636 = vsel %vm633, %v635, %v631
      %v637 = vmul.f32 1.0, %v636
      %v638 = vtanh.pop %v580
      %v639 = vmul.f32 %v622, %v323
      %v640 = vmul.f32 %v607, %v638
      %v641 = vadd.f32 %v639, %v640
      %v642 = vtanh.pop %v641
      %v643 = vmul.f32 %v637, %v642
      %v644 = vpack.c.bf16 %v643, %v643
      %s645 = smul.addr %s324, 4
      %s646 = scalar_lea.vmem [#allocation5], %s645
      %647 = vst [vmem:[%s646] sm:$0xf] %v644
      %s648 = sadd.s32 %s324, 1
      %s649 = smul.u32 %s648, 4
      %s650 = smul.addr %s649, 8
      %s651 = scalar_lea.vmem [#allocation4], %s650
      %v652 = vld [vmem:[%s651] sm:$0xff]
      %v653 = vld [vmem:[%s651 + $0x8] sm:$0xff]
      %v654 = vld [vmem:[%s651 + $0x10] sm:$0xff]
      %v655 = vld [vmem:[%s651 + $0x18] sm:$0xff]
      %v656 = vld [vmem:[#allocation11] sm:$0xff]
      %v657 = vld [vmem:[#allocation11 + $0x8] sm:$0xff]
      %v658 = vld [vmem:[#allocation11 + $0x10] sm:$0xff]
      %v659 = vld [vmem:[#allocation11 + $0x18] sm:$0xff]
      %v660 = vld [vmem:[#allocation11 + $0x20] sm:$0xff]
      %v661 = vld [vmem:[#allocation11 + $0x28] sm:$0xff]
      %v662 = vld [vmem:[#allocation11 + $0x30] sm:$0xff]
      %v663 = vld [vmem:[#allocation11 + $0x38] sm:$0xff]
      %v664 = vld [vmem:[#allocation11 + $0x40] sm:$0xff]
      %v665 = vld [vmem:[#allocation11 + $0x48] sm:$0xff]
      %v666 = vld [vmem:[#allocation11 + $0x50] sm:$0xff]
      %v667 = vld [vmem:[#allocation11 + $0x58] sm:$0xff]
      %v668 = vld [vmem:[#allocation11 + $0x60] sm:$0xff]
      %v669 = vld [vmem:[#allocation11 + $0x68] sm:$0xff]
      %v670 = vld [vmem:[#allocation11 + $0x70] sm:$0xff]
      %v671 = vld [vmem:[#allocation11 + $0x78] sm:$0xff]
      %v672 = vld [vmem:[#allocation11 + $0x80] sm:$0xff]
      %v673 = vld [vmem:[#allocation11 + $0x88] sm:$0xff]
      %v674 = vld [vmem:[#allocation11 + $0x90] sm:$0xff]
      %v675 = vld [vmem:[#allocation11 + $0x98] sm:$0xff]
      %v676 = vld [vmem:[#allocation11 + $0xa0] sm:$0xff]
      %v677 = vld [vmem:[#allocation11 + $0xa8] sm:$0xff]
      %v678 = vld [vmem:[#allocation11 + $0xb0] sm:$0xff]
      %v679 = vld [vmem:[#allocation11 + $0xb8] sm:$0xff]
      %v680 = vld [vmem:[#allocation11 + $0xc0] sm:$0xff]
      %v681 = vld [vmem:[#allocation11 + $0xc8] sm:$0xff]
      %v682 = vld [vmem:[#allocation11 + $0xd0] sm:$0xff]
      %v683 = vld [vmem:[#allocation11 + $0xd8] sm:$0xff]
      %v684 = vld [vmem:[#allocation11 + $0xe0] sm:$0xff]
      %v685 = vld [vmem:[#allocation11 + $0xe8] sm:$0xff]
      %v686 = vld [vmem:[#allocation11 + $0xf0] sm:$0xff]
      %v687 = vld [vmem:[#allocation11 + $0xf8] sm:$0xff]
      %v720 = vunpack.c.l.b16 %v656
      %v721 = vunpack.c.h.b16 %v656
      %v722 = vunpack.c.l.b16 %v657
      %v723 = vunpack.c.h.b16 %v657
      %v724 = vunpack.c.l.b16 %v658
      %v725 = vunpack.c.h.b16 %v658
      %v726 = vunpack.c.l.b16 %v659
      %v727 = vunpack.c.h.b16 %v659
      %v728 = vunpack.c.l.b16 %v660
      %v729 = vunpack.c.h.b16 %v660
      %v730 = vunpack.c.l.b16 %v661
      %v731 = vunpack.c.h.b16 %v661
      %v732 = vunpack.c.l.b16 %v662
      %v733 = vunpack.c.h.b16 %v662
      %v734 = vunpack.c.l.b16 %v663
      %v735 = vunpack.c.h.b16 %v663
      %v736 = vunpack.c.l.b16 %v664
      %v737 = vunpack.c.h.b16 %v664
      %v738 = vunpack.c.l.b16 %v665
      %v739 = vunpack.c.h.b16 %v665
      %v740 = vunpack.c.l.b16 %v666
      %v741 = vunpack.c.h.b16 %v666
      %v742 = vunpack.c.l.b16 %v667
      %v743 = vunpack.c.h.b16 %v667
      %v744 = vunpack.c.l.b16 %v668
      %v745 = vunpack.c.h.b16 %v668
      %v746 = vunpack.c.l.b16 %v669
      %v747 = vunpack.c.h.b16 %v669
      %v748 = vunpack.c.l.b16 %v670
      %v749 = vunpack.c.h.b16 %v670
      %v750 = vunpack.c.l.b16 %v671
      %v751 = vunpack.c.h.b16 %v671
      %v752 = vunpack.c.l.b16 %v672
      %v753 = vunpack.c.h.b16 %v672
      %v754 = vunpack.c.l.b16 %v673
      %v755 = vunpack.c.h.b16 %v673
      %v756 = vunpack.c.l.b16 %v674
      %v757 = vunpack.c.h.b16 %v674
      %v758 = vunpack.c.l.b16 %v675
      %v759 = vunpack.c.h.b16 %v675
      %v760 = vunpack.c.l.b16 %v676
      %v761 = vunpack.c.h.b16 %v676
      %v762 = vunpack.c.l.b16 %v677
      %v763 = vunpack.c.h.b16 %v677
      %v764 = vunpack.c.l.b16 %v678
      %v765 = vunpack.c.h.b16 %v678
      %v766 = vunpack.c.l.b16 %v679
      %v767 = vunpack.c.h.b16 %v679
      %v768 = vunpack.c.l.b16 %v680
      %v769 = vunpack.c.h.b16 %v680
      %v770 = vunpack.c.l.b16 %v681
      %v771 = vunpack.c.h.b16 %v681
      %v772 = vunpack.c.l.b16 %v682
      %v773 = vunpack.c.h.b16 %v682
      %v774 = vunpack.c.l.b16 %v683
      %v775 = vunpack.c.h.b16 %v683
      %v776 = vunpack.c.l.b16 %v684
      %v777 = vunpack.c.h.b16 %v684
      %v778 = vunpack.c.l.b16 %v685
      %v779 = vunpack.c.h.b16 %v685
      %v780 = vunpack.c.l.b16 %v686
      %v781 = vunpack.c.h.b16 %v686
      %v782 = vunpack.c.l.b16 %v687
      %v783 = vunpack.c.h.b16 %v687
      %v784 = vpack.c.b16 %v724, %v720
      %v785 = vpack.c.b16 %v725, %v721
      %v786 = vpack.c.b16 %v726, %v722
      %v787 = vpack.c.b16 %v727, %v723
      %v788 = vpack.c.b16 %v732, %v728
      %v789 = vpack.c.b16 %v733, %v729
      %v790 = vpack.c.b16 %v734, %v730
      %v791 = vpack.c.b16 %v735, %v731
      %v792 = vpack.c.b16 %v740, %v736
      %v793 = vpack.c.b16 %v741, %v737
      %v794 = vpack.c.b16 %v742, %v738
      %v795 = vpack.c.b16 %v743, %v739
      %v796 = vpack.c.b16 %v748, %v744
      %v797 = vpack.c.b16 %v749, %v745
      %v798 = vpack.c.b16 %v750, %v746
      %v799 = vpack.c.b16 %v751, %v747
      %v800 = vpack.c.b16 %v756, %v752
      %v801 = vpack.c.b16 %v757, %v753
      %v802 = vpack.c.b16 %v758, %v754
      %v803 = vpack.c.b16 %v759, %v755
      %v804 = vpack.c.b16 %v764, %v760
      %v805 = vpack.c.b16 %v765, %v761
      %v806 = vpack.c.b16 %v766, %v762
      %v807 = vpack.c.b16 %v767, %v763
      %v808 = vpack.c.b16 %v772, %v768
      %v809 = vpack.c.b16 %v773, %v769
      %v810 = vpack.c.b16 %v774, %v770
      %v811 = vpack.c.b16 %v775, %v771
      %v812 = vpack.c.b16 %v780, %v776
      %v813 = vpack.c.b16 %v781, %v777
      %v814 = vpack.c.b16 %v782, %v778
      %v815 = vpack.c.b16 %v783, %v779
      %848 = vmatpush.bf16.msra.mxu0 %v812
      %849 = vmatpush.bf16.msra.mxu0 %v808
      %850 = vmatpush.bf16.msra.mxu0 %v804
      %851 = vmatpush.bf16.msra.mxu0 %v800
      %852 = vmatpush.bf16.msra.mxu0 %v796
      %853 = vmatpush.bf16.msra.mxu0 %v792
      %854 = vmatpush.bf16.msra.mxu0 %v788
      %855 = vmatpush.bf16.msra.mxu0 %v784
      %856 = vmatmul.bf16.gmra.mxu0 %v644
      %v857 = vpop.f32.mrf.mxu0
      %v858 = vadd.f32 0.0, %v857
      %v859 = vpop.f32.mrf.mxu0
      %860 = vdwg.mxu0
      %861 = vmatpush.bf16.msra.mxu0 %v813
      %862 = vmatpush.bf16.msra.mxu0 %v809
      %863 = vmatpush.bf16.msra.mxu0 %v805
      %864 = vmatpush.bf16.msra.mxu0 %v801
      %865 = vmatpush.bf16.msra.mxu0 %v797
      %866 = vmatpush.bf16.msra.mxu0 %v793
      %867 = vmatpush.bf16.msra.mxu0 %v789
      %868 = vmatpush.bf16.msra.mxu0 %v785
      %869 = vmatmul.bf16.gmra.mxu0 %v644
      %v870 = vpop.f32.mrf.mxu0
      %v871 = vadd.f32 0.0, %v870
      %v872 = vpop.f32.mrf.mxu0
      %873 = vdwg.mxu0
      %874 = vmatpush.bf16.msra.mxu0 %v814
      %875 = vmatpush.bf16.msra.mxu0 %v810
      %876 = vmatpush.bf16.msra.mxu0 %v806
      %877 = vmatpush.bf16.msra.mxu0 %v802
      %878 = vmatpush.bf16.msra.mxu0 %v798
      %879 = vmatpush.bf16.msra.mxu0 %v794
      %880 = vmatpush.bf16.msra.mxu0 %v790
      %881 = vmatpush.bf16.msra.mxu0 %v786
      %882 = vmatmul.bf16.gmra.mxu0 %v644
      %v883 = vpop.f32.mrf.mxu0
      %v884 = vadd.f32 0.0, %v883
      %v885 = vpop.f32.mrf.mxu0
      %886 = vdwg.mxu0
      %887 = vmatpush.bf16.msra.mxu0 %v815
      %888 = vmatpush.bf16.msra.mxu0 %v811
      %889 = vmatpush.bf16.msra.mxu0 %v807
      %890 = vmatpush.bf16.msra.mxu0 %v803
      %891 = vmatpush.bf16.msra.mxu0 %v799
      %892 = vmatpush.bf16.msra.mxu0 %v795
      %893 = vmatpush.bf16.msra.mxu0 %v791
      %894 = vmatpush.bf16.msra.mxu0 %v787
      %895 = vmatmul.bf16.gmra.mxu0 %v644
      %v896 = vpop.f32.mrf.mxu0
      %v897 = vadd.f32 0.0, %v896
      %v898 = vpop.f32.mrf.mxu0
      %899 = vdwg.mxu0
      %v900 = vadd.f32 %v652, %v858
      %v901 = vadd.f32 %v653, %v871
      %v902 = vadd.f32 %v654, %v884
      %v903 = vadd.f32 %v655, %v897
      %v904 = vxor.u32 %v900, 2147483648
      %v905 = vxor.u32 %v901, 2147483648
      %v906 = vxor.u32 %v902, 2147483648
      %v907 = vmul.f32 %v904, 1.442695
      %v908 = vpow.pop %v907
      %v909 = vmul.f32 %v905, 1.442695
      %v910 = vpow.pop %v909
      %v911 = vmul.f32 %v906, 1.442695
      %v912 = vpow.pop %v911
      %v913 = vadd.f32 %v908, 1.0
      %v914 = vadd.f32 %v910, 1.0
      %v915 = vadd.f32 %v912, 1.0
      %v916 = vrcp.pop %v913
      %v917 = vmul.f32 %v913, %v916
      %v918 = vsub.f32 1.0, %v917
      %v919 = vmul.f32 %v916, %v918
      %v920 = vadd.f32 %v916, %v919
      %vm921 = vweird.f32 %v913
      %vm922 = vweird.f32 %v916
      %vm923 = vmor %vm921, %vm922
      %v924 = vsel %vm923, %v916, %v920
      %v925 = vand.u32 2147483647, %v913
      %vm926 = vcmp.eq.f32.partialorder %v925, 8.507059e+37
      %v927 = vand.u32 %v913, 2147483648
      %v928 = vor.u32 1.1754944e-38, %v927
      %v929 = vsel %vm926, %v928, %v924
      %v930 = vmul.f32 1.0, %v929
      %v931 = vrcp.pop %v914
      %v932 = vmul.f32 %v914, %v931
      %v933 = vsub.f32 1.0, %v932
      %v934 = vmul.f32 %v931, %v933
      %v935 = vadd.f32 %v931, %v934
      %vm936 = vweird.f32 %v914
      %vm937 = vweird.f32 %v931
      %vm938 = vmor %vm936, %vm937
      %v939 = vsel %vm938, %v931, %v935
      %v940 = vand.u32 2147483647, %v914
      %vm941 = vcmp.eq.f32.partialorder %v940, 8.507059e+37
      %v942 = vand.u32 %v914, 2147483648
      %v943 = vor.u32 1.1754944e-38, %v942
      %v944 = vsel %vm941, %v943, %v939
      %v945 = vmul.f32 1.0, %v944
      %v946 = vrcp.pop %v915
      %v947 = vmul.f32 %v915, %v946
      %v948 = vsub.f32 1.0, %v947
      %v949 = vmul.f32 %v946, %v948
      %v950 = vadd.f32 %v946, %v949
      %vm951 = vweird.f32 %v915
      %vm952 = vweird.f32 %v946
      %vm953 = vmor %vm951, %vm952
      %v954 = vsel %vm953, %v946, %v950
      %v955 = vand.u32 2147483647, %v915
      %vm956 = vcmp.eq.f32.partialorder %v955, 8.507059e+37
      %v957 = vand.u32 %v915, 2147483648
      %v958 = vor.u32 1.1754944e-38, %v957
      %v959 = vsel %vm956, %v958, %v954
      %v960 = vmul.f32 1.0, %v959
      %v961 = vtanh.pop %v903
      %v962 = vmul.f32 %v945, %v641
      %v963 = vmul.f32 %v930, %v961
      %v964 = vadd.f32 %v962, %v963
      %v965 = vtanh.pop %v964
      %v966 = vmul.f32 %v960, %v965
      %v967 = vpack.c.bf16 %v966, %v966
      %s968 = smul.addr %s648, 4
      %s969 = scalar_lea.vmem [#allocation5], %s968
      %970 = vst [vmem:[%s969] sm:$0xf] %v967
      %s971 = sadd.s32 %s324, 2
      %s972 = smul.u32 %s971, 4
      %s973 = smul.addr %s972, 8
      %s974 = scalar_lea.vmem [#allocation4], %s973
      %v975 = vld [vmem:[%s974] sm:$0xff]
      %v976 = vld [vmem:[%s974 + $0x8] sm:$0xff]
      %v977 = vld [vmem:[%s974 + $0x10] sm:$0xff]
      %v978 = vld [vmem:[%s974 + $0x18] sm:$0xff]
      %v979 = vld [vmem:[#allocation11] sm:$0xff]
      %v980 = vld [vmem:[#allocation11 + $0x8] sm:$0xff]
      %v981 = vld [vmem:[#allocation11 + $0x10] sm:$0xff]
      %v982 = vld [vmem:[#allocation11 + $0x18] sm:$0xff]
      %v983 = vld [vmem:[#allocation11 + $0x20] sm:$0xff]
      %v984 = vld [vmem:[#allocation11 + $0x28] sm:$0xff]
      %v985 = vld [vmem:[#allocation11 + $0x30] sm:$0xff]
      %v986 = vld [vmem:[#allocation11 + $0x38] sm:$0xff]
      %v987 = vld [vmem:[#allocation11 + $0x40] sm:$0xff]
      %v988 = vld [vmem:[#allocation11 + $0x48] sm:$0xff]
      %v989 = vld [vmem:[#allocation11 + $0x50] sm:$0xff]
      %v990 = vld [vmem:[#allocation11 + $0x58] sm:$0xff]
      %v991 = vld [vmem:[#allocation11 + $0x60] sm:$0xff]
      %v992 = vld [vmem:[#allocation11 + $0x68] sm:$0xff]
      %v993 = vld [vmem:[#allocation11 + $0x70] sm:$0xff]
      %v994 = vld [vmem:[#allocation11 + $0x78] sm:$0xff]
      %v995 = vld [vmem:[#allocation11 + $0x80] sm:$0xff]
      %v996 = vld [vmem:[#allocation11 + $0x88] sm:$0xff]
      %v997 = vld [vmem:[#allocation11 + $0x90] sm:$0xff]
      %v998 = vld [vmem:[#allocation11 + $0x98] sm:$0xff]
      %v999 = vld [vmem:[#allocation11 + $0xa0] sm:$0xff]
      %v1000 = vld [vmem:[#allocation11 + $0xa8] sm:$0xff]
      %v1001 = vld [vmem:[#allocation11 + $0xb0] sm:$0xff]
      %v1002 = vld [vmem:[#allocation11 + $0xb8] sm:$0xff]
      %v1003 = vld [vmem:[#allocation11 + $0xc0] sm:$0xff]
      %v1004 = vld [vmem:[#allocation11 + $0xc8] sm:$0xff]
      %v1005 = vld [vmem:[#allocation11 + $0xd0] sm:$0xff]
      %v1006 = vld [vmem:[#allocation11 + $0xd8] sm:$0xff]
      %v1007 = vld [vmem:[#allocation11 + $0xe0] sm:$0xff]
      %v1008 = vld [vmem:[#allocation11 + $0xe8] sm:$0xff]
      %v1009 = vld [vmem:[#allocation11 + $0xf0] sm:$0xff]
      %v1010 = vld [vmem:[#allocation11 + $0xf8] sm:$0xff]
      %v1043 = vunpack.c.l.b16 %v979
      %v1044 = vunpack.c.h.b16 %v979
      %v1045 = vunpack.c.l.b16 %v980
      %v1046 = vunpack.c.h.b16 %v980
      %v1047 = vunpack.c.l.b16 %v981
      %v1048 = vunpack.c.h.b16 %v981
      %v1049 = vunpack.c.l.b16 %v982
      %v1050 = vunpack.c.h.b16 %v982
      %v1051 = vunpack.c.l.b16 %v983
      %v1052 = vunpack.c.h.b16 %v983
      %v1053 = vunpack.c.l.b16 %v984
      %v1054 = vunpack.c.h.b16 %v984
      %v1055 = vunpack.c.l.b16 %v985
      %v1056 = vunpack.c.h.b16 %v985
      %v1057 = vunpack.c.l.b16 %v986
      %v1058 = vunpack.c.h.b16 %v986
      %v1059 = vunpack.c.l.b16 %v987
      %v1060 = vunpack.c.h.b16 %v987
      %v1061 = vunpack.c.l.b16 %v988
      %v1062 = vunpack.c.h.b16 %v988
      %v1063 = vunpack.c.l.b16 %v989
      %v1064 = vunpack.c.h.b16 %v989
      %v1065 = vunpack.c.l.b16 %v990
      %v1066 = vunpack.c.h.b16 %v990
      %v1067 = vunpack.c.l.b16 %v991
      %v1068 = vunpack.c.h.b16 %v991
      %v1069 = vunpack.c.l.b16 %v992
      %v1070 = vunpack.c.h.b16 %v992
      %v1071 = vunpack.c.l.b16 %v993
      %v1072 = vunpack.c.h.b16 %v993
      %v1073 = vunpack.c.l.b16 %v994
      %v1074 = vunpack.c.h.b16 %v994
      %v1075 = vunpack.c.l.b16 %v995
      %v1076 = vunpack.c.h.b16 %v995
      %v1077 = vunpack.c.l.b16 %v996
      %v1078 = vunpack.c.h.b16 %v996
      %v1079 = vunpack.c.l.b16 %v997
      %v1080 = vunpack.c.h.b16 %v997
      %v1081 = vunpack.c.l.b16 %v998
      %v1082 = vunpack.c.h.b16 %v998
      %v1083 = vunpack.c.l.b16 %v999
      %v1084 = vunpack.c.h.b16 %v999
      %v1085 = vunpack.c.l.b16 %v1000
      %v1086 = vunpack.c.h.b16 %v1000
      %v1087 = vunpack.c.l.b16 %v1001
      %v1088 = vunpack.c.h.b16 %v1001
      %v1089 = vunpack.c.l.b16 %v1002
      %v1090 = vunpack.c.h.b16 %v1002
      %v1091 = vunpack.c.l.b16 %v1003
      %v1092 = vunpack.c.h.b16 %v1003
      %v1093 = vunpack.c.l.b16 %v1004
      %v1094 = vunpack.c.h.b16 %v1004
      %v1095 = vunpack.c.l.b16 %v1005
      %v1096 = vunpack.c.h.b16 %v1005
      %v1097 = vunpack.c.l.b16 %v1006
      %v1098 = vunpack.c.h.b16 %v1006
      %v1099 = vunpack.c.l.b16 %v1007
      %v1100 = vunpack.c.h.b16 %v1007
      %v1101 = vunpack.c.l.b16 %v1008
      %v1102 = vunpack.c.h.b16 %v1008
      %v1103 = vunpack.c.l.b16 %v1009
      %v1104 = vunpack.c.h.b16 %v1009
      %v1105 = vunpack.c.l.b16 %v1010
      %v1106 = vunpack.c.h.b16 %v1010
      %v1107 = vpack.c.b16 %v1047, %v1043
      %v1108 = vpack.c.b16 %v1048, %v1044
      %v1109 = vpack.c.b16 %v1049, %v1045
      %v1110 = vpack.c.b16 %v1050, %v1046
      %v1111 = vpack.c.b16 %v1055, %v1051
      %v1112 = vpack.c.b16 %v1056, %v1052
      %v1113 = vpack.c.b16 %v1057, %v1053
      %v1114 = vpack.c.b16 %v1058, %v1054
      %v1115 = vpack.c.b16 %v1063, %v1059
      %v1116 = vpack.c.b16 %v1064, %v1060
      %v1117 = vpack.c.b16 %v1065, %v1061
      %v1118 = vpack.c.b16 %v1066, %v1062
      %v1119 = vpack.c.b16 %v1071, %v1067
      %v1120 = vpack.c.b16 %v1072, %v1068
      %v1121 = vpack.c.b16 %v1073, %v1069
      %v1122 = vpack.c.b16 %v1074, %v1070
      %v1123 = vpack.c.b16 %v1079, %v1075
      %v1124 = vpack.c.b16 %v1080, %v1076
      %v1125 = vpack.c.b16 %v1081, %v1077
      %v1126 = vpack.c.b16 %v1082, %v1078
      %v1127 = vpack.c.b16 %v1087, %v1083
      %v1128 = vpack.c.b16 %v1088, %v1084
      %v1129 = vpack.c.b16 %v1089, %v1085
      %v1130 = vpack.c.b16 %v1090, %v1086
      %v1131 = vpack.c.b16 %v1095, %v1091
      %v1132 = vpack.c.b16 %v1096, %v1092
      %v1133 = vpack.c.b16 %v1097, %v1093
      %v1134 = vpack.c.b16 %v1098, %v1094
      %v1135 = vpack.c.b16 %v1103, %v1099
      %v1136 = vpack.c.b16 %v1104, %v1100
      %v1137 = vpack.c.b16 %v1105, %v1101
      %v1138 = vpack.c.b16 %v1106, %v1102
      %1171 = vmatpush.bf16.msra.mxu0 %v1135
      %1172 = vmatpush.bf16.msra.mxu0 %v1131
      %1173 = vmatpush.bf16.msra.mxu0 %v1127
      %1174 = vmatpush.bf16.msra.mxu0 %v1123
      %1175 = vmatpush.bf16.msra.mxu0 %v1119
      %1176 = vmatpush.bf16.msra.mxu0 %v1115
      %1177 = vmatpush.bf16.msra.mxu0 %v1111
      %1178 = vmatpush.bf16.msra.mxu0 %v1107
      %1179 = vmatmul.bf16.gmra.mxu0 %v967
      %v1180 = vpop.f32.mrf.mxu0
      %v1181 = vadd.f32 0.0, %v1180
      %v1182 = vpop.f32.mrf.mxu0
      %1183 = vdwg.mxu0
      %1184 = vmatpush.bf16.msra.mxu0 %v1136
      %1185 = vmatpush.bf16.msra.mxu0 %v1132
      %1186 = vmatpush.bf16.msra.mxu0 %v1128
      %1187 = vmatpush.bf16.msra.mxu0 %v1124
      %1188 = vmatpush.bf16.msra.mxu0 %v1120
      %1189 = vmatpush.bf16.msra.mxu0 %v1116
      %1190 = vmatpush.bf16.msra.mxu0 %v1112
      %1191 = vmatpush.bf16.msra.mxu0 %v1108
      %1192 = vmatmul.bf16.gmra.mxu0 %v967
      %v1193 = vpop.f32.mrf.mxu0
      %v1194 = vadd.f32 0.0, %v1193
      %v1195 = vpop.f32.mrf.mxu0
      %1196 = vdwg.mxu0
      %1197 = vmatpush.bf16.msra.mxu0 %v1137
      %1198 = vmatpush.bf16.msra.mxu0 %v1133
      %1199 = vmatpush.bf16.msra.mxu0 %v1129
      %1200 = vmatpush.bf16.msra.mxu0 %v1125
      %1201 = vmatpush.bf16.msra.mxu0 %v1121
      %1202 = vmatpush.bf16.msra.mxu0 %v1117
      %1203 = vmatpush.bf16.msra.mxu0 %v1113
      %1204 = vmatpush.bf16.msra.mxu0 %v1109
      %1205 = vmatmul.bf16.gmra.mxu0 %v967
      %v1206 = vpop.f32.mrf.mxu0
      %v1207 = vadd.f32 0.0, %v1206
      %v1208 = vpop.f32.mrf.mxu0
      %1209 = vdwg.mxu0
      %1210 = vmatpush.bf16.msra.mxu0 %v1138
      %1211 = vmatpush.bf16.msra.mxu0 %v1134
      %1212 = vmatpush.bf16.msra.mxu0 %v1130
      %1213 = vmatpush.bf16.msra.mxu0 %v1126
      %1214 = vmatpush.bf16.msra.mxu0 %v1122
      %1215 = vmatpush.bf16.msra.mxu0 %v1118
      %1216 = vmatpush.bf16.msra.mxu0 %v1114
      %1217 = vmatpush.bf16.msra.mxu0 %v1110
      %1218 = vmatmul.bf16.gmra.mxu0 %v967
      %v1219 = vpop.f32.mrf.mxu0
      %v1220 = vadd.f32 0.0, %v1219
      %v1221 = vpop.f32.mrf.mxu0
      %1222 = vdwg.mxu0
      %v1223 = vadd.f32 %v975, %v1181
      %v1224 = vadd.f32 %v976, %v1194
      %v1225 = vadd.f32 %v977, %v1207
      %v1226 = vadd.f32 %v978, %v1220
      %v1227 = vxor.u32 %v1223, 2147483648
      %v1228 = vxor.u32 %v1224, 2147483648
      %v1229 = vxor.u32 %v1225, 2147483648
      %v1230 = vmul.f32 %v1227, 1.442695
      %v1231 = vpow.pop %v1230
      %v1232 = vmul.f32 %v1228, 1.442695
      %v1233 = vpow.pop %v1232
      %v1234 = vmul.f32 %v1229, 1.442695
      %v1235 = vpow.pop %v1234
      %v1236 = vadd.f32 %v1231, 1.0
      %v1237 = vadd.f32 %v1233, 1.0
      %v1238 = vadd.f32 %v1235, 1.0
      %v1239 = vrcp.pop %v1236
      %v1240 = vmul.f32 %v1236, %v1239
      %v1241 = vsub.f32 1.0, %v1240
      %v1242 = vmul.f32 %v1239, %v1241
      %v1243 = vadd.f32 %v1239, %v1242
      %vm1244 = vweird.f32 %v1236
      %vm1245 = vweird.f32 %v1239
      %vm1246 = vmor %vm1244, %vm1245
      %v1247 = vsel %vm1246, %v1239, %v1243
      %v1248 = vand.u32 2147483647, %v1236
      %vm1249 = vcmp.eq.f32.partialorder %v1248, 8.507059e+37
      %v1250 = vand.u32 %v1236, 2147483648
      %v1251 = vor.u32 1.1754944e-38, %v1250
      %v1252 = vsel %vm1249, %v1251, %v1247
      %v1253 = vmul.f32 1.0, %v1252
      %v1254 = vrcp.pop %v1237
      %v1255 = vmul.f32 %v1237, %v1254
      %v1256 = vsub.f32 1.0, %v1255
      %v1257 = vmul.f32 %v1254, %v1256
      %v1258 = vadd.f32 %v1254, %v1257
      %vm1259 = vweird.f32 %v1237
      %vm1260 = vweird.f32 %v1254
      %vm1261 = vmor %vm1259, %vm1260
      %v1262 = vsel %vm1261, %v1254, %v1258
      %v1263 = vand.u32 2147483647, %v1237
      %vm1264 = vcmp.eq.f32.partialorder %v1263, 8.507059e+37
      %v1265 = vand.u32 %v1237, 2147483648
      %v1266 = vor.u32 1.1754944e-38, %v1265
      %v1267 = vsel %vm1264, %v1266, %v1262
      %v1268 = vmul.f32 1.0, %v1267
      %v1269 = vrcp.pop %v1238
      %v1270 = vmul.f32 %v1238, %v1269
      %v1271 = vsub.f32 1.0, %v1270
      %v1272 = vmul.f32 %v1269, %v1271
      %v1273 = vadd.f32 %v1269, %v1272
      %vm1274 = vweird.f32 %v1238
      %vm1275 = vweird.f32 %v1269
      %vm1276 = vmor %vm1274, %vm1275
      %v1277 = vsel %vm1276, %v1269, %v1273
      %v1278 = vand.u32 2147483647, %v1238
      %vm1279 = vcmp.eq.f32.partialorder %v1278, 8.507059e+37
      %v1280 = vand.u32 %v1238, 2147483648
      %v1281 = vor.u32 1.1754944e-38, %v1280
      %v1282 = vsel %vm1279, %v1281, %v1277
      %v1283 = vmul.f32 1.0, %v1282
      %v1284 = vtanh.pop %v1226
      %v1285 = vmul.f32 %v1268, %v964
      %v1286 = vmul.f32 %v1253, %v1284
      %v1287 = vadd.f32 %v1285, %v1286
      %v1288 = vtanh.pop %v1287
      %v1289 = vmul.f32 %v1283, %v1288
      %v1290 = vpack.c.bf16 %v1289, %v1289
      %s1291 = smul.addr %s971, 4
      %s1292 = scalar_lea.vmem [#allocation5], %s1291
      %1293 = vst [vmem:[%s1292] sm:$0xf] %v1290
      %s1294 = sadd.s32 %s324, 3
      %s1295 = smul.u32 %s1294, 4
      %s1296 = smul.addr %s1295, 8
      %s1297 = scalar_lea.vmem [#allocation4], %s1296
      %v1298 = vld [vmem:[%s1297] sm:$0xff]
      %v1299 = vld [vmem:[%s1297 + $0x8] sm:$0xff]
      %v1300 = vld [vmem:[%s1297 + $0x10] sm:$0xff]
      %v1301 = vld [vmem:[%s1297 + $0x18] sm:$0xff]
      %v1302 = vld [vmem:[#allocation11] sm:$0xff]
      %v1303 = vld [vmem:[#allocation11 + $0x8] sm:$0xff]
      %v1304 = vld [vmem:[#allocation11 + $0x10] sm:$0xff]
      %v1305 = vld [vmem:[#allocation11 + $0x18] sm:$0xff]
      %v1306 = vld [vmem:[#allocation11 + $0x20] sm:$0xff]
      %v1307 = vld [vmem:[#allocation11 + $0x28] sm:$0xff]
      %v1308 = vld [vmem:[#allocation11 + $0x30] sm:$0xff]
      %v1309 = vld [vmem:[#allocation11 + $0x38] sm:$0xff]
      %v1310 = vld [vmem:[#allocation11 + $0x40] sm:$0xff]
      %v1311 = vld [vmem:[#allocation11 + $0x48] sm:$0xff]
      %v1312 = vld [vmem:[#allocation11 + $0x50] sm:$0xff]
      %v1313 = vld [vmem:[#allocation11 + $0x58] sm:$0xff]
      %v1314 = vld [vmem:[#allocation11 + $0x60] sm:$0xff]
      %v1315 = vld [vmem:[#allocation11 + $0x68] sm:$0xff]
      %v1316 = vld [vmem:[#allocation11 + $0x70] sm:$0xff]
      %v1317 = vld [vmem:[#allocation11 + $0x78] sm:$0xff]
      %v1318 = vld [vmem:[#allocation11 + $0x80] sm:$0xff]
      %v1319 = vld [vmem:[#allocation11 + $0x88] sm:$0xff]
      %v1320 = vld [vmem:[#allocation11 + $0x90] sm:$0xff]
      %v1321 = vld [vmem:[#allocation11 + $0x98] sm:$0xff]
      %v1322 = vld [vmem:[#allocation11 + $0xa0] sm:$0xff]
      %v1323 = vld [vmem:[#allocation11 + $0xa8] sm:$0xff]
      %v1324 = vld [vmem:[#allocation11 + $0xb0] sm:$0xff]
      %v1325 = vld [vmem:[#allocation11 + $0xb8] sm:$0xff]
      %v1326 = vld [vmem:[#allocation11 + $0xc0] sm:$0xff]
      %v1327 = vld [vmem:[#allocation11 + $0xc8] sm:$0xff]
      %v1328 = vld [vmem:[#allocation11 + $0xd0] sm:$0xff]
      %v1329 = vld [vmem:[#allocation11 + $0xd8] sm:$0xff]
      %v1330 = vld [vmem:[#allocation11 + $0xe0] sm:$0xff]
      %v1331 = vld [vmem:[#allocation11 + $0xe8] sm:$0xff]
      %v1332 = vld [vmem:[#allocation11 + $0xf0] sm:$0xff]
      %v1333 = vld [vmem:[#allocation11 + $0xf8] sm:$0xff]
      %v1366 = vunpack.c.l.b16 %v1302
      %v1367 = vunpack.c.h.b16 %v1302
      %v1368 = vunpack.c.l.b16 %v1303
      %v1369 = vunpack.c.h.b16 %v1303
      %v1370 = vunpack.c.l.b16 %v1304
      %v1371 = vunpack.c.h.b16 %v1304
      %v1372 = vunpack.c.l.b16 %v1305
      %v1373 = vunpack.c.h.b16 %v1305
      %v1374 = vunpack.c.l.b16 %v1306
      %v1375 = vunpack.c.h.b16 %v1306
      %v1376 = vunpack.c.l.b16 %v1307
      %v1377 = vunpack.c.h.b16 %v1307
      %v1378 = vunpack.c.l.b16 %v1308
      %v1379 = vunpack.c.h.b16 %v1308
      %v1380 = vunpack.c.l.b16 %v1309
      %v1381 = vunpack.c.h.b16 %v1309
      %v1382 = vunpack.c.l.b16 %v1310
      %v1383 = vunpack.c.h.b16 %v1310
      %v1384 = vunpack.c.l.b16 %v1311
      %v1385 = vunpack.c.h.b16 %v1311
      %v1386 = vunpack.c.l.b16 %v1312
      %v1387 = vunpack.c.h.b16 %v1312
      %v1388 = vunpack.c.l.b16 %v1313
      %v1389 = vunpack.c.h.b16 %v1313
      %v1390 = vunpack.c.l.b16 %v1314
      %v1391 = vunpack.c.h.b16 %v1314
      %v1392 = vunpack.c.l.b16 %v1315
      %v1393 = vunpack.c.h.b16 %v1315
      %v1394 = vunpack.c.l.b16 %v1316
      %v1395 = vunpack.c.h.b16 %v1316
      %v1396 = vunpack.c.l.b16 %v1317
      %v1397 = vunpack.c.h.b16 %v1317
      %v1398 = vunpack.c.l.b16 %v1318
      %v1399 = vunpack.c.h.b16 %v1318
      %v1400 = vunpack.c.l.b16 %v1319
      %v1401 = vunpack.c.h.b16 %v1319
      %v1402 = vunpack.c.l.b16 %v1320
      %v1403 = vunpack.c.h.b16 %v1320
      %v1404 = vunpack.c.l.b16 %v1321
      %v1405 = vunpack.c.h.b16 %v1321
      %v1406 = vunpack.c.l.b16 %v1322
      %v1407 = vunpack.c.h.b16 %v1322
      %v1408 = vunpack.c.l.b16 %v1323
      %v1409 = vunpack.c.h.b16 %v1323
      %v1410 = vunpack.c.l.b16 %v1324
      %v1411 = vunpack.c.h.b16 %v1324
      %v1412 = vunpack.c.l.b16 %v1325
      %v1413 = vunpack.c.h.b16 %v1325
      %v1414 = vunpack.c.l.b16 %v1326
      %v1415 = vunpack.c.h.b16 %v1326
      %v1416 = vunpack.c.l.b16 %v1327
      %v1417 = vunpack.c.h.b16 %v1327
      %v1418 = vunpack.c.l.b16 %v1328
      %v1419 = vunpack.c.h.b16 %v1328
      %v1420 = vunpack.c.l.b16 %v1329
      %v1421 = vunpack.c.h.b16 %v1329
      %v1422 = vunpack.c.l.b16 %v1330
      %v1423 = vunpack.c.h.b16 %v1330
      %v1424 = vunpack.c.l.b16 %v1331
      %v1425 = vunpack.c.h.b16 %v1331
      %v1426 = vunpack.c.l.b16 %v1332
      %v1427 = vunpack.c.h.b16 %v1332
      %v1428 = vunpack.c.l.b16 %v1333
      %v1429 = vunpack.c.h.b16 %v1333
      %v1430 = vpack.c.b16 %v1370, %v1366
      %v1431 = vpack.c.b16 %v1371, %v1367
      %v1432 = vpack.c.b16 %v1372, %v1368
      %v1433 = vpack.c.b16 %v1373, %v1369
      %v1434 = vpack.c.b16 %v1378, %v1374
      %v1435 = vpack.c.b16 %v1379, %v1375
      %v1436 = vpack.c.b16 %v1380, %v1376
      %v1437 = vpack.c.b16 %v1381, %v1377
      %v1438 = vpack.c.b16 %v1386, %v1382
      %v1439 = vpack.c.b16 %v1387, %v1383
      %v1440 = vpack.c.b16 %v1388, %v1384
      %v1441 = vpack.c.b16 %v1389, %v1385
      %v1442 = vpack.c.b16 %v1394, %v1390
      %v1443 = vpack.c.b16 %v1395, %v1391
      %v1444 = vpack.c.b16 %v1396, %v1392
      %v1445 = vpack.c.b16 %v1397, %v1393
      %v1446 = vpack.c.b16 %v1402, %v1398
      %v1447 = vpack.c.b16 %v1403, %v1399
      %v1448 = vpack.c.b16 %v1404, %v1400
      %v1449 = vpack.c.b16 %v1405, %v1401
      %v1450 = vpack.c.b16 %v1410, %v1406
      %v1451 = vpack.c.b16 %v1411, %v1407
      %v1452 = vpack.c.b16 %v1412, %v1408
      %v1453 = vpack.c.b16 %v1413, %v1409
      %v1454 = vpack.c.b16 %v1418, %v1414
      %v1455 = vpack.c.b16 %v1419, %v1415
      %v1456 = vpack.c.b16 %v1420, %v1416
      %v1457 = vpack.c.b16 %v1421, %v1417
      %v1458 = vpack.c.b16 %v1426, %v1422
      %v1459 = vpack.c.b16 %v1427, %v1423
      %v1460 = vpack.c.b16 %v1428, %v1424
      %v1461 = vpack.c.b16 %v1429, %v1425
      %1494 = vmatpush.bf16.msra.mxu0 %v1458
      %1495 = vmatpush.bf16.msra.mxu0 %v1454
      %1496 = vmatpush.bf16.msra.mxu0 %v1450
      %1497 = vmatpush.bf16.msra.mxu0 %v1446
      %1498 = vmatpush.bf16.msra.mxu0 %v1442
      %1499 = vmatpush.bf16.msra.mxu0 %v1438
      %1500 = vmatpush.bf16.msra.mxu0 %v1434
      %1501 = vmatpush.bf16.msra.mxu0 %v1430
      %1502 = vmatmul.bf16.gmra.mxu0 %v1290
      %v1503 = vpop.f32.mrf.mxu0
      %v1504 = vadd.f32 0.0, %v1503
      %v1505 = vpop.f32.mrf.mxu0
      %1506 = vdwg.mxu0
      %1507 = vmatpush.bf16.msra.mxu0 %v1459
      %1508 = vmatpush.bf16.msra.mxu0 %v1455
      %1509 = vmatpush.bf16.msra.mxu0 %v1451
      %1510 = vmatpush.bf16.msra.mxu0 %v1447
      %1511 = vmatpush.bf16.msra.mxu0 %v1443
      %1512 = vmatpush.bf16.msra.mxu0 %v1439
      %1513 = vmatpush.bf16.msra.mxu0 %v1435
      %1514 = vmatpush.bf16.msra.mxu0 %v1431
      %1515 = vmatmul.bf16.gmra.mxu0 %v1290
      %v1516 = vpop.f32.mrf.mxu0
      %v1517 = vadd.f32 0.0, %v1516
      %v1518 = vpop.f32.mrf.mxu0
      %1519 = vdwg.mxu0
      %1520 = vmatpush.bf16.msra.mxu0 %v1460
      %1521 = vmatpush.bf16.msra.mxu0 %v1456
      %1522 = vmatpush.bf16.msra.mxu0 %v1452
      %1523 = vmatpush.bf16.msra.mxu0 %v1448
      %1524 = vmatpush.bf16.msra.mxu0 %v1444
      %1525 = vmatpush.bf16.msra.mxu0 %v1440
      %1526 = vmatpush.bf16.msra.mxu0 %v1436
      %1527 = vmatpush.bf16.msra.mxu0 %v1432
      %1528 = vmatmul.bf16.gmra.mxu0 %v1290
      %v1529 = vpop.f32.mrf.mxu0
      %v1530 = vadd.f32 0.0, %v1529
      %v1531 = vpop.f32.mrf.mxu0
      %1532 = vdwg.mxu0
      %1533 = vmatpush.bf16.msra.mxu0 %v1461
      %1534 = vmatpush.bf16.msra.mxu0 %v1457
      %1535 = vmatpush.bf16.msra.mxu0 %v1453
      %1536 = vmatpush.bf16.msra.mxu0 %v1449
      %1537 = vmatpush.bf16.msra.mxu0 %v1445
      %1538 = vmatpush.bf16.msra.mxu0 %v1441
      %1539 = vmatpush.bf16.msra.mxu0 %v1437
      %1540 = vmatpush.bf16.msra.mxu0 %v1433
      %1541 = vmatmul.bf16.gmra.mxu0 %v1290
      %v1542 = vpop.f32.mrf.mxu0
      %v1543 = vadd.f32 0.0, %v1542
      %v1544 = vpop.f32.mrf.mxu0
      %1545 = vdwg.mxu0
      %v1546 = vadd.f32 %v1298, %v1504
      %v1547 = vadd.f32 %v1299, %v1517
      %v1548 = vadd.f32 %v1300, %v1530
      %v1549 = vadd.f32 %v1301, %v1543
      %v1550 = vxor.u32 %v1546, 2147483648
      %v1551 = vxor.u32 %v1547, 2147483648
      %v1552 = vxor.u32 %v1548, 2147483648
      %v1553 = vmul.f32 %v1550, 1.442695
      %v1554 = vpow.pop %v1553
      %v1555 = vmul.f32 %v1551, 1.442695
      %v1556 = vpow.pop %v1555
      %v1557 = vmul.f32 %v1552, 1.442695
      %v1558 = vpow.pop %v1557
      %v1559 = vadd.f32 %v1554, 1.0
      %v1560 = vadd.f32 %v1556, 1.0
      %v1561 = vadd.f32 %v1558, 1.0
      %v1562 = vrcp.pop %v1559
      %v1563 = vmul.f32 %v1559, %v1562
      %v1564 = vsub.f32 1.0, %v1563
      %v1565 = vmul.f32 %v1562, %v1564
      %v1566 = vadd.f32 %v1562, %v1565
      %vm1567 = vweird.f32 %v1559
      %vm1568 = vweird.f32 %v1562
      %vm1569 = vmor %vm1567, %vm1568
      %v1570 = vsel %vm1569, %v1562, %v1566
      %v1571 = vand.u32 2147483647, %v1559
      %vm1572 = vcmp.eq.f32.partialorder %v1571, 8.507059e+37
      %v1573 = vand.u32 %v1559, 2147483648
      %v1574 = vor.u32 1.1754944e-38, %v1573
      %v1575 = vsel %vm1572, %v1574, %v1570
      %v1576 = vmul.f32 1.0, %v1575
      %v1577 = vrcp.pop %v1560
      %v1578 = vmul.f32 %v1560, %v1577
      %v1579 = vsub.f32 1.0, %v1578
      %v1580 = vmul.f32 %v1577, %v1579
      %v1581 = vadd.f32 %v1577, %v1580
      %vm1582 = vweird.f32 %v1560
      %vm1583 = vweird.f32 %v1577
      %vm1584 = vmor %vm1582, %vm1583
      %v1585 = vsel %vm1584, %v1577, %v1581
      %v1586 = vand.u32 2147483647, %v1560
      %vm1587 = vcmp.eq.f32.partialorder %v1586, 8.507059e+37
      %v1588 = vand.u32 %v1560, 2147483648
      %v1589 = vor.u32 1.1754944e-38, %v1588
      %v1590 = vsel %vm1587, %v1589, %v1585
      %v1591 = vmul.f32 1.0, %v1590
      %v1592 = vrcp.pop %v1561
      %v1593 = vmul.f32 %v1561, %v1592
      %v1594 = vsub.f32 1.0, %v1593
      %v1595 = vmul.f32 %v1592, %v1594
      %v1596 = vadd.f32 %v1592, %v1595
      %vm1597 = vweird.f32 %v1561
      %vm1598 = vweird.f32 %v1592
      %vm1599 = vmor %vm1597, %vm1598
      %v1600 = vsel %vm1599, %v1592, %v1596
      %v1601 = vand.u32 2147483647, %v1561
      %vm1602 = vcmp.eq.f32.partialorder %v1601, 8.507059e+37
      %v1603 = vand.u32 %v1561, 2147483648
      %v1604 = vor.u32 1.1754944e-38, %v1603
      %v1605 = vsel %vm1602, %v1604, %v1600
      %v1606 = vmul.f32 1.0, %v1605
      %v1607 = vtanh.pop %v1549
      %v1608 = vmul.f32 %v1591, %v1287
      %v1609 = vmul.f32 %v1576, %v1607
      %v1610 = vadd.f32 %v1608, %v1609
      %v1611 = vtanh.pop %v1610
      %v1612 = vmul.f32 %v1606, %v1611
      %v1613 = vpack.c.bf16 %v1612, %v1612
      %s1614 = smul.addr %s1294, 4
      %s1615 = scalar_lea.vmem [#allocation5], %s1614
      %1616 = vst [vmem:[%s1615] sm:$0xf] %v1613
    $region54: #{tpu_custom_call.1} parent=1 // loop_footer
      %s321 = sadd.s32 1, %s317
    $region55: #{tpu_custom_call.1} parent=1 // loop_footer_branch
      %316 = sbr.rel target = $region51
    $region56: #{tpu_custom_call.1} parent=1 // loop_exit
      _
    %1617 = vst [vmem:[#allocation2] sm:$0xff] %v322
    %1618 = vst [vmem:[#allocation3] sm:$0xff] %v323
    %v1619 = vld [vmem:[#allocation5] sm:$0xf]
    %v1620 = vld [vmem:[#allocation5 + $0x4] sm:$0xf]
    %v1621 = vld [vmem:[#allocation5 + $0x8] sm:$0xf]
    %v1622 = vld [vmem:[#allocation5 + $0xc] sm:$0xf]
    %v1623 = vld [vmem:[#allocation5 + $0x10] sm:$0xf]
    %v1624 = vld [vmem:[#allocation5 + $0x14] sm:$0xf]
    %v1625 = vld [vmem:[#allocation5 + $0x18] sm:$0xf]
    %v1626 = vld [vmem:[#allocation5 + $0x1c] sm:$0xf]
    %v1627 = vld [vmem:[#allocation14] sm:$0xf]
    %v1628 = vld [vmem:[#allocation14 + $0x4] sm:$0xf]
    %v1629 = vld [vmem:[#allocation14 + $0x8] sm:$0xf]
    %v1630 = vld [vmem:[#allocation14 + $0xc] sm:$0xf]
    %v1631 = vld [vmem:[#allocation14 + $0x10] sm:$0xf]
    %v1632 = vld [vmem:[#allocation14 + $0x14] sm:$0xf]
    %v1633 = vld [vmem:[#allocation14 + $0x18] sm:$0xf]
    %v1634 = vld [vmem:[#allocation14 + $0x1c] sm:$0xf]
    %v1635 = vld [vmem:[#allocation14 + $0x20] sm:$0xf]
    %v1636 = vld [vmem:[#allocation14 + $0x24] sm:$0xf]
    %v1637 = vld [vmem:[#allocation14 + $0x28] sm:$0xf]
    %v1638 = vld [vmem:[#allocation14 + $0x2c] sm:$0xf]
    %v1639 = vld [vmem:[#allocation14 + $0x30] sm:$0xf]
    %v1640 = vld [vmem:[#allocation14 + $0x34] sm:$0xf]
    %v1641 = vld [vmem:[#allocation14 + $0x38] sm:$0xf]
    %v1642 = vld [vmem:[#allocation14 + $0x3c] sm:$0xf]
    %v1643 = vld [vmem:[%s5] sm:$0x1]
    %v1645 = vperm.slane %v1643, 0
    %v1655 = vunpack.c.l.b16 %v1619
    %v1656 = vunpack.c.l.b16 %v1620
    %v1657 = vunpack.c.l.b16 %v1621
    %v1658 = vunpack.c.l.b16 %v1622
    %v1659 = vunpack.c.l.b16 %v1623
    %v1660 = vunpack.c.l.b16 %v1624
    %v1661 = vunpack.c.l.b16 %v1625
    %v1662 = vunpack.c.l.b16 %v1626
    %v1663 = vpack.c.b16 %v1656, %v1655
    %v1664 = vpack.c.b16 %v1658, %v1657
    %v1665 = vpack.c.b16 %v1660, %v1659
    %v1666 = vpack.c.b16 %v1662, %v1661
    %v1687 = vunpack.c.l.b16 %v1627
    %v1688 = vunpack.c.l.b16 %v1628
    %v1689 = vunpack.c.l.b16 %v1629
    %v1690 = vunpack.c.l.b16 %v1630
    %v1691 = vunpack.c.l.b16 %v1631
    %v1692 = vunpack.c.l.b16 %v1632
    %v1693 = vunpack.c.l.b16 %v1633
    %v1694 = vunpack.c.l.b16 %v1634
    %v1695 = vunpack.c.l.b16 %v1635
    %v1696 = vunpack.c.l.b16 %v1636
    %v1697 = vunpack.c.l.b16 %v1637
    %v1698 = vunpack.c.l.b16 %v1638
    %v1699 = vunpack.c.l.b16 %v1639
    %v1700 = vunpack.c.l.b16 %v1640
    %v1701 = vunpack.c.l.b16 %v1641
    %v1702 = vunpack.c.l.b16 %v1642
    %v1703 = vpack.c.b16 %v1688, %v1687
    %v1704 = vpack.c.b16 %v1690, %v1689
    %v1705 = vpack.c.b16 %v1692, %v1691
    %v1706 = vpack.c.b16 %v1694, %v1693
    %v1707 = vpack.c.b16 %v1696, %v1695
    %v1708 = vpack.c.b16 %v1698, %v1697
    %v1709 = vpack.c.b16 %v1700, %v1699
    %v1710 = vpack.c.b16 %v1702, %v1701
    %1719 = vmatpush.bf16.msra.mxu0 %v1710
    %1720 = vmatpush.bf16.msra.mxu0 %v1709
    %1721 = vmatpush.bf16.msra.mxu0 %v1708
    %1722 = vmatpush.bf16.msra.mxu0 %v1707
    %1723 = vmatpush.bf16.msra.mxu0 %v1706
    %1724 = vmatpush.bf16.msra.mxu0 %v1705
    %1725 = vmatpush.bf16.msra.mxu0 %v1704
    %1726 = vmatpush.bf16.msra.mxu0 %v1703
    %1727 = vmatmul.bf16.gmra.mxu0 %v1663
    %v1728 = vpop.f32.mrf.mxu0
    %v1729 = vadd.f32 %v1645, %v1728
    %v1730 = vpop.f32.mrf.mxu0
    %v1731 = vadd.f32 %v1645, %v1730
    %1732 = vmatmul.bf16.gmra.mxu0 %v1664
    %v1733 = vpop.f32.mrf.mxu0
    %v1734 = vadd.f32 %v1645, %v1733
    %v1735 = vpop.f32.mrf.mxu0
    %v1736 = vadd.f32 %v1645, %v1735
    %1737 = vmatmul.bf16.gmra.mxu0 %v1665
    %v1738 = vpop.f32.mrf.mxu0
    %v1739 = vadd.f32 %v1645, %v1738
    %v1740 = vpop.f32.mrf.mxu0
    %v1741 = vadd.f32 %v1645, %v1740
    %1742 = vmatmul.bf16.gmra.mxu0 %v1666
    %v1743 = vpop.f32.mrf.mxu0
    %v1744 = vadd.f32 %v1645, %v1743
    %v1745 = vpop.f32.mrf.mxu0
    %v1746 = vadd.f32 %v1645, %v1745
    %1747 = vdwg.mxu0
    %1748 = vst [vmem:[#allocation15] sm:$0xff] %v1729
    %1749 = vst [vmem:[#allocation15 + $0x8] sm:$0xff] %v1731
    %1750 = vst [vmem:[#allocation15 + $0x10] sm:$0xff] %v1734
    %1751 = vst [vmem:[#allocation15 + $0x18] sm:$0xff] %v1736
    %1752 = vst [vmem:[#allocation15 + $0x20] sm:$0xff] %v1739
    %1753 = vst [vmem:[#allocation15 + $0x28] sm:$0xff] %v1741
    %1754 = vst [vmem:[#allocation15 + $0x30] sm:$0xff] %v1744
    %1755 = vst [vmem:[#allocation15 + $0x38] sm:$0xff] %v1746
    // Predicated region
    $region57: #{tpu_custom_call.1} parent=1 // pred_check
      _
    $region58: #{tpu_custom_call.1} parent=1 // pred_check_branch
      %1757 = sbr.rel (0) target = $region60
    $region59: #{tpu_custom_call.1} parent=1 // pred_region
      %1759 = vsyncadd [#allocation8], 0
      %s1760 = sshll.u32 [#allocation15], 4
      %s1761 = int_to_ptr.vmem [resolvable:$true] %s1760
      %s1762 = sshll.u32 %s6, 4
      %s1763 = int_to_ptr.hbm [resolvable:$true] %s1762
      %1768 = dma.vmem_to_hbm [thread:$0]  %s1761, 1024, %s1763, [#allocation8], 128, 128, 8
    $region60: #{tpu_custom_call.1} parent=1 // pred_fallthru
      _
    // Predicated region
    $region61: #{tpu_custom_call.1} parent=1 // pred_check
      _
    $region62: #{tpu_custom_call.1} parent=1 // pred_check_branch
      %1770 = sbr.rel (0) target = $region64
    $region63: #{tpu_custom_call.1} parent=1 // pred_region
      %1772 = dma.done [#allocation8], 1024
    $region64: #{tpu_custom_call.1} parent=1 // pred_fallthru
      _
    %1773 = vsyncpa [#allocation7], 1
    %1774 = vsyncpa [#allocation10], 1
    %1775 = vsyncpa [#allocation13], 1
    %1776 = vsyncpa [#allocation8], 1

// kernel: tpu_custom_call.1
$region0: #{tpu_custom_call.1}
  #allocation0 [shape = 'u32[]', space=smem, size = 0x4, offset = 0x4, fixed_abs, tag = 'smem constant byte address 0x4 - core index']
  #allocation1 [shape = 'u32[72,128]{1,0:T(1,128)}', space=vmem, size = 0x9000, scoped, tag = 'internal scratch']
  #allocation2 [shape = 'f32[8,128]{1,0:T(8,128)}', space=vmem, size = 0x1000, scoped, tag = 'scratch operand']
  #allocation3 [shape = 'f32[8,128]{1,0:T(8,128)}', space=vmem, size = 0x1000, scoped, tag = 'scratch operand']
  #allocation4 [shape = 'f32[8,8,512]{2,1,0:T(8,128)}', space=vmem, size = 0x20000, scoped, tag = 'scratch operand']
  #allocation5 [shape = 'bf16[8,8,128]{2,1,0:T(8,128)(2,1)}', space=vmem, size = 0x4000, scoped, tag = 'scratch operand']
  %s0 = inlined_call_operand.hbm [shape: f32[8,8,16], index: 0, kind: input, shape index: {}]
  %s1 = inlined_call_operand.hbm [shape: bf16[16,512], index: 1, kind: input, shape index: {}]
  %s2 = inlined_call_operand.hbm [shape: bf16[128,512], index: 2, kind: input, shape index: {}]
  %s3 = inlined_call_operand.hbm [shape: f32[1,512], index: 3, kind: input, shape index: {}]
  %s4 = inlined_call_operand.hbm [shape: bf16[128,128], index: 4, kind: input, shape index: {}]
  %s5 = inlined_call_operand.vmem [shape: f32[1,128], index: 5, kind: input, shape index: {}]
  %s6 = inlined_call_operand.hbm [shape: f32[8,8,128], index: 6, kind: output, shape index: {}]
  %s7 = sld [smem:[#allocation0]]
  $region65: #{tpu_custom_call.1} parent=0
    _
  %s9 = ssub.s32 1, %s7
  %s10 = scalar_select 0, %s9, %s7
  $region1: #{tpu_custom_call.1} parent=0
    #allocation6 [shape = 'u8[32768]{0}', space=vmem, size = 0x8000, scoped, tag = 'input window, operand 0, single buffered']
    #allocation7 [shape = 's32[1]{0}', space=sflag, size = 0x4, scoped, tag = 'scoped memory for tpu_custom_call.1']
    #allocation8 [shape = 's32[1]{0}', space=sflag, size = 0x4, scoped, tag = 'scoped memory for tpu_custom_call.1']
    #allocation9 [shape = 'u8[16384]{0}', space=vmem, size = 0x4000, scoped, tag = 'input window, operand 1, single buffered']
    #allocation10 [shape = 's32[1]{0}', space=sflag, size = 0x4, scoped, tag = 'scoped memory for tpu_custom_call.1']
    #allocation11 [shape = 'u8[131072]{0}', space=vmem, size = 0x20000, scoped, tag = 'input window, operand 2, single buffered']
    #allocation12 [shape = 'u8[2048]{0}', space=vmem, size = 0x800, scoped, tag = 'input window, operand 3, single buffered']
    #allocation13 [shape = 's32[1]{0}', space=sflag, size = 0x4, scoped, tag = 'scoped memory for tpu_custom_call.1']
    #allocation14 [shape = 'u8[32768]{0}', space=vmem, size = 0x8000, scoped, tag = 'input window, operand 4, single buffered']
    #allocation15 [shape = 'u8[32768]{0}', space=vmem, size = 0x8000, scoped, tag = 'output window, operand 0, single buffered']
    %11 = vsyncpa [#allocation7], 0
    %12 = vsyncpa [#allocation10], 0
    %13 = vsyncpa [#allocation13], 0
    %14 = vsyncpa [#allocation8], 0
    // Predicated region
    $region2: #{tpu_custom_call.1} parent=1 // pred_check
      _
    $region3: #{tpu_custom_call.1} parent=1 // pred_check_branch
      %16 = sbr.rel (0) target = $region5
    $region4: #{tpu_custom_call.1} parent=1 // pred_region
      %18 = vsyncadd [#allocation7], 0
      %s19 = sshll.u32 %s0, 4
      %s20 = int_to_ptr.hbm [resolvable:$true] %s19
      %s21 = sshll.u32 [#allocation6], 4
      %s22 = int_to_ptr.vmem [resolvable:$true] %s21
      %27 = dma.hbm_to_vmem [thread:$0]  %s20, 1024, %s22, [#allocation7], 128, 128, 8
    $region5: #{tpu_custom_call.1} parent=1 // pred_fallthru
      _
    // Predicated region
    $region6: #{tpu_custom_call.1} parent=1 // pred_check
      _
    $region7: #{tpu_custom_call.1} parent=1 // pred_check_branch
      %29 = sbr.rel (0) target = $region9
    $region8: #{tpu_custom_call.1} parent=1 // pred_region
      %31 = vsyncadd [#allocation10], 0
      %s32 = sshll.u32 %s1, 4
      %s33 = int_to_ptr.hbm [resolvable:$true] %s32
      %s34 = sshll.u32 [#allocation9], 4
      %s35 = int_to_ptr.vmem [resolvable:$true] %s34
      %40 = dma.hbm_to_vmem [thread:$0]  %s33, 512, %s35, [#allocation10], 256, 256, 16
    $region9: #{tpu_custom_call.1} parent=1 // pred_fallthru
      _
    // Predicated region
    $region10: #{tpu_custom_call.1} parent=1 // pred_check
      _
    $region11: #{tpu_custom_call.1} parent=1 // pred_check_branch
      %42 = sbr.rel (0) target = $region13
    $region12: #{tpu_custom_call.1} parent=1 // pred_region
      %44 = vsyncadd [#allocation10], 0
      %s45 = sshll.u32 %s2, 4
      %s46 = int_to_ptr.hbm [resolvable:$true] %s45
      %s47 = sshll.u32 [#allocation11], 4
      %s48 = int_to_ptr.vmem [resolvable:$true] %s47
      %53 = dma.hbm_to_vmem [thread:$0]  %s46, 4096, %s48, [#allocation10], 256, 256, 16
    $region13: #{tpu_custom_call.1} parent=1 // pred_fallthru
      _
    // Predicated region
    $region14: #{tpu_custom_call.1} parent=1 // pred_check
      _
    $region15: #{tpu_custom_call.1} parent=1 // pred_check_branch
      %55 = sbr.rel (0) target = $region17
    $region16: #{tpu_custom_call.1} parent=1 // pred_region
      %57 = vsyncadd [#allocation13], 0
      %s59 = sshll.u32 %s3, 4
      %s60 = int_to_ptr.hbm [resolvable:$true] %s59
      %s61 = sshll.u32 [#allocation12], 4
      %s62 = int_to_ptr.vmem [resolvable:$true] %s61
      %64 = dma.hbm_to_vmem [thread:$0]  %s60, 64, %s62, [#allocation13]
    $region17: #{tpu_custom_call.1} parent=1 // pred_fallthru
      _
    // Predicated region
    $region18: #{tpu_custom_call.1} parent=1 // pred_check
      _
    $region19: #{tpu_custom_call.1} parent=1 // pred_check_branch
      %66 = sbr.rel (0) target = $region21
    $region20: #{tpu_custom_call.1} parent=1 // pred_region
      %68 = vsyncadd [#allocation13], 0
      %s69 = sshll.u32 %s4, 4
      %s70 = int_to_ptr.hbm [resolvable:$true] %s69
      %s71 = sshll.u32 [#allocation14], 4
      %s72 = int_to_ptr.vmem [resolvable:$true] %s71
      %77 = dma.hbm_to_vmem [thread:$0]  %s70, 1024, %s72, [#allocation13], 64, 64, 4
    $region21: #{tpu_custom_call.1} parent=1 // pred_fallthru
      _
    // Predicated region
    $region22: #{tpu_custom_call.1} parent=1 // pred_check
      _
    $region23: #{tpu_custom_call.1} parent=1 // pred_check_branch
      %79 = sbr.rel (0) target = $region25
    $region24: #{tpu_custom_call.1} parent=1 // pred_region
      _
    $region25: #{tpu_custom_call.1} parent=1 // pred_fallthru
      _
    // Predicated region
    $region26: #{tpu_custom_call.1} parent=1 // pred_check
      _
    $region27: #{tpu_custom_call.1} parent=1 // pred_check_branch
      %81 = sbr.rel (0) target = $region29
    $region28: #{tpu_custom_call.1} parent=1 // pred_region
      %83 = dma.done [#allocation7], 1024
    $region29: #{tpu_custom_call.1} parent=1 // pred_fallthru
      _
    // Predicated region
    $region30: #{tpu_custom_call.1} parent=1 // pred_check
      _
    $region31: #{tpu_custom_call.1} parent=1 // pred_check_branch
      %85 = sbr.rel (0) target = $region33
    $region32: #{tpu_custom_call.1} parent=1 // pred_region
      %87 = dma.done [#allocation10], 512
    $region33: #{tpu_custom_call.1} parent=1 // pred_fallthru
      _
    // Predicated region
    $region34: #{tpu_custom_call.1} parent=1 // pred_check
      _
    $region35: #{tpu_custom_call.1} parent=1 // pred_check_branch
      %89 = sbr.rel (0) target = $region37
    $region36: #{tpu_custom_call.1} parent=1 // pred_region
      %91 = dma.done [#allocation10], 4096
    $region37: #{tpu_custom_call.1} parent=1 // pred_fallthru
      _
    // Predicated region
    $region38: #{tpu_custom_call.1} parent=1 // pred_check
      _
    $region39: #{tpu_custom_call.1} parent=1 // pred_check_branch
      %93 = sbr.rel (0) target = $region41
    $region40: #{tpu_custom_call.1} parent=1 // pred_region
      %95 = dma.done [#allocation13], 64
    $region41: #{tpu_custom_call.1} parent=1 // pred_fallthru
      _
    // Predicated region
    $region42: #{tpu_custom_call.1} parent=1 // pred_check
      _
    $region43: #{tpu_custom_call.1} parent=1 // pred_check_branch
      %97 = sbr.rel (0) target = $region45
    $region44: #{tpu_custom_call.1} parent=1 // pred_region
      %99 = dma.done [#allocation13], 1024
    $region45: #{tpu_custom_call.1} parent=1 // pred_fallthru
      _
    %p101 = scmp.eq.s32.totalorder 0, 0
    // Predicated region
    $region46: #{tpu_custom_call.1} parent=1 // pred_check
      %p102 = pneg %p101
    $region47: #{tpu_custom_call.1} parent=1 // pred_check_branch
      %104 = sbr.rel (%p102) target = $region49
    $region48: #{tpu_custom_call.1} parent=1 // pred_region
      %105 = vst [vmem:[#allocation2] sm:$0xff] 0.0
      %106 = vst [vmem:[#allocation3] sm:$0xff] 0.0
    $region49: #{tpu_custom_call.1} parent=1 // pred_fallthru
      _
    %v107 = vld [vmem:[#allocation6] sm:$0xff]
    %v108 = vld [vmem:[#allocation6 + $0x8] sm:$0xff]
    %v109 = vld [vmem:[#allocation6 + $0x10] sm:$0xff]
    %v110 = vld [vmem:[#allocation6 + $0x18] sm:$0xff]
    %v111 = vld [vmem:[#allocation6 + $0x20] sm:$0xff]
    %v112 = vld [vmem:[#allocation6 + $0x28] sm:$0xff]
    %v113 = vld [vmem:[#allocation6 + $0x30] sm:$0xff]
    %v114 = vld [vmem:[#allocation6 + $0x38] sm:$0xff]
    %v115 = vpack.c.bf16 %v108, %v107
    %v116 = vpack.c.bf16 %v110, %v109
    %v117 = vpack.c.bf16 %v112, %v111
    %v118 = vpack.c.bf16 %v114, %v113
    %v119 = vld [vmem:[#allocation9] sm:$0xff]
    %v120 = vld [vmem:[#allocation9 + $0x8] sm:$0xff]
    %v121 = vld [vmem:[#allocation9 + $0x10] sm:$0xff]
    %v122 = vld [vmem:[#allocation9 + $0x18] sm:$0xff]
    %v123 = vld [vmem:[#allocation12] sm:$0xf]
    %v125 = vperm.slane %v123, 0
    %v126 = vperm.slane %v123, 1
    %v127 = vperm.slane %v123, 2
    %v128 = vperm.slane %v123, 3
    %v137 = vunpack.c.l.b16 %v119
    %v138 = vunpack.c.h.b16 %v119
    %v139 = vunpack.c.l.b16 %v120
    %v140 = vunpack.c.h.b16 %v120
    %v141 = vunpack.c.l.b16 %v121
    %v142 = vunpack.c.h.b16 %v121
    %v143 = vunpack.c.l.b16 %v122
    %v144 = vunpack.c.h.b16 %v122
    %v145 = vpack.c.b16 %v141, %v137
    %v146 = vpack.c.b16 %v142, %v138
    %v147 = vpack.c.b16 %v143, %v139
    %v148 = vpack.c.b16 %v144, %v140
    %vm153 = vcmask 130048
    %v155 = vsel %vm153, %v115, 0
    %v158 = vsel %vm153, %v116, 0
    %v161 = vsel %vm153, %v117, 0
    %v164 = vsel %vm153, %v118, 0
    %166 = vmatpush.bf16.msra.mxu0 0
    %167 = vmatpush.bf16.msra.mxu0 0
    %168 = vmatpush.bf16.msra.mxu0 0
    %169 = vmatpush.bf16.msra.mxu0 0
    %170 = vmatpush.bf16.msra.mxu0 0
    %171 = vmatpush.bf16.msra.mxu0 0
    %172 = vmatpush.bf16.msra.mxu0 0
    %173 = vmatpush.bf16.msra.mxu0 %v145
    %174 = vmatmul.bf16.gmra.mxu0 %v155
    %v175 = vpop.f32.mrf.mxu0
    %v176 = vadd.f32 %v125, %v175
    %v177 = vpop.f32.mrf.mxu0
    %v178 = vadd.f32 %v125, %v177
    %179 = vmatmul.bf16.gmra.mxu0 %v158
    %v180 = vpop.f32.mrf.mxu0
    %v181 = vadd.f32 %v125, %v180
    %v182 = vpop.f32.mrf.mxu0
    %v183 = vadd.f32 %v125, %v182
    %184 = vmatmul.bf16.gmra.mxu0 %v161
    %v185 = vpop.f32.mrf.mxu0
    %v186 = vadd.f32 %v125, %v185
    %v187 = vpop.f32.mrf.mxu0
    %v188 = vadd.f32 %v125, %v187
    %189 = vmatmul.bf16.gmra.mxu0 %v164
    %v190 = vpop.f32.mrf.mxu0
    %v191 = vadd.f32 %v125, %v190
    %v192 = vpop.f32.mrf.mxu0
    %v193 = vadd.f32 %v125, %v192
    %194 = vdwg.mxu0
    %195 = vmatpush.bf16.msra.mxu0 0
    %196 = vmatpush.bf16.msra.mxu0 0
    %197 = vmatpush.bf16.msra.mxu0 0
    %198 = vmatpush.bf16.msra.mxu0 0
    %199 = vmatpush.bf16.msra.mxu0 0
    %200 = vmatpush.bf16.msra.mxu0 0
    %201 = vmatpush.bf16.msra.mxu0 0
    %202 = vmatpush.bf16.msra.mxu0 %v146
    %203 = vmatmul.bf16.gmra.mxu0 %v155
    %v204 = vpop.f32.mrf.mxu0
    %v205 = vadd.f32 %v126, %v204
    %v206 = vpop.f32.mrf.mxu0
    %v207 = vadd.f32 %v126, %v206
    %208 = vmatmul.bf16.gmra.mxu0 %v158
    %v209 = vpop.f32.mrf.mxu0
    %v210 = vadd.f32 %v126, %v209
    %v211 = vpop.f32.mrf.mxu0
    %v212 = vadd.f32 %v126, %v211
    %213 = vmatmul.bf16.gmra.mxu0 %v161
    %v214 = vpop.f32.mrf.mxu0
    %v215 = vadd.f32 %v126, %v214
    %v216 = vpop.f32.mrf.mxu0
    %v217 = vadd.f32 %v126, %v216
    %218 = vmatmul.bf16.gmra.mxu0 %v164
    %v219 = vpop.f32.mrf.mxu0
    %v220 = vadd.f32 %v126, %v219
    %v221 = vpop.f32.mrf.mxu0
    %v222 = vadd.f32 %v126, %v221
    %223 = vdwg.mxu0
    %224 = vmatpush.bf16.msra.mxu0 0
    %225 = vmatpush.bf16.msra.mxu0 0
    %226 = vmatpush.bf16.msra.mxu0 0
    %227 = vmatpush.bf16.msra.mxu0 0
    %228 = vmatpush.bf16.msra.mxu0 0
    %229 = vmatpush.bf16.msra.mxu0 0
    %230 = vmatpush.bf16.msra.mxu0 0
    %231 = vmatpush.bf16.msra.mxu0 %v147
    %232 = vmatmul.bf16.gmra.mxu0 %v155
    %v233 = vpop.f32.mrf.mxu0
    %v234 = vadd.f32 %v127, %v233
    %v235 = vpop.f32.mrf.mxu0
    %v236 = vadd.f32 %v127, %v235
    %237 = vmatmul.bf16.gmra.mxu0 %v158
    %v238 = vpop.f32.mrf.mxu0
    %v239 = vadd.f32 %v127, %v238
    %v240 = vpop.f32.mrf.mxu0
    %v241 = vadd.f32 %v127, %v240
    %242 = vmatmul.bf16.gmra.mxu0 %v161
    %v243 = vpop.f32.mrf.mxu0
    %v244 = vadd.f32 %v127, %v243
    %v245 = vpop.f32.mrf.mxu0
    %v246 = vadd.f32 %v127, %v245
    %247 = vmatmul.bf16.gmra.mxu0 %v164
    %v248 = vpop.f32.mrf.mxu0
    %v249 = vadd.f32 %v127, %v248
    %v250 = vpop.f32.mrf.mxu0
    %v251 = vadd.f32 %v127, %v250
    %252 = vdwg.mxu0
    %253 = vmatpush.bf16.msra.mxu0 0
    %254 = vmatpush.bf16.msra.mxu0 0
    %255 = vmatpush.bf16.msra.mxu0 0
    %256 = vmatpush.bf16.msra.mxu0 0
    %257 = vmatpush.bf16.msra.mxu0 0
    %258 = vmatpush.bf16.msra.mxu0 0
    %259 = vmatpush.bf16.msra.mxu0 0
    %260 = vmatpush.bf16.msra.mxu0 %v148
    %261 = vmatmul.bf16.gmra.mxu0 %v155
    %v262 = vpop.f32.mrf.mxu0
    %v263 = vadd.f32 %v128, %v262
    %v264 = vpop.f32.mrf.mxu0
    %v265 = vadd.f32 %v128, %v264
    %266 = vmatmul.bf16.gmra.mxu0 %v158
    %v267 = vpop.f32.mrf.mxu0
    %v268 = vadd.f32 %v128, %v267
    %v269 = vpop.f32.mrf.mxu0
    %v270 = vadd.f32 %v128, %v269
    %271 = vmatmul.bf16.gmra.mxu0 %v161
    %v272 = vpop.f32.mrf.mxu0
    %v273 = vadd.f32 %v128, %v272
    %v274 = vpop.f32.mrf.mxu0
    %v275 = vadd.f32 %v128, %v274
    %276 = vmatmul.bf16.gmra.mxu0 %v164
    %v277 = vpop.f32.mrf.mxu0
    %v278 = vadd.f32 %v128, %v277
    %v279 = vpop.f32.mrf.mxu0
    %v280 = vadd.f32 %v128, %v279
    %281 = vdwg.mxu0
    %282 = vst [vmem:[#allocation4] sm:$0xff] %v176
    %283 = vst [vmem:[#allocation4 + $0x8] sm:$0xff] %v205
    %284 = vst [vmem:[#allocation4 + $0x10] sm:$0xff] %v234
    %285 = vst [vmem:[#allocation4 + $0x18] sm:$0xff] %v263
    %286 = vst [vmem:[#allocation4 + $0x20] sm:$0xff] %v178
    %287 = vst [vmem:[#allocation4 + $0x28] sm:$0xff] %v207
    %288 = vst [vmem:[#allocation4 + $0x30] sm:$0xff] %v236
    %289 = vst [vmem:[#allocation4 + $0x38] sm:$0xff] %v265
    %290 = vst [vmem:[#allocation4 + $0x40] sm:$0xff] %v181
    %291 = vst [vmem:[#allocation4 + $0x48] sm:$0xff] %v210
    %292 = vst [vmem:[#allocation4 + $0x50] sm:$0xff] %v239
    %293 = vst [vmem:[#allocation4 + $0x58] sm:$0xff] %v268
    %294 = vst [vmem:[#allocation4 + $0x60] sm:$0xff] %v183
    %295 = vst [vmem:[#allocation4 + $0x68] sm:$0xff] %v212
    %296 = vst [vmem:[#allocation4 + $0x70] sm:$0xff] %v241
    %297 = vst [vmem:[#allocation4 + $0x78] sm:$0xff] %v270
    %298 = vst [vmem:[#allocation4 + $0x80] sm:$0xff] %v186
    %299 = vst [vmem:[#allocation4 + $0x88] sm:$0xff] %v215
    %300 = vst [vmem:[#allocation4 + $0x90] sm:$0xff] %v244
    %301 = vst [vmem:[#allocation4 + $0x98] sm:$0xff] %v273
    %302 = vst [vmem:[#allocation4 + $0xa0] sm:$0xff] %v188
    %303 = vst [vmem:[#allocation4 + $0xa8] sm:$0xff] %v217
    %304 = vst [vmem:[#allocation4 + $0xb0] sm:$0xff] %v246
    %305 = vst [vmem:[#allocation4 + $0xb8] sm:$0xff] %v275
    %306 = vst [vmem:[#allocation4 + $0xc0] sm:$0xff] %v191
    %307 = vst [vmem:[#allocation4 + $0xc8] sm:$0xff] %v220
    %308 = vst [vmem:[#allocation4 + $0xd0] sm:$0xff] %v249
    %309 = vst [vmem:[#allocation4 + $0xd8] sm:$0xff] %v278
    %310 = vst [vmem:[#allocation4 + $0xe0] sm:$0xff] %v193
    %311 = vst [vmem:[#allocation4 + $0xe8] sm:$0xff] %v222
    %312 = vst [vmem:[#allocation4 + $0xf0] sm:$0xff] %v251
    %313 = vst [vmem:[#allocation4 + $0xf8] sm:$0xff] %v280
    %v314 = vld [vmem:[#allocation2] sm:$0xff]
    %v315 = vld [vmem:[#allocation3] sm:$0xff]
    loop: start=0, step=1, limit=2
    $region50: #{tpu_custom_call.1} parent=1 // loop_pre_header
      _
    $region51: #{tpu_custom_call.1} parent=1 // loop_header
      %s317 = sphi 0, %s321
      %p318 = scmp.ge.s32.totalorder %s317, 2
      %v322 = vphi %v314, %v1612
      %v323 = vphi %v315, %v1610
    $region52: #{tpu_custom_call.1} parent=1 // loop_header_branch
      %320 = sbr.rel (%p318) target = $region56
    $region53: #{tpu_custom_call.1} parent=1 // loop_body
      %s324 = smul.u32 %s317, 4
      %s325 = smul.u32 %s324, 4
      %s326 = smul.addr %s325, 8
      %s327 = scalar_lea.vmem [#allocation4], %s326
      %v328 = vld [vmem:[%s327] sm:$0xff]
      %v329 = vld [vmem:[%s327 + $0x8] sm:$0xff]
      %v330 = vld [vmem:[%s327 + $0x10] sm:$0xff]
      %v331 = vld [vmem:[%s327 + $0x18] sm:$0xff]
      %v332 = vpack.c.bf16 %v322, %v322
      %v333 = vld [vmem:[#allocation11] sm:$0xff]
      %v334 = vld [vmem:[#allocation11 + $0x8] sm:$0xff]
      %v335 = vld [vmem:[#allocation11 + $0x10] sm:$0xff]
      %v336 = vld [vmem:[#allocation11 + $0x18] sm:$0xff]
      %v337 = vld [vmem:[#allocation11 + $0x20] sm:$0xff]
      %v338 = vld [vmem:[#allocation11 + $0x28] sm:$0xff]
      %v339 = vld [vmem:[#allocation11 + $0x30] sm:$0xff]
      %v340 = vld [vmem:[#allocation11 + $0x38] sm:$0xff]
      %v341 = vld [vmem:[#allocation11 + $0x40] sm:$0xff]
      %v342 = vld [vmem:[#allocation11 + $0x48] sm:$0xff]
      %v343 = vld [vmem:[#allocation11 + $0x50] sm:$0xff]
      %v344 = vld [vmem:[#allocation11 + $0x58] sm:$0xff]
      %v345 = vld [vmem:[#allocation11 + $0x60] sm:$0xff]
      %v346 = vld [vmem:[#allocation11 + $0x68] sm:$0xff]
      %v347 = vld [vmem:[#allocation11 + $0x70] sm:$0xff]
      %v348 = vld [vmem:[#allocation11 + $0x78] sm:$0xff]
      %v349 = vld [vmem:[#allocation11 + $0x80] sm:$0xff]
      %v350 = vld [vmem:[#allocation11 + $0x88] sm:$0xff]
      %v351 = vld [vmem:[#allocation11 + $0x90] sm:$0xff]
      %v352 = vld [vmem:[#allocation11 + $0x98] sm:$0xff]
      %v353 = vld [vmem:[#allocation11 + $0xa0] sm:$0xff]
      %v354 = vld [vmem:[#allocation11 + $0xa8] sm:$0xff]
      %v355 = vld [vmem:[#allocation11 + $0xb0] sm:$0xff]
      %v356 = vld [vmem:[#allocation11 + $0xb8] sm:$0xff]
      %v357 = vld [vmem:[#allocation11 + $0xc0] sm:$0xff]
      %v358 = vld [vmem:[#allocation11 + $0xc8] sm:$0xff]
      %v359 = vld [vmem:[#allocation11 + $0xd0] sm:$0xff]
      %v360 = vld [vmem:[#allocation11 + $0xd8] sm:$0xff]
      %v361 = vld [vmem:[#allocation11 + $0xe0] sm:$0xff]
      %v362 = vld [vmem:[#allocation11 + $0xe8] sm:$0xff]
      %v363 = vld [vmem:[#allocation11 + $0xf0] sm:$0xff]
      %v364 = vld [vmem:[#allocation11 + $0xf8] sm:$0xff]
      %v397 = vunpack.c.l.b16 %v333
      %v398 = vunpack.c.h.b16 %v333
      %v399 = vunpack.c.l.b16 %v334
      %v400 = vunpack.c.h.b16 %v334
      %v401 = vunpack.c.l.b16 %v335
      %v402 = vunpack.c.h.b16 %v335
      %v403 = vunpack.c.l.b16 %v336
      %v404 = vunpack.c.h.b16 %v336
      %v405 = vunpack.c.l.b16 %v337
      %v406 = vunpack.c.h.b16 %v337
      %v407 = vunpack.c.l.b16 %v338
      %v408 = vunpack.c.h.b16 %v338
      %v409 = vunpack.c.l.b16 %v339
      %v410 = vunpack.c.h.b16 %v339
      %v411 = vunpack.c.l.b16 %v340
      %v412 = vunpack.c.h.b16 %v340
      %v413 = vunpack.c.l.b16 %v341
      %v414 = vunpack.c.h.b16 %v341
      %v415 = vunpack.c.l.b16 %v342
      %v416 = vunpack.c.h.b16 %v342
      %v417 = vunpack.c.l.b16 %v343
      %v418 = vunpack.c.h.b16 %v343
      %v419 = vunpack.c.l.b16 %v344
      %v420 = vunpack.c.h.b16 %v344
      %v421 = vunpack.c.l.b16 %v345
      %v422 = vunpack.c.h.b16 %v345
      %v423 = vunpack.c.l.b16 %v346
      %v424 = vunpack.c.h.b16 %v346
      %v425 = vunpack.c.l.b16 %v347
      %v426 = vunpack.c.h.b16 %v347
      %v427 = vunpack.c.l.b16 %v348
      %v428 = vunpack.c.h.b16 %v348
      %v429 = vunpack.c.l.b16 %v349
      %v430 = vunpack.c.h.b16 %v349
      %v431 = vunpack.c.l.b16 %v350
      %v432 = vunpack.c.h.b16 %v350
      %v433 = vunpack.c.l.b16 %v351
      %v434 = vunpack.c.h.b16 %v351
      %v435 = vunpack.c.l.b16 %v352
      %v436 = vunpack.c.h.b16 %v352
      %v437 = vunpack.c.l.b16 %v353
      %v438 = vunpack.c.h.b16 %v353
      %v439 = vunpack.c.l.b16 %v354
      %v440 = vunpack.c.h.b16 %v354
      %v441 = vunpack.c.l.b16 %v355
      %v442 = vunpack.c.h.b16 %v355
      %v443 = vunpack.c.l.b16 %v356
      %v444 = vunpack.c.h.b16 %v356
      %v445 = vunpack.c.l.b16 %v357
      %v446 = vunpack.c.h.b16 %v357
      %v447 = vunpack.c.l.b16 %v358
      %v448 = vunpack.c.h.b16 %v358
      %v449 = vunpack.c.l.b16 %v359
      %v450 = vunpack.c.h.b16 %v359
      %v451 = vunpack.c.l.b16 %v360
      %v452 = vunpack.c.h.b16 %v360
      %v453 = vunpack.c.l.b16 %v361
      %v454 = vunpack.c.h.b16 %v361
      %v455 = vunpack.c.l.b16 %v362
      %v456 = vunpack.c.h.b16 %v362
      %v457 = vunpack.c.l.b16 %v363
      %v458 = vunpack.c.h.b16 %v363
      %v459 = vunpack.c.l.b16 %v364
      %v460 = vunpack.c.h.b16 %v364
      %v461 = vpack.c.b16 %v401, %v397
      %v462 = vpack.c.b16 %v402, %v398
      %v463 = vpack.c.b16 %v403, %v399
      %v464 = vpack.c.b16 %v404, %v400
      %v465 = vpack.c.b16 %v409, %v405
      %v466 = vpack.c.b16 %v410, %v406
      %v467 = vpack.c.b16 %v411, %v407
      %v468 = vpack.c.b16 %v412, %v408
      %v469 = vpack.c.b16 %v417, %v413
      %v470 = vpack.c.b16 %v418, %v414
      %v471 = vpack.c.b16 %v419, %v415
      %v472 = vpack.c.b16 %v420, %v416
      %v473 = vpack.c.b16 %v425, %v421
      %v474 = vpack.c.b16 %v426, %v422
      %v475 = vpack.c.b16 %v427, %v423
      %v476 = vpack.c.b16 %v428, %v424
      %v477 = vpack.c.b16 %v433, %v429
      %v478 = vpack.c.b16 %v434, %v430
      %v479 = vpack.c.b16 %v435, %v431
      %v480 = vpack.c.b16 %v436, %v432
      %v481 = vpack.c.b16 %v441, %v437
      %v482 = vpack.c.b16 %v442, %v438
      %v483 = vpack.c.b16 %v443, %v439
      %v484 = vpack.c.b16 %v444, %v440
      %v485 = vpack.c.b16 %v449, %v445
      %v486 = vpack.c.b16 %v450, %v446
      %v487 = vpack.c.b16 %v451, %v447
      %v488 = vpack.c.b16 %v452, %v448
      %v489 = vpack.c.b16 %v457, %v453
      %v490 = vpack.c.b16 %v458, %v454
      %v491 = vpack.c.b16 %v459, %v455
      %v492 = vpack.c.b16 %v460, %v456
      %525 = vmatpush.bf16.msra.mxu0 %v489
      %526 = vmatpush.bf16.msra.mxu0 %v485
      %527 = vmatpush.bf16.msra.mxu0 %v481
      %528 = vmatpush.bf16.msra.mxu0 %v477
      %529 = vmatpush.bf16.msra.mxu0 %v473
      %530 = vmatpush.bf16.msra.mxu0 %v469
      %531 = vmatpush.bf16.msra.mxu0 %v465
      %532 = vmatpush.bf16.msra.mxu0 %v461
      %533 = vmatmul.bf16.gmra.mxu0 %v332
      %v534 = vpop.f32.mrf.mxu0
      %v535 = vadd.f32 0.0, %v534
      %v536 = vpop.f32.mrf.mxu0
      %537 = vdwg.mxu0
      %538 = vmatpush.bf16.msra.mxu0 %v490
      %539 = vmatpush.bf16.msra.mxu0 %v486
      %540 = vmatpush.bf16.msra.mxu0 %v482
      %541 = vmatpush.bf16.msra.mxu0 %v478
      %542 = vmatpush.bf16.msra.mxu0 %v474
      %543 = vmatpush.bf16.msra.mxu0 %v470
      %544 = vmatpush.bf16.msra.mxu0 %v466
      %545 = vmatpush.bf16.msra.mxu0 %v462
      %546 = vmatmul.bf16.gmra.mxu0 %v332
      %v547 = vpop.f32.mrf.mxu0
      %v548 = vadd.f32 0.0, %v547
      %v549 = vpop.f32.mrf.mxu0
      %550 = vdwg.mxu0
      %551 = vmatpush.bf16.msra.mxu0 %v491
      %552 = vmatpush.bf16.msra.mxu0 %v487
      %553 = vmatpush.bf16.msra.mxu0 %v483
      %554 = vmatpush.bf16.msra.mxu0 %v479
      %555 = vmatpush.bf16.msra.mxu0 %v475
      %556 = vmatpush.bf16.msra.mxu0 %v471
      %557 = vmatpush.bf16.msra.mxu0 %v467
      %558 = vmatpush.bf16.msra.mxu0 %v463
      %559 = vmatmul.bf16.gmra.mxu0 %v332
      %v560 = vpop.f32.mrf.mxu0
      %v561 = vadd.f32 0.0, %v560
      %v562 = vpop.f32.mrf.mxu0
      %563 = vdwg.mxu0
      %564 = vmatpush.bf16.msra.mxu0 %v492
      %565 = vmatpush.bf16.msra.mxu0 %v488
      %566 = vmatpush.bf16.msra.mxu0 %v484
      %567 = vmatpush.bf16.msra.mxu0 %v480
      %568 = vmatpush.bf16.msra.mxu0 %v476
      %569 = vmatpush.bf16.msra.mxu0 %v472
      %570 = vmatpush.bf16.msra.mxu0 %v468
      %571 = vmatpush.bf16.msra.mxu0 %v464
      %572 = vmatmul.bf16.gmra.mxu0 %v332
      %v573 = vpop.f32.mrf.mxu0
      %v574 = vadd.f32 0.0, %v573
      %v575 = vpop.f32.mrf.mxu0
      %576 = vdwg.mxu0
      %v577 = vadd.f32 %v328, %v535
      %v578 = vadd.f32 %v329, %v548
      %v579 = vadd.f32 %v330, %v561
      %v580 = vadd.f32 %v331, %v574
      %v581 = vxor.u32 %v577, 2147483648
      %v582 = vxor.u32 %v578, 2147483648
      %v583 = vxor.u32 %v579, 2147483648
      %v584 = vmul.f32 %v581, 1.442695
      %v585 = vpow.pop %v584
      %v586 = vmul.f32 %v582, 1.442695
      %v587 = vpow.pop %v586
      %v588 = vmul.f32 %v583, 1.442695
      %v589 = vpow.pop %v588
      %v590 = vadd.f32 %v585, 1.0
      %v591 = vadd.f32 %v587, 1.0
      %v592 = vadd.f32 %v589, 1.0
      %v593 = vrcp.pop %v590
      %v594 = vmul.f32 %v590, %v593
      %v595 = vsub.f32 1.0, %v594
      %v596 = vmul.f32 %v593, %v595
      %v597 = vadd.f32 %v593, %v596
      %vm598 = vweird.f32 %v590
      %vm599 = vweird.f32 %v593
      %vm600 = vmor %vm598, %vm599
      %v601 = vsel %vm600, %v593, %v597
      %v602 = vand.u32 2147483647, %v590
      %vm603 = vcmp.eq.f32.partialorder %v602, 8.507059e+37
      %v604 = vand.u32 %v590, 2147483648
      %v605 = vor.u32 1.1754944e-38, %v604
      %v606 = vsel %vm603, %v605, %v601
      %v607 = vmul.f32 1.0, %v606
      %v608 = vrcp.pop %v591
      %v609 = vmul.f32 %v591, %v608
      %v610 = vsub.f32 1.0, %v609
      %v611 = vmul.f32 %v608, %v610
      %v612 = vadd.f32 %v608, %v611
      %vm613 = vweird.f32 %v591
      %vm614 = vweird.f32 %v608
      %vm615 = vmor %vm613, %vm614
      %v616 = vsel %vm615, %v608, %v612
      %v617 = vand.u32 2147483647, %v591
      %vm618 = vcmp.eq.f32.partialorder %v617, 8.507059e+37
      %v619 = vand.u32 %v591, 2147483648
      %v620 = vor.u32 1.1754944e-38, %v619
      %v621 = vsel %vm618, %v620, %v616
      %v622 = vmul.f32 1.0, %v621
      %v623 = vrcp.pop %v592
      %v624 = vmul.f32 %v592, %v623
      %v625 = vsub.f32 1.0, %v624
      %v626 = vmul.f32 %v623, %v625
      %v627 = vadd.f32 %v623, %v626
      %vm628 = vweird.f32 %v592
      %vm629 = vweird.f32 %v623
      %vm630 = vmor %vm628, %vm629
      %v631 = vsel %vm630, %v623, %v627
      %v632 = vand.u32 2147483647, %v592
      %vm633 = vcmp.eq.f32.partialorder %v632, 8.507059e+37
      %v634 = vand.u32 %v592, 2147483648
      %v635 = vor.u32 1.1754944e-38, %v634
      %v636 = vsel %vm633, %v635, %v631
      %v637 = vmul.f32 1.0, %v636
      %v638 = vtanh.pop %v580
      %v639 = vmul.f32 %v622, %v323
      %v640 = vmul.f32 %v607, %v638
      %v641 = vadd.f32 %v639, %v640
      %v642 = vtanh.pop %v641
      %v643 = vmul.f32 %v637, %v642
      %v644 = vpack.c.bf16 %v643, %v643
      %s645 = smul.addr %s324, 4
      %s646 = scalar_lea.vmem [#allocation5], %s645
      %647 = vst [vmem:[%s646] sm:$0xf] %v644
      %s648 = sadd.s32 %s324, 1
      %s649 = smul.u32 %s648, 4
      %s650 = smul.addr %s649, 8
      %s651 = scalar_lea.vmem [#allocation4], %s650
      %v652 = vld [vmem:[%s651] sm:$0xff]
      %v653 = vld [vmem:[%s651 + $0x8] sm:$0xff]
      %v654 = vld [vmem:[%s651 + $0x10] sm:$0xff]
      %v655 = vld [vmem:[%s651 + $0x18] sm:$0xff]
      %v656 = vld [vmem:[#allocation11] sm:$0xff]
      %v657 = vld [vmem:[#allocation11 + $0x8] sm:$0xff]
      %v658 = vld [vmem:[#allocation11 + $0x10] sm:$0xff]
      %v659 = vld [vmem:[#allocation11 + $0x18] sm:$0xff]
      %v660 = vld [vmem:[#allocation11 + $0x20] sm:$0xff]
      %v661 = vld [vmem:[#allocation11 + $0x28] sm:$0xff]
      %v662 = vld [vmem:[#allocation11 + $0x30] sm:$0xff]
      %v663 = vld [vmem:[#allocation11 + $0x38] sm:$0xff]
      %v664 = vld [vmem:[#allocation11 + $0x40] sm:$0xff]
      %v665 = vld [vmem:[#allocation11 + $0x48] sm:$0xff]
      %v666 = vld [vmem:[#allocation11 + $0x50] sm:$0xff]
      %v667 = vld [vmem:[#allocation11 + $0x58] sm:$0xff]
      %v668 = vld [vmem:[#allocation11 + $0x60] sm:$0xff]
      %v669 = vld [vmem:[#allocation11 + $0x68] sm:$0xff]
      %v670 = vld [vmem:[#allocation11 + $0x70] sm:$0xff]
      %v671 = vld [vmem:[#allocation11 + $0x78] sm:$0xff]
      %v672 = vld [vmem:[#allocation11 + $0x80] sm:$0xff]
      %v673 = vld [vmem:[#allocation11 + $0x88] sm:$0xff]
      %v674 = vld [vmem:[#allocation11 + $0x90] sm:$0xff]
      %v675 = vld [vmem:[#allocation11 + $0x98] sm:$0xff]
      %v676 = vld [vmem:[#allocation11 + $0xa0] sm:$0xff]
      %v677 = vld [vmem:[#allocation11 + $0xa8] sm:$0xff]
      %v678 = vld [vmem:[#allocation11 + $0xb0] sm:$0xff]
      %v679 = vld [vmem:[#allocation11 + $0xb8] sm:$0xff]
      %v680 = vld [vmem:[#allocation11 + $0xc0] sm:$0xff]
      %v681 = vld [vmem:[#allocation11 + $0xc8] sm:$0xff]
      %v682 = vld [vmem:[#allocation11 + $0xd0] sm:$0xff]
      %v683 = vld [vmem:[#allocation11 + $0xd8] sm:$0xff]
      %v684 = vld [vmem:[#allocation11 + $0xe0] sm:$0xff]
      %v685 = vld [vmem:[#allocation11 + $0xe8] sm:$0xff]
      %v686 = vld [vmem:[#allocation11 + $0xf0] sm:$0xff]
      %v687 = vld [vmem:[#allocation11 + $0xf8] sm:$0xff]
      %v720 = vunpack.c.l.b16 %v656
      %v721 = vunpack.c.h.b16 %v656
      %v722 = vunpack.c.l.b16 %v657
      %v723 = vunpack.c.h.b16 %v657
      %v724 = vunpack.c.l.b16 %v658
      %v725 = vunpack.c.h.b16 %v658
      %v726 = vunpack.c.l.b16 %v659
      %v727 = vunpack.c.h.b16 %v659
      %v728 = vunpack.c.l.b16 %v660
      %v729 = vunpack.c.h.b16 %v660
      %v730 = vunpack.c.l.b16 %v661
      %v731 = vunpack.c.h.b16 %v661
      %v732 = vunpack.c.l.b16 %v662
      %v733 = vunpack.c.h.b16 %v662
      %v734 = vunpack.c.l.b16 %v663
      %v735 = vunpack.c.h.b16 %v663
      %v736 = vunpack.c.l.b16 %v664
      %v737 = vunpack.c.h.b16 %v664
      %v738 = vunpack.c.l.b16 %v665
      %v739 = vunpack.c.h.b16 %v665
      %v740 = vunpack.c.l.b16 %v666
      %v741 = vunpack.c.h.b16 %v666
      %v742 = vunpack.c.l.b16 %v667
      %v743 = vunpack.c.h.b16 %v667
      %v744 = vunpack.c.l.b16 %v668
      %v745 = vunpack.c.h.b16 %v668
      %v746 = vunpack.c.l.b16 %v669
      %v747 = vunpack.c.h.b16 %v669
      %v748 = vunpack.c.l.b16 %v670
      %v749 = vunpack.c.h.b16 %v670
      %v750 = vunpack.c.l.b16 %v671
      %v751 = vunpack.c.h.b16 %v671
      %v752 = vunpack.c.l.b16 %v672
      %v753 = vunpack.c.h.b16 %v672
      %v754 = vunpack.c.l.b16 %v673
      %v755 = vunpack.c.h.b16 %v673
      %v756 = vunpack.c.l.b16 %v674
      %v757 = vunpack.c.h.b16 %v674
      %v758 = vunpack.c.l.b16 %v675
      %v759 = vunpack.c.h.b16 %v675
      %v760 = vunpack.c.l.b16 %v676
      %v761 = vunpack.c.h.b16 %v676
      %v762 = vunpack.c.l.b16 %v677
      %v763 = vunpack.c.h.b16 %v677
      %v764 = vunpack.c.l.b16 %v678
      %v765 = vunpack.c.h.b16 %v678
      %v766 = vunpack.c.l.b16 %v679
      %v767 = vunpack.c.h.b16 %v679
      %v768 = vunpack.c.l.b16 %v680
      %v769 = vunpack.c.h.b16 %v680
      %v770 = vunpack.c.l.b16 %v681
      %v771 = vunpack.c.h.b16 %v681
      %v772 = vunpack.c.l.b16 %v682
      %v773 = vunpack.c.h.b16 %v682
      %v774 = vunpack.c.l.b16 %v683
      %v775 = vunpack.c.h.b16 %v683
      %v776 = vunpack.c.l.b16 %v684
      %v777 = vunpack.c.h.b16 %v684
      %v778 = vunpack.c.l.b16 %v685
      %v779 = vunpack.c.h.b16 %v685
      %v780 = vunpack.c.l.b16 %v686
      %v781 = vunpack.c.h.b16 %v686
      %v782 = vunpack.c.l.b16 %v687
      %v783 = vunpack.c.h.b16 %v687
      %v784 = vpack.c.b16 %v724, %v720
      %v785 = vpack.c.b16 %v725, %v721
      %v786 = vpack.c.b16 %v726, %v722
      %v787 = vpack.c.b16 %v727, %v723
      %v788 = vpack.c.b16 %v732, %v728
      %v789 = vpack.c.b16 %v733, %v729
      %v790 = vpack.c.b16 %v734, %v730
      %v791 = vpack.c.b16 %v735, %v731
      %v792 = vpack.c.b16 %v740, %v736
      %v793 = vpack.c.b16 %v741, %v737
      %v794 = vpack.c.b16 %v742, %v738
      %v795 = vpack.c.b16 %v743, %v739
      %v796 = vpack.c.b16 %v748, %v744
      %v797 = vpack.c.b16 %v749, %v745
      %v798 = vpack.c.b16 %v750, %v746
      %v799 = vpack.c.b16 %v751, %v747
      %v800 = vpack.c.b16 %v756, %v752
      %v801 = vpack.c.b16 %v757, %v753
      %v802 = vpack.c.b16 %v758, %v754
      %v803 = vpack.c.b16 %v759, %v755
      %v804 = vpack.c.b16 %v764, %v760
      %v805 = vpack.c.b16 %v765, %v761
      %v806 = vpack.c.b16 %v766, %v762
      %v807 = vpack.c.b16 %v767, %v763
      %v808 = vpack.c.b16 %v772, %v768
      %v809 = vpack.c.b16 %v773, %v769
      %v810 = vpack.c.b16 %v774, %v770
      %v811 = vpack.c.b16 %v775, %v771
      %v812 = vpack.c.b16 %v780, %v776
      %v813 = vpack.c.b16 %v781, %v777
      %v814 = vpack.c.b16 %v782, %v778
      %v815 = vpack.c.b16 %v783, %v779
      %848 = vmatpush.bf16.msra.mxu0 %v812
      %849 = vmatpush.bf16.msra.mxu0 %v808
      %850 = vmatpush.bf16.msra.mxu0 %v804
      %851 = vmatpush.bf16.msra.mxu0 %v800
      %852 = vmatpush.bf16.msra.mxu0 %v796
      %853 = vmatpush.bf16.msra.mxu0 %v792
      %854 = vmatpush.bf16.msra.mxu0 %v788
      %855 = vmatpush.bf16.msra.mxu0 %v784
      %856 = vmatmul.bf16.gmra.mxu0 %v644
      %v857 = vpop.f32.mrf.mxu0
      %v858 = vadd.f32 0.0, %v857
      %v859 = vpop.f32.mrf.mxu0
      %860 = vdwg.mxu0
      %861 = vmatpush.bf16.msra.mxu0 %v813
      %862 = vmatpush.bf16.msra.mxu0 %v809
      %863 = vmatpush.bf16.msra.mxu0 %v805
      %864 = vmatpush.bf16.msra.mxu0 %v801
      %865 = vmatpush.bf16.msra.mxu0 %v797
      %866 = vmatpush.bf16.msra.mxu0 %v793
      %867 = vmatpush.bf16.msra.mxu0 %v789
      %868 = vmatpush.bf16.msra.mxu0 %v785
      %869 = vmatmul.bf16.gmra.mxu0 %v644
      %v870 = vpop.f32.mrf.mxu0
      %v871 = vadd.f32 0.0, %v870
      %v872 = vpop.f32.mrf.mxu0
      %873 = vdwg.mxu0
      %874 = vmatpush.bf16.msra.mxu0 %v814
      %875 = vmatpush.bf16.msra.mxu0 %v810
      %876 = vmatpush.bf16.msra.mxu0 %v806
      %877 = vmatpush.bf16.msra.mxu0 %v802
      %878 = vmatpush.bf16.msra.mxu0 %v798
      %879 = vmatpush.bf16.msra.mxu0 %v794
      %880 = vmatpush.bf16.msra.mxu0 %v790
      %881 = vmatpush.bf16.msra.mxu0 %v786
      %882 = vmatmul.bf16.gmra.mxu0 %v644
      %v883 = vpop.f32.mrf.mxu0
      %v884 = vadd.f32 0.0, %v883
      %v885 = vpop.f32.mrf.mxu0
      %886 = vdwg.mxu0
      %887 = vmatpush.bf16.msra.mxu0 %v815
      %888 = vmatpush.bf16.msra.mxu0 %v811
      %889 = vmatpush.bf16.msra.mxu0 %v807
      %890 = vmatpush.bf16.msra.mxu0 %v803
      %891 = vmatpush.bf16.msra.mxu0 %v799
      %892 = vmatpush.bf16.msra.mxu0 %v795
      %893 = vmatpush.bf16.msra.mxu0 %v791
      %894 = vmatpush.bf16.msra.mxu0 %v787
      %895 = vmatmul.bf16.gmra.mxu0 %v644
      %v896 = vpop.f32.mrf.mxu0
      %v897 = vadd.f32 0.0, %v896
      %v898 = vpop.f32.mrf.mxu0
      %899 = vdwg.mxu0
      %v900 = vadd.f32 %v652, %v858
      %v901 = vadd.f32 %v653, %v871
      %v902 = vadd.f32 %v654, %v884
      %v903 = vadd.f32 %v655, %v897
      %v904 = vxor.u32 %v900, 2147483648
      %v905 = vxor.u32 %v901, 2147483648
      %v906 = vxor.u32 %v902, 2147483648
      %v907 = vmul.f32 %v904, 1.442695
      %v908 = vpow.pop %v907
      %v909 = vmul.f32 %v905, 1.442695
      %v910 = vpow.pop %v909
      %v911 = vmul.f32 %v906, 1.442695
      %v912 = vpow.pop %v911
      %v913 = vadd.f32 %v908, 1.0
      %v914 = vadd.f32 %v910, 1.0
      %v915 = vadd.f32 %v912, 1.0
      %v916 = vrcp.pop %v913
      %v917 = vmul.f32 %v913, %v916
      %v918 = vsub.f32 1.0, %v917
      %v919 = vmul.f32 %v916, %v918
      %v920 = vadd.f32 %v916, %v919
      %vm921 = vweird.f32 %v913
      %vm922 = vweird.f32 %v916
      %vm923 = vmor %vm921, %vm922
      %v924 = vsel %vm923, %v916, %v920
      %v925 = vand.u32 2147483647, %v913
      %vm926 = vcmp.eq.f32.partialorder %v925, 8.507059e+37
      %v927 = vand.u32 %v913, 2147483648
      %v928 = vor.u32 1.1754944e-38, %v927
      %v929 = vsel %vm926, %v928, %v924
      %v930 = vmul.f32 1.0, %v929
      %v931 = vrcp.pop %v914
      %v932 = vmul.f32 %v914, %v931
      %v933 = vsub.f32 1.0, %v932
      %v934 = vmul.f32 %v931, %v933
      %v935 = vadd.f32 %v931, %v934
      %vm936 = vweird.f32 %v914
      %vm937 = vweird.f32 %v931
      %vm938 = vmor %vm936, %vm937
      %v939 = vsel %vm938, %v931, %v935
      %v940 = vand.u32 2147483647, %v914
      %vm941 = vcmp.eq.f32.partialorder %v940, 8.507059e+37
      %v942 = vand.u32 %v914, 2147483648
      %v943 = vor.u32 1.1754944e-38, %v942
      %v944 = vsel %vm941, %v943, %v939
      %v945 = vmul.f32 1.0, %v944
      %v946 = vrcp.pop %v915
      %v947 = vmul.f32 %v915, %v946
      %v948 = vsub.f32 1.0, %v947
      %v949 = vmul.f32 %v946, %v948
      %v950 = vadd.f32 %v946, %v949
      %vm951 = vweird.f32 %v915
      %vm952 = vweird.f32 %v946
      %vm953 = vmor %vm951, %vm952
      %v954 = vsel %vm953, %v946, %v950
      %v955 = vand.u32 2147483647, %v915
      %vm956 = vcmp.eq.f32.partialorder %v955, 8.507059e+37
      %v957 = vand.u32 %v915, 2147483648
      %v958 = vor.u32 1.1754944e-38, %v957
      %v959 = vsel %vm956, %v958, %v954
      %v960 = vmul.f32 1.0, %v959
      %v961 = vtanh.pop %v903
      %v962 = vmul.f32 %v945, %v641
      %v963 = vmul.f32 %v930, %v961
      %v964 = vadd.f32 %v962, %v963
      %v965 = vtanh.pop %v964
      %v966 = vmul.f32 %v960, %v965
      %v967 = vpack.c.bf16 %v966, %v966
      %s968 = smul.addr %s648, 4
      %s969 = scalar_lea.vmem [#allocation5], %s968
      %970 = vst [vmem:[%s969] sm:$0xf] %v967
      %s971 = sadd.s32 %s324, 2
      %s972 = smul.u32 %s971, 4
      %s973 = smul.addr %s972, 8
      %s974 = scalar_lea.vmem [#allocation4], %s973
      %v975 = vld [vmem:[%s974] sm:$0xff]
      %v976 = vld [vmem:[%s974 + $0x8] sm:$0xff]
      %v977 = vld [vmem:[%s974 + $0x10] sm:$0xff]
      %v978 = vld [vmem:[%s974 + $0x18] sm:$0xff]
      %v979 = vld [vmem:[#allocation11] sm:$0xff]
      %v980 = vld [vmem:[#allocation11 + $0x8] sm:$0xff]
      %v981 = vld [vmem:[#allocation11 + $0x10] sm:$0xff]
      %v982 = vld [vmem:[#allocation11 + $0x18] sm:$0xff]
      %v983 = vld [vmem:[#allocation11 + $0x20] sm:$0xff]
      %v984 = vld [vmem:[#allocation11 + $0x28] sm:$0xff]
      %v985 = vld [vmem:[#allocation11 + $0x30] sm:$0xff]
      %v986 = vld [vmem:[#allocation11 + $0x38] sm:$0xff]
      %v987 = vld [vmem:[#allocation11 + $0x40] sm:$0xff]
      %v988 = vld [vmem:[#allocation11 + $0x48] sm:$0xff]
      %v989 = vld [vmem:[#allocation11 + $0x50] sm:$0xff]
      %v990 = vld [vmem:[#allocation11 + $0x58] sm:$0xff]
      %v991 = vld [vmem:[#allocation11 + $0x60] sm:$0xff]
      %v992 = vld [vmem:[#allocation11 + $0x68] sm:$0xff]
      %v993 = vld [vmem:[#allocation11 + $0x70] sm:$0xff]
      %v994 = vld [vmem:[#allocation11 + $0x78] sm:$0xff]
      %v995 = vld [vmem:[#allocation11 + $0x80] sm:$0xff]
      %v996 = vld [vmem:[#allocation11 + $0x88] sm:$0xff]
      %v997 = vld [vmem:[#allocation11 + $0x90] sm:$0xff]
      %v998 = vld [vmem:[#allocation11 + $0x98] sm:$0xff]
      %v999 = vld [vmem:[#allocation11 + $0xa0] sm:$0xff]
      %v1000 = vld [vmem:[#allocation11 + $0xa8] sm:$0xff]
      %v1001 = vld [vmem:[#allocation11 + $0xb0] sm:$0xff]
      %v1002 = vld [vmem:[#allocation11 + $0xb8] sm:$0xff]
      %v1003 = vld [vmem:[#allocation11 + $0xc0] sm:$0xff]
      %v1004 = vld [vmem:[#allocation11 + $0xc8] sm:$0xff]
      %v1005 = vld [vmem:[#allocation11 + $0xd0] sm:$0xff]
      %v1006 = vld [vmem:[#allocation11 + $0xd8] sm:$0xff]
      %v1007 = vld [vmem:[#allocation11 + $0xe0] sm:$0xff]
      %v1008 = vld [vmem:[#allocation11 + $0xe8] sm:$0xff]
      %v1009 = vld [vmem:[#allocation11 + $0xf0] sm:$0xff]
      %v1010 = vld [vmem:[#allocation11 + $0xf8] sm:$0xff]
      %v1043 = vunpack.c.l.b16 %v979
      %v1044 = vunpack.c.h.b16 %v979
      %v1045 = vunpack.c.l.b16 %v980
      %v1046 = vunpack.c.h.b16 %v980
      %v1047 = vunpack.c.l.b16 %v981
      %v1048 = vunpack.c.h.b16 %v981
      %v1049 = vunpack.c.l.b16 %v982
      %v1050 = vunpack.c.h.b16 %v982
      %v1051 = vunpack.c.l.b16 %v983
      %v1052 = vunpack.c.h.b16 %v983
      %v1053 = vunpack.c.l.b16 %v984
      %v1054 = vunpack.c.h.b16 %v984
      %v1055 = vunpack.c.l.b16 %v985
      %v1056 = vunpack.c.h.b16 %v985
      %v1057 = vunpack.c.l.b16 %v986
      %v1058 = vunpack.c.h.b16 %v986
      %v1059 = vunpack.c.l.b16 %v987
      %v1060 = vunpack.c.h.b16 %v987
      %v1061 = vunpack.c.l.b16 %v988
      %v1062 = vunpack.c.h.b16 %v988
      %v1063 = vunpack.c.l.b16 %v989
      %v1064 = vunpack.c.h.b16 %v989
      %v1065 = vunpack.c.l.b16 %v990
      %v1066 = vunpack.c.h.b16 %v990
      %v1067 = vunpack.c.l.b16 %v991
      %v1068 = vunpack.c.h.b16 %v991
      %v1069 = vunpack.c.l.b16 %v992
      %v1070 = vunpack.c.h.b16 %v992
      %v1071 = vunpack.c.l.b16 %v993
      %v1072 = vunpack.c.h.b16 %v993
      %v1073 = vunpack.c.l.b16 %v994
      %v1074 = vunpack.c.h.b16 %v994
      %v1075 = vunpack.c.l.b16 %v995
      %v1076 = vunpack.c.h.b16 %v995
      %v1077 = vunpack.c.l.b16 %v996
      %v1078 = vunpack.c.h.b16 %v996
      %v1079 = vunpack.c.l.b16 %v997
      %v1080 = vunpack.c.h.b16 %v997
      %v1081 = vunpack.c.l.b16 %v998
      %v1082 = vunpack.c.h.b16 %v998
      %v1083 = vunpack.c.l.b16 %v999
      %v1084 = vunpack.c.h.b16 %v999
      %v1085 = vunpack.c.l.b16 %v1000
      %v1086 = vunpack.c.h.b16 %v1000
      %v1087 = vunpack.c.l.b16 %v1001
      %v1088 = vunpack.c.h.b16 %v1001
      %v1089 = vunpack.c.l.b16 %v1002
      %v1090 = vunpack.c.h.b16 %v1002
      %v1091 = vunpack.c.l.b16 %v1003
      %v1092 = vunpack.c.h.b16 %v1003
      %v1093 = vunpack.c.l.b16 %v1004
      %v1094 = vunpack.c.h.b16 %v1004
      %v1095 = vunpack.c.l.b16 %v1005
      %v1096 = vunpack.c.h.b16 %v1005
      %v1097 = vunpack.c.l.b16 %v1006
      %v1098 = vunpack.c.h.b16 %v1006
      %v1099 = vunpack.c.l.b16 %v1007
      %v1100 = vunpack.c.h.b16 %v1007
      %v1101 = vunpack.c.l.b16 %v1008
      %v1102 = vunpack.c.h.b16 %v1008
      %v1103 = vunpack.c.l.b16 %v1009
      %v1104 = vunpack.c.h.b16 %v1009
      %v1105 = vunpack.c.l.b16 %v1010
      %v1106 = vunpack.c.h.b16 %v1010
      %v1107 = vpack.c.b16 %v1047, %v1043
      %v1108 = vpack.c.b16 %v1048, %v1044
      %v1109 = vpack.c.b16 %v1049, %v1045
      %v1110 = vpack.c.b16 %v1050, %v1046
      %v1111 = vpack.c.b16 %v1055, %v1051
      %v1112 = vpack.c.b16 %v1056, %v1052
      %v1113 = vpack.c.b16 %v1057, %v1053
      %v1114 = vpack.c.b16 %v1058, %v1054
      %v1115 = vpack.c.b16 %v1063, %v1059
      %v1116 = vpack.c.b16 %v1064, %v1060
      %v1117 = vpack.c.b16 %v1065, %v1061
      %v1118 = vpack.c.b16 %v1066, %v1062
      %v1119 = vpack.c.b16 %v1071, %v1067
      %v1120 = vpack.c.b16 %v1072, %v1068
      %v1121 = vpack.c.b16 %v1073, %v1069
      %v1122 = vpack.c.b16 %v1074, %v1070
      %v1123 = vpack.c.b16 %v1079, %v1075
      %v1124 = vpack.c.b16 %v1080, %v1076
      %v1125 = vpack.c.b16 %v1081, %v1077
      %v1126 = vpack.c.b16 %v1082, %v1078
      %v1127 = vpack.c.b16 %v1087, %v1083
      %v1128 = vpack.c.b16 %v1088, %v1084
      %v1129 = vpack.c.b16 %v1089, %v1085
      %v1130 = vpack.c.b16 %v1090, %v1086
      %v1131 = vpack.c.b16 %v1095, %v1091
      %v1132 = vpack.c.b16 %v1096, %v1092
      %v1133 = vpack.c.b16 %v1097, %v1093
      %v1134 = vpack.c.b16 %v1098, %v1094
      %v1135 = vpack.c.b16 %v1103, %v1099
      %v1136 = vpack.c.b16 %v1104, %v1100
      %v1137 = vpack.c.b16 %v1105, %v1101
      %v1138 = vpack.c.b16 %v1106, %v1102
      %1171 = vmatpush.bf16.msra.mxu0 %v1135
      %1172 = vmatpush.bf16.msra.mxu0 %v1131
      %1173 = vmatpush.bf16.msra.mxu0 %v1127
      %1174 = vmatpush.bf16.msra.mxu0 %v1123
      %1175 = vmatpush.bf16.msra.mxu0 %v1119
      %1176 = vmatpush.bf16.msra.mxu0 %v1115
      %1177 = vmatpush.bf16.msra.mxu0 %v1111
      %1178 = vmatpush.bf16.msra.mxu0 %v1107
      %1179 = vmatmul.bf16.gmra.mxu0 %v967
      %v1180 = vpop.f32.mrf.mxu0
      %v1181 = vadd.f32 0.0, %v1180
      %v1182 = vpop.f32.mrf.mxu0
      %1183 = vdwg.mxu0
      %1184 = vmatpush.bf16.msra.mxu0 %v1136
      %1185 = vmatpush.bf16.msra.mxu0 %v1132
      %1186 = vmatpush.bf16.msra.mxu0 %v1128
      %1187 = vmatpush.bf16.msra.mxu0 %v1124
      %1188 = vmatpush.bf16.msra.mxu0 %v1120
      %1189 = vmatpush.bf16.msra.mxu0 %v1116
      %1190 = vmatpush.bf16.msra.mxu0 %v1112
      %1191 = vmatpush.bf16.msra.mxu0 %v1108
      %1192 = vmatmul.bf16.gmra.mxu0 %v967
      %v1193 = vpop.f32.mrf.mxu0
      %v1194 = vadd.f32 0.0, %v1193
      %v1195 = vpop.f32.mrf.mxu0
      %1196 = vdwg.mxu0
      %1197 = vmatpush.bf16.msra.mxu0 %v1137
      %1198 = vmatpush.bf16.msra.mxu0 %v1133
      %1199 = vmatpush.bf16.msra.mxu0 %v1129
      %1200 = vmatpush.bf16.msra.mxu0 %v1125
      %1201 = vmatpush.bf16.msra.mxu0 %v1121
      %1202 = vmatpush.bf16.msra.mxu0 %v1117
      %1203 = vmatpush.bf16.msra.mxu0 %v1113
      %1204 = vmatpush.bf16.msra.mxu0 %v1109
      %1205 = vmatmul.bf16.gmra.mxu0 %v967
      %v1206 = vpop.f32.mrf.mxu0
      %v1207 = vadd.f32 0.0, %v1206
      %v1208 = vpop.f32.mrf.mxu0
      %1209 = vdwg.mxu0
      %1210 = vmatpush.bf16.msra.mxu0 %v1138
      %1211 = vmatpush.bf16.msra.mxu0 %v1134
      %1212 = vmatpush.bf16.msra.mxu0 %v1130
      %1213 = vmatpush.bf16.msra.mxu0 %v1126
      %1214 = vmatpush.bf16.msra.mxu0 %v1122
      %1215 = vmatpush.bf16.msra.mxu0 %v1118
      %1216 = vmatpush.bf16.msra.mxu0 %v1114
      %1217 = vmatpush.bf16.msra.mxu0 %v1110
      %1218 = vmatmul.bf16.gmra.mxu0 %v967
      %v1219 = vpop.f32.mrf.mxu0
      %v1220 = vadd.f32 0.0, %v1219
      %v1221 = vpop.f32.mrf.mxu0
      %1222 = vdwg.mxu0
      %v1223 = vadd.f32 %v975, %v1181
      %v1224 = vadd.f32 %v976, %v1194
      %v1225 = vadd.f32 %v977, %v1207
      %v1226 = vadd.f32 %v978, %v1220
      %v1227 = vxor.u32 %v1223, 2147483648
      %v1228 = vxor.u32 %v1224, 2147483648
      %v1229 = vxor.u32 %v1225, 2147483648
      %v1230 = vmul.f32 %v1227, 1.442695
      %v1231 = vpow.pop %v1230
      %v1232 = vmul.f32 %v1228, 1.442695
      %v1233 = vpow.pop %v1232
      %v1234 = vmul.f32 %v1229, 1.442695
      %v1235 = vpow.pop %v1234
      %v1236 = vadd.f32 %v1231, 1.0
      %v1237 = vadd.f32 %v1233, 1.0
      %v1238 = vadd.f32 %v1235, 1.0
      %v1239 = vrcp.pop %v1236
      %v1240 = vmul.f32 %v1236, %v1239
      %v1241 = vsub.f32 1.0, %v1240
      %v1242 = vmul.f32 %v1239, %v1241
      %v1243 = vadd.f32 %v1239, %v1242
      %vm1244 = vweird.f32 %v1236
      %vm1245 = vweird.f32 %v1239
      %vm1246 = vmor %vm1244, %vm1245
      %v1247 = vsel %vm1246, %v1239, %v1243
      %v1248 = vand.u32 2147483647, %v1236
      %vm1249 = vcmp.eq.f32.partialorder %v1248, 8.507059e+37
      %v1250 = vand.u32 %v1236, 2147483648
      %v1251 = vor.u32 1.1754944e-38, %v1250
      %v1252 = vsel %vm1249, %v1251, %v1247
      %v1253 = vmul.f32 1.0, %v1252
      %v1254 = vrcp.pop %v1237
      %v1255 = vmul.f32 %v1237, %v1254
      %v1256 = vsub.f32 1.0, %v1255
      %v1257 = vmul.f32 %v1254, %v1256
      %v1258 = vadd.f32 %v1254, %v1257
      %vm1259 = vweird.f32 %v1237
      %vm1260 = vweird.f32 %v1254
      %vm1261 = vmor %vm1259, %vm1260
      %v1262 = vsel %vm1261, %v1254, %v1258
      %v1263 = vand.u32 2147483647, %v1237
      %vm1264 = vcmp.eq.f32.partialorder %v1263, 8.507059e+37
      %v1265 = vand.u32 %v1237, 2147483648
      %v1266 = vor.u32 1.1754944e-38, %v1265
      %v1267 = vsel %vm1264, %v1266, %v1262
      %v1268 = vmul.f32 1.0, %v1267
      %v1269 = vrcp.pop %v1238
      %v1270 = vmul.f32 %v1238, %v1269
      %v1271 = vsub.f32 1.0, %v1270
      %v1272 = vmul.f32 %v1269, %v1271
      %v1273 = vadd.f32 %v1269, %v1272
      %vm1274 = vweird.f32 %v1238
      %vm1275 = vweird.f32 %v1269
      %vm1276 = vmor %vm1274, %vm1275
      %v1277 = vsel %vm1276, %v1269, %v1273
      %v1278 = vand.u32 2147483647, %v1238
      %vm1279 = vcmp.eq.f32.partialorder %v1278, 8.507059e+37
      %v1280 = vand.u32 %v1238, 2147483648
      %v1281 = vor.u32 1.1754944e-38, %v1280
      %v1282 = vsel %vm1279, %v1281, %v1277
      %v1283 = vmul.f32 1.0, %v1282
      %v1284 = vtanh.pop %v1226
      %v1285 = vmul.f32 %v1268, %v964
      %v1286 = vmul.f32 %v1253, %v1284
      %v1287 = vadd.f32 %v1285, %v1286
      %v1288 = vtanh.pop %v1287
      %v1289 = vmul.f32 %v1283, %v1288
      %v1290 = vpack.c.bf16 %v1289, %v1289
      %s1291 = smul.addr %s971, 4
      %s1292 = scalar_lea.vmem [#allocation5], %s1291
      %1293 = vst [vmem:[%s1292] sm:$0xf] %v1290
      %s1294 = sadd.s32 %s324, 3
      %s1295 = smul.u32 %s1294, 4
      %s1296 = smul.addr %s1295, 8
      %s1297 = scalar_lea.vmem [#allocation4], %s1296
      %v1298 = vld [vmem:[%s1297] sm:$0xff]
      %v1299 = vld [vmem:[%s1297 + $0x8] sm:$0xff]
      %v1300 = vld [vmem:[%s1297 + $0x10] sm:$0xff]
      %v1301 = vld [vmem:[%s1297 + $0x18] sm:$0xff]
      %v1302 = vld [vmem:[#allocation11] sm:$0xff]
      %v1303 = vld [vmem:[#allocation11 + $0x8] sm:$0xff]
      %v1304 = vld [vmem:[#allocation11 + $0x10] sm:$0xff]
      %v1305 = vld [vmem:[#allocation11 + $0x18] sm:$0xff]
      %v1306 = vld [vmem:[#allocation11 + $0x20] sm:$0xff]
      %v1307 = vld [vmem:[#allocation11 + $0x28] sm:$0xff]
      %v1308 = vld [vmem:[#allocation11 + $0x30] sm:$0xff]
      %v1309 = vld [vmem:[#allocation11 + $0x38] sm:$0xff]
      %v1310 = vld [vmem:[#allocation11 + $0x40] sm:$0xff]
      %v1311 = vld [vmem:[#allocation11 + $0x48] sm:$0xff]
      %v1312 = vld [vmem:[#allocation11 + $0x50] sm:$0xff]
      %v1313 = vld [vmem:[#allocation11 + $0x58] sm:$0xff]
      %v1314 = vld [vmem:[#allocation11 + $0x60] sm:$0xff]
      %v1315 = vld [vmem:[#allocation11 + $0x68] sm:$0xff]
      %v1316 = vld [vmem:[#allocation11 + $0x70] sm:$0xff]
      %v1317 = vld [vmem:[#allocation11 + $0x78] sm:$0xff]
      %v1318 = vld [vmem:[#allocation11 + $0x80] sm:$0xff]
      %v1319 = vld [vmem:[#allocation11 + $0x88] sm:$0xff]
      %v1320 = vld [vmem:[#allocation11 + $0x90] sm:$0xff]
      %v1321 = vld [vmem:[#allocation11 + $0x98] sm:$0xff]
      %v1322 = vld [vmem:[#allocation11 + $0xa0] sm:$0xff]
      %v1323 = vld [vmem:[#allocation11 + $0xa8] sm:$0xff]
      %v1324 = vld [vmem:[#allocation11 + $0xb0] sm:$0xff]
      %v1325 = vld [vmem:[#allocation11 + $0xb8] sm:$0xff]
      %v1326 = vld [vmem:[#allocation11 + $0xc0] sm:$0xff]
      %v1327 = vld [vmem:[#allocation11 + $0xc8] sm:$0xff]
      %v1328 = vld [vmem:[#allocation11 + $0xd0] sm:$0xff]
      %v1329 = vld [vmem:[#allocation11 + $0xd8] sm:$0xff]
      %v1330 = vld [vmem:[#allocation11 + $0xe0] sm:$0xff]
      %v1331 = vld [vmem:[#allocation11 + $0xe8] sm:$0xff]
      %v1332 = vld [vmem:[#allocation11 + $0xf0] sm:$0xff]
      %v1333 = vld [vmem:[#allocation11 + $0xf8] sm:$0xff]
      %v1366 = vunpack.c.l.b16 %v1302
      %v1367 = vunpack.c.h.b16 %v1302
      %v1368 = vunpack.c.l.b16 %v1303
      %v1369 = vunpack.c.h.b16 %v1303
      %v1370 = vunpack.c.l.b16 %v1304
      %v1371 = vunpack.c.h.b16 %v1304
      %v1372 = vunpack.c.l.b16 %v1305
      %v1373 = vunpack.c.h.b16 %v1305
      %v1374 = vunpack.c.l.b16 %v1306
      %v1375 = vunpack.c.h.b16 %v1306
      %v1376 = vunpack.c.l.b16 %v1307
      %v1377 = vunpack.c.h.b16 %v1307
      %v1378 = vunpack.c.l.b16 %v1308
      %v1379 = vunpack.c.h.b16 %v1308
      %v1380 = vunpack.c.l.b16 %v1309
      %v1381 = vunpack.c.h.b16 %v1309
      %v1382 = vunpack.c.l.b16 %v1310
      %v1383 = vunpack.c.h.b16 %v1310
      %v1384 = vunpack.c.l.b16 %v1311
      %v1385 = vunpack.c.h.b16 %v1311
      %v1386 = vunpack.c.l.b16 %v1312
      %v1387 = vunpack.c.h.b16 %v1312
      %v1388 = vunpack.c.l.b16 %v1313
      %v1389 = vunpack.c.h.b16 %v1313
      %v1390 = vunpack.c.l.b16 %v1314
      %v1391 = vunpack.c.h.b16 %v1314
      %v1392 = vunpack.c.l.b16 %v1315
      %v1393 = vunpack.c.h.b16 %v1315
      %v1394 = vunpack.c.l.b16 %v1316
      %v1395 = vunpack.c.h.b16 %v1316
      %v1396 = vunpack.c.l.b16 %v1317
      %v1397 = vunpack.c.h.b16 %v1317
      %v1398 = vunpack.c.l.b16 %v1318
      %v1399 = vunpack.c.h.b16 %v1318
      %v1400 = vunpack.c.l.b16 %v1319
      %v1401 = vunpack.c.h.b16 %v1319
      %v1402 = vunpack.c.l.b16 %v1320
      %v1403 = vunpack.c.h.b16 %v1320
      %v1404 = vunpack.c.l.b16 %v1321
      %v1405 = vunpack.c.h.b16 %v1321
      %v1406 = vunpack.c.l.b16 %v1322
      %v1407 = vunpack.c.h.b16 %v1322
      %v1408 = vunpack.c.l.b16 %v1323
      %v1409 = vunpack.c.h.b16 %v1323
      %v1410 = vunpack.c.l.b16 %v1324
      %v1411 = vunpack.c.h.b16 %v1324
      %v1412 = vunpack.c.l.b16 %v1325
      %v1413 = vunpack.c.h.b16 %v1325
      %v1414 = vunpack.c.l.b16 %v1326
      %v1415 = vunpack.c.h.b16 %v1326
      %v1416 = vunpack.c.l.b16 %v1327
      %v1417 = vunpack.c.h.b16 %v1327
      %v1418 = vunpack.c.l.b16 %v1328
      %v1419 = vunpack.c.h.b16 %v1328
      %v1420 = vunpack.c.l.b16 %v1329
      %v1421 = vunpack.c.h.b16 %v1329
      %v1422 = vunpack.c.l.b16 %v1330
      %v1423 = vunpack.c.h.b16 %v1330
      %v1424 = vunpack.c.l.b16 %v1331
      %v1425 = vunpack.c.h.b16 %v1331
      %v1426 = vunpack.c.l.b16 %v1332
      %v1427 = vunpack.c.h.b16 %v1332
      %v1428 = vunpack.c.l.b16 %v1333
      %v1429 = vunpack.c.h.b16 %v1333
      %v1430 = vpack.c.b16 %v1370, %v1366
      %v1431 = vpack.c.b16 %v1371, %v1367
      %v1432 = vpack.c.b16 %v1372, %v1368
      %v1433 = vpack.c.b16 %v1373, %v1369
      %v1434 = vpack.c.b16 %v1378, %v1374
      %v1435 = vpack.c.b16 %v1379, %v1375
      %v1436 = vpack.c.b16 %v1380, %v1376
      %v1437 = vpack.c.b16 %v1381, %v1377
      %v1438 = vpack.c.b16 %v1386, %v1382
      %v1439 = vpack.c.b16 %v1387, %v1383
      %v1440 = vpack.c.b16 %v1388, %v1384
      %v1441 = vpack.c.b16 %v1389, %v1385
      %v1442 = vpack.c.b16 %v1394, %v1390
      %v1443 = vpack.c.b16 %v1395, %v1391
      %v1444 = vpack.c.b16 %v1396, %v1392
      %v1445 = vpack.c.b16 %v1397, %v1393
      %v1446 = vpack.c.b16 %v1402, %v1398
      %v1447 = vpack.c.b16 %v1403, %v1399
      %v1448 = vpack.c.b16 %v1404, %v1400
      %v1449 = vpack.c.b16 %v1405, %v1401
      %v1450 = vpack.c.b16 %v1410, %v1406
      %v1451 = vpack.c.b16 %v1411, %v1407
      %v1452 = vpack.c.b16 %v1412, %v1408
      %v1453 = vpack.c.b16 %v1413, %v1409
      %v1454 = vpack.c.b16 %v1418, %v1414
      %v1455 = vpack.c.b16 %v1419, %v1415
      %v1456 = vpack.c.b16 %v1420, %v1416
      %v1457 = vpack.c.b16 %v1421, %v1417
      %v1458 = vpack.c.b16 %v1426, %v1422
      %v1459 = vpack.c.b16 %v1427, %v1423
      %v1460 = vpack.c.b16 %v1428, %v1424
      %v1461 = vpack.c.b16 %v1429, %v1425
      %1494 = vmatpush.bf16.msra.mxu0 %v1458
      %1495 = vmatpush.bf16.msra.mxu0 %v1454
      %1496 = vmatpush.bf16.msra.mxu0 %v1450
      %1497 = vmatpush.bf16.msra.mxu0 %v1446
      %1498 = vmatpush.bf16.msra.mxu0 %v1442
      %1499 = vmatpush.bf16.msra.mxu0 %v1438
      %1500 = vmatpush.bf16.msra.mxu0 %v1434
      %1501 = vmatpush.bf16.msra.mxu0 %v1430
      %1502 = vmatmul.bf16.gmra.mxu0 %v1290
      %v1503 = vpop.f32.mrf.mxu0
      %v1504 = vadd.f32 0.0, %v1503
      %v1505 = vpop.f32.mrf.mxu0
      %1506 = vdwg.mxu0
      %1507 = vmatpush.bf16.msra.mxu0 %v1459
      %1508 = vmatpush.bf16.msra.mxu0 %v1455
      %1509 = vmatpush.bf16.msra.mxu0 %v1451
      %1510 = vmatpush.bf16.msra.mxu0 %v1447
      %1511 = vmatpush.bf16.msra.mxu0 %v1443
      %1512 = vmatpush.bf16.msra.mxu0 %v1439
      %1513 = vmatpush.bf16.msra.mxu0 %v1435
      %1514 = vmatpush.bf16.msra.mxu0 %v1431
      %1515 = vmatmul.bf16.gmra.mxu0 %v1290
      %v1516 = vpop.f32.mrf.mxu0
      %v1517 = vadd.f32 0.0, %v1516
      %v1518 = vpop.f32.mrf.mxu0
      %1519 = vdwg.mxu0
      %1520 = vmatpush.bf16.msra.mxu0 %v1460
      %1521 = vmatpush.bf16.msra.mxu0 %v1456
      %1522 = vmatpush.bf16.msra.mxu0 %v1452
      %1523 = vmatpush.bf16.msra.mxu0 %v1448
      %1524 = vmatpush.bf16.msra.mxu0 %v1444
      %1525 = vmatpush.bf16.msra.mxu0 %v1440
      %1526 = vmatpush.bf16.msra.mxu0 %v1436
      %1527 = vmatpush.bf16.msra.mxu0 %v1432
      %1528 = vmatmul.bf16.gmra.mxu0 %v1290
      %v1529 = vpop.f32.mrf.mxu0
      %v1530 = vadd.f32 0.0, %v1529
      %v1531 = vpop.f32.mrf.mxu0
      %1532 = vdwg.mxu0
      %1533 = vmatpush.bf16.msra.mxu0 %v1461
      %1534 = vmatpush.bf16.msra.mxu0 %v1457
      %1535 = vmatpush.bf16.msra.mxu0 %v1453
      %1536 = vmatpush.bf16.msra.mxu0 %v1449
      %1537 = vmatpush.bf16.msra.mxu0 %v1445
      %1538 = vmatpush.bf16.msra.mxu0 %v1441
      %1539 = vmatpush.bf16.msra.mxu0 %v1437
      %1540 = vmatpush.bf16.msra.mxu0 %v1433
      %1541 = vmatmul.bf16.gmra.mxu0 %v1290
      %v1542 = vpop.f32.mrf.mxu0
      %v1543 = vadd.f32 0.0, %v1542
      %v1544 = vpop.f32.mrf.mxu0
      %1545 = vdwg.mxu0
      %v1546 = vadd.f32 %v1298, %v1504
      %v1547 = vadd.f32 %v1299, %v1517
      %v1548 = vadd.f32 %v1300, %v1530
      %v1549 = vadd.f32 %v1301, %v1543
      %v1550 = vxor.u32 %v1546, 2147483648
      %v1551 = vxor.u32 %v1547, 2147483648
      %v1552 = vxor.u32 %v1548, 2147483648
      %v1553 = vmul.f32 %v1550, 1.442695
      %v1554 = vpow.pop %v1553
      %v1555 = vmul.f32 %v1551, 1.442695
      %v1556 = vpow.pop %v1555
      %v1557 = vmul.f32 %v1552, 1.442695
      %v1558 = vpow.pop %v1557
      %v1559 = vadd.f32 %v1554, 1.0
      %v1560 = vadd.f32 %v1556, 1.0
      %v1561 = vadd.f32 %v1558, 1.0
      %v1562 = vrcp.pop %v1559
      %v1563 = vmul.f32 %v1559, %v1562
      %v1564 = vsub.f32 1.0, %v1563
      %v1565 = vmul.f32 %v1562, %v1564
      %v1566 = vadd.f32 %v1562, %v1565
      %vm1567 = vweird.f32 %v1559
      %vm1568 = vweird.f32 %v1562
      %vm1569 = vmor %vm1567, %vm1568
      %v1570 = vsel %vm1569, %v1562, %v1566
      %v1571 = vand.u32 2147483647, %v1559
      %vm1572 = vcmp.eq.f32.partialorder %v1571, 8.507059e+37
      %v1573 = vand.u32 %v1559, 2147483648
      %v1574 = vor.u32 1.1754944e-38, %v1573
      %v1575 = vsel %vm1572, %v1574, %v1570
      %v1576 = vmul.f32 1.0, %v1575
      %v1577 = vrcp.pop %v1560
      %v1578 = vmul.f32 %v1560, %v1577
      %v1579 = vsub.f32 1.0, %v1578
      %v1580 = vmul.f32 %v1577, %v1579
      %v1581 = vadd.f32 %v1577, %v1580
      %vm1582 = vweird.f32 %v1560
      %vm1583 = vweird.f32 %v1577
      %vm1584 = vmor %vm1582, %vm1583
      %v1585 = vsel %vm1584, %v1577, %v1581
      %v1586 = vand.u32 2147483647, %v1560
      %vm1587 = vcmp.eq.f32.partialorder %v1586, 8.507059e+37
      %v1588 = vand.u32 %v1560, 2147483648
      %v1589 = vor.u32 1.1754944e-38, %v1588
      %v1590 = vsel %vm1587, %v1589, %v1585
      %v1591 = vmul.f32 1.0, %v1590
      %v1592 = vrcp.pop %v1561
      %v1593 = vmul.f32 %v1561, %v1592
      %v1594 = vsub.f32 1.0, %v1593
      %v1595 = vmul.f32 %v1592, %v1594
      %v1596 = vadd.f32 %v1592, %v1595
      %vm1597 = vweird.f32 %v1561
      %vm1598 = vweird.f32 %v1592
      %vm1599 = vmor %vm1597, %vm1598
      %v1600 = vsel %vm1599, %v1592, %v1596
      %v1601 = vand.u32 2147483647, %v1561
      %vm1602 = vcmp.eq.f32.partialorder %v1601, 8.507059e+37
      %v1603 = vand.u32 %v1561, 2147483648
      %v1604 = vor.u32 1.1754944e-38, %v1603
      %v1605 = vsel %vm1602, %v1604, %v1600
      %v1606 = vmul.f32 1.0, %v1605
      %v1607 = vtanh.pop %v1549
      %v1608 = vmul.f32 %v1591, %v1287
      %v1609 = vmul.f32 %v1576, %v1607
      %v1610 = vadd.f32 %v1608, %v1609
      %v1611 = vtanh.pop %v1610
      %v1612 = vmul.f32 %v1606, %v1611
      %v1613 = vpack.c.bf16 %v1612, %v1612
      %s1614 = smul.addr %s1294, 4
      %s1615 = scalar_lea.vmem [#allocation5], %s1614
      %1616 = vst [vmem:[%s1615] sm:$0xf] %v1613
    $region54: #{tpu_custom_call.1} parent=1 // loop_footer
      %s321 = sadd.s32 1, %s317
    $region55: #{tpu_custom_call.1} parent=1 // loop_footer_branch
      %316 = sbr.rel target = $region51
    $region56: #{tpu_custom_call.1} parent=1 // loop_exit
      _
    %1617 = vst [vmem:[#allocation2] sm:$0xff] %v322
    %1618 = vst [vmem:[#allocation3] sm:$0xff] %v323
    %v1619 = vld [vmem:[#allocation5] sm:$0xf]
    %v1620 = vld [vmem:[#allocation5 + $0x4] sm:$0xf]
    %v1621 = vld [vmem:[#allocation5 + $0x8] sm:$0xf]
    %v1622 = vld [vmem:[#allocation5 + $0xc] sm:$0xf]
    %v1623 = vld [vmem:[#allocation5 + $0x10] sm:$0xf]
    %v1624 = vld [vmem:[#allocation5 + $0x14] sm:$0xf]
    %v1625 = vld [vmem:[#allocation5 + $0x18] sm:$0xf]
    %v1626 = vld [vmem:[#allocation5 + $0x1c] sm:$0xf]
    %v1627 = vld [vmem:[#allocation14] sm:$0xf]
    %v1628 = vld [vmem:[#allocation14 + $0x4] sm:$0xf]
    %v1629 = vld [vmem:[#allocation14 + $0x8] sm:$0xf]
    %v1630 = vld [vmem:[#allocation14 + $0xc] sm:$0xf]
    %v1631 = vld [vmem:[#allocation14 + $0x10] sm:$0xf]
    %v1632 = vld [vmem:[#allocation14 + $0x14] sm:$0xf]
    %v1633 = vld [vmem:[#allocation14 + $0x18] sm:$0xf]
    %v1634 = vld [vmem:[#allocation14 + $0x1c] sm:$0xf]
    %v1635 = vld [vmem:[#allocation14 + $0x20] sm:$0xf]
    %v1636 = vld [vmem:[#allocation14 + $0x24] sm:$0xf]
    %v1637 = vld [vmem:[#allocation14 + $0x28] sm:$0xf]
    %v1638 = vld [vmem:[#allocation14 + $0x2c] sm:$0xf]
    %v1639 = vld [vmem:[#allocation14 + $0x30] sm:$0xf]
    %v1640 = vld [vmem:[#allocation14 + $0x34] sm:$0xf]
    %v1641 = vld [vmem:[#allocation14 + $0x38] sm:$0xf]
    %v1642 = vld [vmem:[#allocation14 + $0x3c] sm:$0xf]
    %v1643 = vld [vmem:[%s5] sm:$0x1]
    %v1645 = vperm.slane %v1643, 0
    %v1655 = vunpack.c.l.b16 %v1619
    %v1656 = vunpack.c.l.b16 %v1620
    %v1657 = vunpack.c.l.b16 %v1621
    %v1658 = vunpack.c.l.b16 %v1622
    %v1659 = vunpack.c.l.b16 %v1623
    %v1660 = vunpack.c.l.b16 %v1624
    %v1661 = vunpack.c.l.b16 %v1625
    %v1662 = vunpack.c.l.b16 %v1626
    %v1663 = vpack.c.b16 %v1656, %v1655
    %v1664 = vpack.c.b16 %v1658, %v1657
    %v1665 = vpack.c.b16 %v1660, %v1659
    %v1666 = vpack.c.b16 %v1662, %v1661
    %v1687 = vunpack.c.l.b16 %v1627
    %v1688 = vunpack.c.l.b16 %v1628
    %v1689 = vunpack.c.l.b16 %v1629
    %v1690 = vunpack.c.l.b16 %v1630
    %v1691 = vunpack.c.l.b16 %v1631
    %v1692 = vunpack.c.l.b16 %v1632
    %v1693 = vunpack.c.l.b16 %v1633
    %v1694 = vunpack.c.l.b16 %v1634
    %v1695 = vunpack.c.l.b16 %v1635
    %v1696 = vunpack.c.l.b16 %v1636
    %v1697 = vunpack.c.l.b16 %v1637
    %v1698 = vunpack.c.l.b16 %v1638
    %v1699 = vunpack.c.l.b16 %v1639
    %v1700 = vunpack.c.l.b16 %v1640
    %v1701 = vunpack.c.l.b16 %v1641
    %v1702 = vunpack.c.l.b16 %v1642
    %v1703 = vpack.c.b16 %v1688, %v1687
    %v1704 = vpack.c.b16 %v1690, %v1689
    %v1705 = vpack.c.b16 %v1692, %v1691
    %v1706 = vpack.c.b16 %v1694, %v1693
    %v1707 = vpack.c.b16 %v1696, %v1695
    %v1708 = vpack.c.b16 %v1698, %v1697
    %v1709 = vpack.c.b16 %v1700, %v1699
    %v1710 = vpack.c.b16 %v1702, %v1701
    %1719 = vmatpush.bf16.msra.mxu0 %v1710
    %1720 = vmatpush.bf16.msra.mxu0 %v1709
    %1721 = vmatpush.bf16.msra.mxu0 %v1708
    %1722 = vmatpush.bf16.msra.mxu0 %v1707
    %1723 = vmatpush.bf16.msra.mxu0 %v1706
    %1724 = vmatpush.bf16.msra.mxu0 %v1705
    %1725 = vmatpush.bf16.msra.mxu0 %v1704
    %1726 = vmatpush.bf16.msra.mxu0 %v1703
    %1727 = vmatmul.bf16.gmra.mxu0 %v1663
    %v1728 = vpop.f32.mrf.mxu0
    %v1729 = vadd.f32 %v1645, %v1728
    %v1730 = vpop.f32.mrf.mxu0
    %v1731 = vadd.f32 %v1645, %v1730
    %1732 = vmatmul.bf16.gmra.mxu0 %v1664
    %v1733 = vpop.f32.mrf.mxu0
    %v1734 = vadd.f32 %v1645, %v1733
    %v1735 = vpop.f32.mrf.mxu0
    %v1736 = vadd.f32 %v1645, %v1735
    %1737 = vmatmul.bf16.gmra.mxu0 %v1665
    %v1738 = vpop.f32.mrf.mxu0
    %v1739 = vadd.f32 %v1645, %v1738
    %v1740 = vpop.f32.mrf.mxu0
    %v1741 = vadd.f32 %v1645, %v1740
    %1742 = vmatmul.bf16.gmra.mxu0 %v1666
    %v1743 = vpop.f32.mrf.mxu0
    %v1744 = vadd.f32 %v1645, %v1743
    %v1745 = vpop.f32.mrf.mxu0
    %v1746 = vadd.f32 %v1645, %v1745
    %1747 = vdwg.mxu0
    %1748 = vst [vmem:[#allocation15] sm:$0xff] %v1729
    %1749 = vst [vmem:[#allocation15 + $0x8] sm:$0xff] %v1731
    %1750 = vst [vmem:[#allocation15 + $0x10] sm:$0xff] %v1734
    %1751 = vst [vmem:[#allocation15 + $0x18] sm:$0xff] %v1736
    %1752 = vst [vmem:[#allocation15 + $0x20] sm:$0xff] %v1739
    %1753 = vst [vmem:[#allocation15 + $0x28] sm:$0xff] %v1741
    %1754 = vst [vmem:[#allocation15 + $0x30] sm:$0xff] %v1744
    %1755 = vst [vmem:[#allocation15 + $0x38] sm:$0xff] %v1746
    // Predicated region
    $region57: #{tpu_custom_call.1} parent=1 // pred_check
      _
    $region58: #{tpu_custom_call.1} parent=1 // pred_check_branch
      %1757 = sbr.rel (0) target = $region60
    $region59: #{tpu_custom_call.1} parent=1 // pred_region
      %1759 = vsyncadd [#allocation8], 0
      %s1760 = sshll.u32 [#allocation15], 4
      %s1761 = int_to_ptr.vmem [resolvable:$true] %s1760
      %s1762 = sshll.u32 %s6, 4
      %s1763 = int_to_ptr.hbm [resolvable:$true] %s1762
      %1768 = dma.vmem_to_hbm [thread:$0]  %s1761, 1024, %s1763, [#allocation8], 128, 128, 8
    $region60: #{tpu_custom_call.1} parent=1 // pred_fallthru
      _
    // Predicated region
    $region61: #{tpu_custom_call.1} parent=1 // pred_check
      _
    $region62: #{tpu_custom_call.1} parent=1 // pred_check_branch
      %1770 = sbr.rel (0) target = $region64
    $region63: #{tpu_custom_call.1} parent=1 // pred_region
      %1772 = dma.done [#allocation8], 1024
    $region64: #{tpu_custom_call.1} parent=1 // pred_fallthru
      _
    %1773 = vsyncpa [#allocation7], 1
    %1774 = vsyncpa [#allocation10], 1
    %1775 = vsyncpa [#allocation13], 1
    %1776 = vsyncpa [#allocation8], 1

</llo_original>
